<compile_context>
chip_gen: v7x
topology: tpu7x:2x2x1
jax: 0.10.0
libtpu: 0.0.40
codegen_flags: <defaults>
</compile_context>

<pallas_src>
import math

import jax
import jax.numpy as jnp
from jax.experimental import pallas as pl
from jax.experimental.pallas import tpu as pltpu

LANE = 128
_TILE_G = 16  # batch-tile granularity: keeps bf16 activation blocks sublane-aligned


def _round_up(x, m):
    return ((x + m - 1) // m) * m


# ----------------------------- Pallas kernel ------------------------------ #
def mlp_kernel(
    time_ref, x_ref,                           # (TB,1) f32 timesteps, (TB,DIN_P) bf16 fused cat+cont
    fs_ref,                                    # (1, MID_P) f32 sinusoidal freqs (zero padded)
    tw1c_ref, tw1s_ref, tb1_ref,               # time_emb.fc[0] split into cos/sin row halves (bf16/f32)
    tw2_ref, tb2_ref,                          # time_emb.fc[2]
    pw_ref, pb_ref,                            # proj (fused cat+cont rows)
    fw1_ref, fb1_ref, fw2_ref, fb2_ref,        # fc: Linear->ReLU->Linear->ReLU
    ow_ref, ob_ref,                            # final_layer.linear (zero padded to 128 lanes)
    out_ref,                                   # (TB, O_P) lane-dense f32 output slab
):
    f32 = jnp.float32
    bf16 = jnp.bfloat16

    # --- TimeStepEmbedding (non-fourier sinusoidal).  The cos/sin lane-concat
    #     is folded into two matmuls against the split first-linear weight.
    #     Transcendentals + bias math in f32 (v5e has no bf16 VPU/EUP); only
    #     the MXU operands are cast to bf16. ---
    args = time_ref[...] * fs_ref[...]                                   # (TB, MID_P) f32
    h = (jnp.dot(jnp.cos(args).astype(bf16), tw1c_ref[...],
                 preferred_element_type=f32)
         + jnp.dot(jnp.sin(args).astype(bf16), tw1s_ref[...],
                   preferred_element_type=f32)
         + tb1_ref[...])
    h = h * jax.nn.sigmoid(h)                                            # SiLU (f32)
    cond = (jnp.dot(h.astype(bf16), tw2_ref[...], preferred_element_type=f32)
            + tb2_ref[...])

    # --- proj(concat(x_cat, x_cont)) + cond; the concat was fused in the
    #     wrapper into one lane-dense bf16 operand + one stacked weight. ---
    x = (jnp.dot(x_ref[...], pw_ref[...], preferred_element_type=f32)
         + pb_ref[...] + cond)

    # --- fc: (Linear -> ReLU) x n_layers (n_layers = 2 here). ---
    x = jnp.maximum(
        jnp.dot(x.astype(bf16), fw1_ref[...], preferred_element_type=f32)
        + fb1_ref[...], 0.0)
    x = jnp.maximum(
        jnp.dot(x.astype(bf16), fw2_ref[...], preferred_element_type=f32)
        + fb2_ref[...], 0.0)

    # --- FinalLayer linear; the logits split happens in the wrapper. ---
    out_ref[...] = (jnp.dot(x.astype(bf16), ow_ref[...], preferred_element_type=f32)
                    + ob_ref[...]).astype(out_ref.dtype)


# ------------------------------ tiling helpers ----------------------------- #
def _choose_batch_tile(bp, block_b):
    """Pick a multiple-of-16 batch tile.

    Prefers (a) an exact divisor of bp so the wrapper never materialises a
    padded activation copy and (b) >= 2 grid tiles when the batch is big
    enough, so both v7x TensorCores get work and the pipeline has DMAs to
    overlap.  Tile size is bounded by vreg pressure, not VMEM, so we do not
    grow it just because v5e/v6e have more VMEM."""
    cap = max(_TILE_G, min(block_b, bp))
    cap -= cap % _TILE_G
    if bp <= 128:                      # tiny batch: one tile
        return bp
    n_target = max(2, pl.cdiv(bp, cap))
    tb = min(cap, _round_up(pl.cdiv(bp, n_target), _TILE_G))
    for cand in range(tb, 63, -_TILE_G):     # snap to an exact divisor if any
        if bp % cand == 0:
            return cand
    return tb                                # ragged tail -> small wrapper pad


def _vmem_ceiling_bytes():
    """Generation-aware VMEM ceiling (never the full physical size: leave
    Mosaic internal-scratch headroom).  ~108 MiB on v5e/v6e, ~54 MiB on v7x."""
    try:
        cap = int(pltpu.get_tpu_info().vmem_capacity_bytes)
    except Exception:
        cap = 64 << 20                       # conservative fallback (v7x-sized)
    return max(int(cap * 0.85), 32 << 20)


# ------------------------------- wrapper ----------------------------------- #
def mlp_forward(kparams, x_cat_emb_t, x_cont_t, time, *,
                num_cont_features, categories, block_b=256):
    B = time.shape[0]
    num_cat = len(categories)
    dim_out = sum(categories) + num_cont_features
    o_p = kparams["ow"].shape[1]
    din_p = kparams["pw"].shape[0]
    mid_p = kparams["fs"].shape[1]
    e_p = kparams["tw2"].shape[0]
    u_p = kparams["fw2"].shape[0]

    # Fuse cat-embedding + continuous features into one operand.
    # 'B F D -> B (F D)' is a free row-major reshape.
    parts = []
    if num_cat > 0:
        parts.append(x_cat_emb_t.reshape(B, -1).astype(jnp.float32))
    if num_cont_features > 0:
        parts.append(x_cont_t.astype(jnp.float32))
    x_in = parts[0] if len(parts) == 1 else jnp.concatenate(parts, axis=-1)
    din = x_in.shape[1]
    assert din <= din_p, "fused input wider than padded proj weight rows"

    time_col = time.astype(jnp.float32).reshape(B, 1)

    # Batch tiling.
    bp = _round_up(B, _TILE_G)
    tb = _choose_batch_tile(bp, block_b)
    n_tiles = pl.cdiv(bp, tb)
    b_pad = n_tiles * tb

    # One pad covers the (usually zero) batch-row pad and the lane pad that
    # makes the fused operand a dense K=din_p MXU operand; cast to bf16 so the
    # activation DMA moves half the bytes.
    if b_pad != B or din != din_p:
        x_in = jnp.pad(x_in, ((0, b_pad - B), (0, din_p - din)))
    x_in = x_in.astype(jnp.bfloat16)
    if b_pad != B:
        time_col = jnp.pad(time_col, ((0, b_pad - B), (0, 0)))

    weight_keys = ("fs", "tw1c", "tw1s", "tb1", "tw2", "tb2",
                   "pw", "pb", "fw1", "fb1", "fw2", "fb2", "ow", "ob")
    weights = tuple(kparams[k] for k in weight_keys)
    weight_bytes = sum(int(w.size) * w.dtype.itemsize for w in weights)

    # VMEM budget: weights (+1 or x2 buffering), double-buffered activation
    # tiles, real f32 intermediates of the matmul chain, plus headroom.
    act_in_bytes = 2 * tb * (1 * 4 + din_p * 2)
    act_out_bytes = 2 * tb * o_p * 4
    inter_bytes = tb * (3 * mid_p + 4 * e_p + 2 * u_p + o_p) * 4
    ceiling = _vmem_ceiling_bytes()

    # Advisory cost estimate for the XLA scheduler.
    macs_per_row = (2 * mid_p * e_p + e_p * e_p + din_p * e_p
                    + e_p * u_p + u_p * u_p + u_p * o_p)
    cost = pl.CostEstimate(
        flops=int(2 * b_pad * macs_per_row),
        transcendentals=int(b_pad * (2 * mid_p + e_p)),
        bytes_accessed=int(weight_bytes + b_pad * (4 + 2 * din_p + 4 * o_p)),
    )

    def call(single_buffer_weights):
        wbuf = 1 if single_buffer_weights else 2
        vmem_limit = int(min(max(wbuf * weight_bytes + act_in_bytes
                                 + act_out_bytes + inter_bytes + (8 << 20),
                                 32 << 20), ceiling))

        def batch_spec(width):
            return pl.BlockSpec((tb, width), lambda i: (i, 0))

        def resident_spec(w):
            # Full-array block + constant block index -> weight stays
            # VMEM-resident; single-buffered when supported (the second
            # pipeline buffer would be pure waste for a constant index map).
            kw = {"pipeline_mode": pl.Buffered(1)} if single_buffer_weights else {}
            return pl.BlockSpec(w.shape, lambda i: (0, 0), **kw)

        in_specs = ([batch_spec(1), batch_spec(din_p)]
                    + [resident_spec(w) for w in weights])
        out_spec = pl.BlockSpec((tb, o_p), lambda i: (i, 0))

        return pl.pallas_call(
            mlp_kernel,
            out_shape=jax.ShapeDtypeStruct((b_pad, o_p), jnp.float32),
            grid=(n_tiles,),
            in_specs=in_specs,
            out_specs=out_spec,
            compiler_params=pltpu.CompilerParams(
                dimension_semantics=("parallel",),
                vmem_limit_bytes=vmem_limit),
            cost_estimate=cost,
        )(time_col, x_in, *weights)

    try:
        out = call(True)
    except Exception:
        # pl.Buffered(1) (single-buffered resident weights) not accepted by this
        # jax/mosaic version -- fall back to default double-buffered specs.
        out = call(False)

    out = out[:B, :dim_out]

    # FinalLayer split semantics: [num_cont, *categories] along the last dim.
    cont_logits = out[:, :num_cont_features] if num_cont_features > 0 else None
    cat_logits = None
    if num_cat > 0:
        chunks = []
        off = num_cont_features
        for c in categories:
            chunks.append(out[:, off:off + c])
            off += c
        cat_logits = tuple(chunks)
    return cat_logits, cont_logits


# --------------------------- parameter creation ----------------------------- #
def make_params(key, *, num_cont_features, cat_emb_dim, categories, proportions,
                emb_dim, n_units, max_period=10000):
    """Logical (unpadded, f32) parameters, PyTorch-Linear-style uniform init
    except the final layer: weight = 0, bias = [zeros(num_cont), log(props)]."""
    num_cat = len(categories)
    dim_in = num_cont_features + num_cat * cat_emb_dim

    def linear(k, din, dout):
        kw, kb = jax.random.split(k)
        bound = 1.0 / math.sqrt(din)
        w = jax.random.uniform(kw, (din, dout), jnp.float32, -bound, bound)
        b = jax.random.uniform(kb, (1, dout), jnp.float32, -bound, bound)
        return w, b

    ks = jax.random.split(key, 5)
    tw1, tb1 = linear(ks[0], emb_dim, emb_dim)
    tw2, tb2 = linear(ks[1], emb_dim, emb_dim)
    pw, pb = linear(ks[2], dim_in, emb_dim)
    fw1, fb1 = linear(ks[3], emb_dim, n_units)
    fw2, fb2 = linear(ks[4], n_units, n_units)

    dim_out = sum(categories) + num_cont_features
    ow = jnp.zeros((n_units, dim_out), jnp.float32)
    ob = jnp.concatenate(
        [jnp.zeros((num_cont_features,), jnp.float32),
         jnp.log(jnp.concatenate(proportions))]).reshape(1, dim_out)

    mid = emb_dim // 2
    fs = jnp.exp(-math.log(max_period) / mid *
                 jnp.arange(mid, dtype=jnp.float32)).reshape(1, mid)

    return dict(fs=fs, tw1=tw1, tb1=tb1, tw2=tw2, tb2=tb2,
                pw=pw, pb=pb, fw1=fw1, fb1=fb1, fw2=fw2, fb2=fb2,
                ow=ow, ob=ob)


def pad_params_for_kernel(params):
    """Zero-pad every weight to lane-dense (multiple-of-128) widths, split tw1
    into cos/sin row halves, and cast matmul weights to bf16 (biases/freqs stay
    f32 for the epilogue math).  Zero padding keeps the math exact: padded
    lanes stay 0 through every Linear / SiLU / ReLU (see invariant at top).

    Note (v6e/v7x MXU is 256x256): logical widths <= 128 pad to 128 lanes and
    therefore fill only half of a 256-wide MXU pass; widths in (128, 256]
    already round up to 256 and use the full array."""
    mid = params["fs"].shape[1]
    emb = params["tw1"].shape[0]
    din = params["pw"].shape[0]
    n_units = params["fw1"].shape[1]
    dim_out = params["ow"].shape[1]
    mid_p = _round_up(mid, LANE)
    e_p = _round_up(emb, LANE)
    u_p = _round_up(n_units, LANE)
    o_p = _round_up(dim_out, LANE)
    din_p = _round_up(din, LANE)

    def pad2(w, rows, cols, dtype):
        w = jnp.asarray(w, jnp.float32)
        return jnp.pad(w, ((0, rows - w.shape[0]), (0, cols - w.shape[1]))).astype(dtype)

    bf16, f32 = jnp.bfloat16, jnp.float32
    return dict(
        fs=pad2(params["fs"], 1, mid_p, f32),
        tw1c=pad2(params["tw1"][:mid], mid_p, e_p, bf16),   # rows multiplying cos(args)
        tw1s=pad2(params["tw1"][mid:], mid_p, e_p, bf16),   # rows multiplying sin(args)
        tb1=pad2(params["tb1"], 1, e_p, f32),
        tw2=pad2(params["tw2"], e_p, e_p, bf16),
        tb2=pad2(params["tb2"], 1, e_p, f32),
        pw=pad2(params["pw"], din_p, e_p, bf16),            # fused cat+cont rows
        pb=pad2(params["pb"], 1, e_p, f32),
        fw1=pad2(params["fw1"], e_p, u_p, bf16),
        fb1=pad2(params["fb1"], 1, u_p, f32),
        fw2=pad2(params["fw2"], u_p, u_p, bf16),
        fb2=pad2(params["fb2"], 1, u_p, f32),
        ow=pad2(params["ow"], u_p, o_p, bf16),
        ob=pad2(params["ob"], 1, o_p, f32),
    )


# ------------------------------ pure-JAX ref -------------------------------- #
def mlp_reference(params, x_cat_emb_t, x_cont_t, time):
    """Reference that mirrors the kernel's numerics: bf16 operands at every
    matmul, f32 accumulation, f32 elementwise math."""
    bf16, f32 = jnp.bfloat16, jnp.float32

    def bdot(a, w):
        return jnp.dot(a.astype(bf16), jnp.asarray(w).astype(bf16),
                       preferred_element_type=f32)

    B = time.shape[0]
    args = time.astype(f32).reshape(B, 1) * params["fs"]
    emb = jnp.concatenate([jnp.cos(args), jnp.sin(args)], axis=-1)
    h = bdot(emb, params["tw1"]) + params["tb1"]
    h = h * jax.nn.sigmoid(h)
    cond = bdot(h, params["tw2"]) + params["tb2"]
    x = jnp.concatenate([x_cat_emb_t.reshape(B, -1), x_cont_t], axis=-1)
    x = bdot(x, params["pw"]) + params["pb"] + cond
    x = jnp.maximum(bdot(x, params["fw1"]) + params["fb1"], 0.0)
    x = jnp.maximum(bdot(x, params["fw2"]) + params["fb2"], 0.0)
    return bdot(x, params["ow"]) + params["ob"]


if __name__ == "__main__":
    # Small shapes consistent with the module's forward.
    B = 8
    num_cont_features = 4
    cat_emb_dim = 4
    categories = (3, 5, 4)
    emb_dim = 32
    n_units = 32
    # n_layers = 2 (matches the two fc layers in the kernel)
    proportions = [jnp.full((c,), 1.0 / c, jnp.float32) for c in categories]

    key = jax.random.PRNGKey(0)
    kp, k1, k2, k3, k4 = jax.random.split(key, 5)

    params = make_params(
        kp, num_cont_features=num_cont_features, cat_emb_dim=cat_emb_dim,
        categories=categories, proportions=proportions,
        emb_dim=emb_dim, n_units=n_units)

    x_cat_emb_t = jax.random.normal(k1, (B, len(categories), cat_emb_dim), jnp.float32)
    x_cont_t = jax.random.normal(k2, (B, num_cont_features), jnp.float32)
    time = jax.random.uniform(k3, (B,), jnp.float32, 0.0, 1000.0)

    def check(p, xc, xn, t, block_b=256):
        kpad = pad_params_for_kernel(p)
        cat_logits, cont_logits = mlp_forward(
            kpad, xc, xn, t,
            num_cont_features=num_cont_features, categories=categories,
            block_b=block_b)
        jax.block_until_ready((cat_logits, cont_logits))
        ref = mlp_reference(p, xc, xn, t)
        full = jnp.concatenate([cont_logits, *cat_logits], axis=-1)
        err = float(jnp.max(jnp.abs(full - ref)))
        # bf16 MXU operands -> tolerance relaxed vs the old f32-exact check.
        assert jnp.allclose(full, ref, atol=2e-2, rtol=2e-2), \
            f"mismatch vs reference (max abs err {err})"
        assert cont_logits.shape == (xc.shape[0], num_cont_features)
        assert tuple(c.shape for c in cat_logits) == tuple(
            (xc.shape[0], c) for c in categories)

    # 1) spec-faithful init (final weight == 0, bias == [0, log(proportions)]).
    check(params, x_cat_emb_t, x_cont_t, time)

    # 2) non-zero final weight so the check exercises the full fused path.
    params_full = dict(params)
    params_full["ow"] = 0.05 * jax.random.normal(k4, params["ow"].shape, jnp.float32)
    check(params_full, x_cat_emb_t, x_cont_t, time)

    # 3) larger, non-multiple batch exercises the multi-tile grid (>=2 tiles for
    #    megacore) and the divisor-preferring tile selection.
    B2 = 600
    kb1, kb2, kb3 = jax.random.split(jax.random.PRNGKey(1), 3)
    xc2 = jax.random.normal(kb1, (B2, len(categories), cat_emb_dim), jnp.float32)
    xn2 = jax.random.normal(kb2, (B2, num_cont_features), jnp.float32)
    t2 = jax.random.uniform(kb3, (B2,), jnp.float32, 0.0, 1000.0)
    check(params_full, xc2, xn2, t2, block_b=256)

    print("KERNEL_OK")
</pallas_src>

<mosaic_0001>
module attributes {stable_mosaic.version = 11 : i64} {
  func.func @mlp_kernel(%arg0: i32, %arg1: memref<16x1xf32, #tpu.memory_space<vmem>>, %arg2: memref<16x128xbf16, #tpu.memory_space<vmem>>, %arg3: memref<1x128xf32, #tpu.memory_space<vmem>>, %arg4: memref<128x128xbf16, #tpu.memory_space<vmem>>, %arg5: memref<128x128xbf16, #tpu.memory_space<vmem>>, %arg6: memref<1x128xf32, #tpu.memory_space<vmem>>, %arg7: memref<128x128xbf16, #tpu.memory_space<vmem>>, %arg8: memref<1x128xf32, #tpu.memory_space<vmem>>, %arg9: memref<128x128xbf16, #tpu.memory_space<vmem>>, %arg10: memref<1x128xf32, #tpu.memory_space<vmem>>, %arg11: memref<128x128xbf16, #tpu.memory_space<vmem>>, %arg12: memref<1x128xf32, #tpu.memory_space<vmem>>, %arg13: memref<128x128xbf16, #tpu.memory_space<vmem>>, %arg14: memref<1x128xf32, #tpu.memory_space<vmem>>, %arg15: memref<128x128xbf16, #tpu.memory_space<vmem>>, %arg16: memref<1x128xf32, #tpu.memory_space<vmem>>, %arg17: memref<16x128xf32, #tpu.memory_space<vmem>>) attributes {dimension_semantics = [#tpu.dimension_semantics<parallel>], iteration_bounds = array<i64: 1>, scalar_prefetch = 0 : i64, scratch_operands = 0 : i64, tpu.core_type = #tpu.core_type<tc>, window_params = [{transform_indices = @transform_0, window_bounds = array<i64: 16, 1>}, {transform_indices = @transform_1, window_bounds = array<i64: 16, 128>}, {pipeline_mode = #tpu.pipeline_mode<synchronous>, transform_indices = @transform_2, window_bounds = array<i64: 1, 128>}, {pipeline_mode = #tpu.pipeline_mode<synchronous>, transform_indices = @transform_3, window_bounds = array<i64: 128, 128>}, {pipeline_mode = #tpu.pipeline_mode<synchronous>, transform_indices = @transform_4, window_bounds = array<i64: 128, 128>}, {pipeline_mode = #tpu.pipeline_mode<synchronous>, transform_indices = @transform_5, window_bounds = array<i64: 1, 128>}, {pipeline_mode = #tpu.pipeline_mode<synchronous>, transform_indices = @transform_6, window_bounds = array<i64: 128, 128>}, {pipeline_mode = #tpu.pipeline_mode<synchronous>, transform_indices = @transform_7, window_bounds = array<i64: 1, 128>}, {pipeline_mode = #tpu.pipeline_mode<synchronous>, transform_indices = @transform_8, window_bounds = array<i64: 128, 128>}, {pipeline_mode = #tpu.pipeline_mode<synchronous>, transform_indices = @transform_9, window_bounds = array<i64: 1, 128>}, {pipeline_mode = #tpu.pipeline_mode<synchronous>, transform_indices = @transform_10, window_bounds = array<i64: 128, 128>}, {pipeline_mode = #tpu.pipeline_mode<synchronous>, transform_indices = @transform_11, window_bounds = array<i64: 1, 128>}, {pipeline_mode = #tpu.pipeline_mode<synchronous>, transform_indices = @transform_12, window_bounds = array<i64: 128, 128>}, {pipeline_mode = #tpu.pipeline_mode<synchronous>, transform_indices = @transform_13, window_bounds = array<i64: 1, 128>}, {pipeline_mode = #tpu.pipeline_mode<synchronous>, transform_indices = @transform_14, window_bounds = array<i64: 128, 128>}, {pipeline_mode = #tpu.pipeline_mode<synchronous>, transform_indices = @transform_15, window_bounds = array<i64: 1, 128>}, {transform_indices = @transform_16, window_bounds = array<i64: 16, 128>}]} {
    %c0 = arith.constant 0 : index
    %c0_0 = arith.constant 0 : index
    %0 = vector.load %arg1[%c0, %c0_0] : memref<16x1xf32, #tpu.memory_space<vmem>>, vector<16x1xf32>
    %c0_1 = arith.constant 0 : index
    %c0_2 = arith.constant 0 : index
    %1 = vector.load %arg3[%c0_1, %c0_2] : memref<1x128xf32, #tpu.memory_space<vmem>>, vector<1x128xf32>
    %2 = vector.broadcast %0 : vector<16x1xf32> to vector<16x128xf32>
    %3 = vector.broadcast %1 : vector<1x128xf32> to vector<16x128xf32>
    %4 = arith.mulf %2, %3 : vector<16x128xf32>
    %5 = math.cos %4 : vector<16x128xf32>
    %6 = arith.truncf %5 : vector<16x128xf32> to vector<16x128xbf16>
    %c0_3 = arith.constant 0 : index
    %c0_4 = arith.constant 0 : index
    %7 = vector.load %arg4[%c0_3, %c0_4] : memref<128x128xbf16, #tpu.memory_space<vmem>>, vector<128x128xbf16>
    %cst = arith.constant dense<0.000000e+00> : vector<16x128xf32>
    %8 = tpu.matmul %6, %7, %cst {dimension_numbers = #tpu.dot_dimension_numbers<[1], [0], [0], [1], [0, 0, 1, 1], [], []>} : vector<16x128xbf16>, vector<128x128xbf16>, vector<16x128xf32> -> vector<16x128xf32>
    %9 = math.sin %4 : vector<16x128xf32>
    %10 = arith.truncf %9 : vector<16x128xf32> to vector<16x128xbf16>
    %c0_5 = arith.constant 0 : index
    %c0_6 = arith.constant 0 : index
    %11 = vector.load %arg5[%c0_5, %c0_6] : memref<128x128xbf16, #tpu.memory_space<vmem>>, vector<128x128xbf16>
    %cst_7 = arith.constant dense<0.000000e+00> : vector<16x128xf32>
    %12 = tpu.matmul %10, %11, %cst_7 {dimension_numbers = #tpu.dot_dimension_numbers<[1], [0], [0], [1], [0, 0, 1, 1], [], []>} : vector<16x128xbf16>, vector<128x128xbf16>, vector<16x128xf32> -> vector<16x128xf32>
    %13 = arith.addf %8, %12 : vector<16x128xf32>
    %c0_8 = arith.constant 0 : index
    %c0_9 = arith.constant 0 : index
    %14 = vector.load %arg6[%c0_8, %c0_9] : memref<1x128xf32, #tpu.memory_space<vmem>>, vector<1x128xf32>
    %15 = vector.broadcast %14 : vector<1x128xf32> to vector<16x128xf32>
    %16 = arith.addf %13, %15 : vector<16x128xf32>
    %17 = arith.negf %16 : vector<16x128xf32>
    %18 = math.exp %17 : vector<16x128xf32>
    %cst_10 = arith.constant 1.000000e+00 : f32
    %19 = vector.broadcast %cst_10 : f32 to vector<16x128xf32>
    %20 = arith.addf %19, %18 : vector<16x128xf32>
    %21 = arith.divf %19, %20 : vector<16x128xf32>
    %22 = arith.mulf %16, %21 : vector<16x128xf32>
    %23 = arith.truncf %22 : vector<16x128xf32> to vector<16x128xbf16>
    %c0_11 = arith.constant 0 : index
    %c0_12 = arith.constant 0 : index
    %24 = vector.load %arg7[%c0_11, %c0_12] : memref<128x128xbf16, #tpu.memory_space<vmem>>, vector<128x128xbf16>
    %cst_13 = arith.constant dense<0.000000e+00> : vector<16x128xf32>
    %25 = tpu.matmul %23, %24, %cst_13 {dimension_numbers = #tpu.dot_dimension_numbers<[1], [0], [0], [1], [0, 0, 1, 1], [], []>} : vector<16x128xbf16>, vector<128x128xbf16>, vector<16x128xf32> -> vector<16x128xf32>
    %c0_14 = arith.constant 0 : index
    %c0_15 = arith.constant 0 : index
    %26 = vector.load %arg8[%c0_14, %c0_15] : memref<1x128xf32, #tpu.memory_space<vmem>>, vector<1x128xf32>
    %27 = vector.broadcast %26 : vector<1x128xf32> to vector<16x128xf32>
    %28 = arith.addf %25, %27 : vector<16x128xf32>
    %c0_16 = arith.constant 0 : index
    %c0_17 = arith.constant 0 : index
    %29 = vector.load %arg2[%c0_16, %c0_17] : memref<16x128xbf16, #tpu.memory_space<vmem>>, vector<16x128xbf16>
    %c0_18 = arith.constant 0 : index
    %c0_19 = arith.constant 0 : index
    %30 = vector.load %arg9[%c0_18, %c0_19] : memref<128x128xbf16, #tpu.memory_space<vmem>>, vector<128x128xbf16>
    %cst_20 = arith.constant dense<0.000000e+00> : vector<16x128xf32>
    %31 = tpu.matmul %29, %30, %cst_20 {dimension_numbers = #tpu.dot_dimension_numbers<[1], [0], [0], [1], [0, 0, 1, 1], [], []>} : vector<16x128xbf16>, vector<128x128xbf16>, vector<16x128xf32> -> vector<16x128xf32>
    %c0_21 = arith.constant 0 : index
    %c0_22 = arith.constant 0 : index
    %32 = vector.load %arg10[%c0_21, %c0_22] : memref<1x128xf32, #tpu.memory_space<vmem>>, vector<1x128xf32>
    %33 = vector.broadcast %32 : vector<1x128xf32> to vector<16x128xf32>
    %34 = arith.addf %31, %33 : vector<16x128xf32>
    %35 = arith.addf %34, %28 : vector<16x128xf32>
    %36 = arith.truncf %35 : vector<16x128xf32> to vector<16x128xbf16>
    %c0_23 = arith.constant 0 : index
    %c0_24 = arith.constant 0 : index
    %37 = vector.load %arg11[%c0_23, %c0_24] : memref<128x128xbf16, #tpu.memory_space<vmem>>, vector<128x128xbf16>
    %cst_25 = arith.constant dense<0.000000e+00> : vector<16x128xf32>
    %38 = tpu.matmul %36, %37, %cst_25 {dimension_numbers = #tpu.dot_dimension_numbers<[1], [0], [0], [1], [0, 0, 1, 1], [], []>} : vector<16x128xbf16>, vector<128x128xbf16>, vector<16x128xf32> -> vector<16x128xf32>
    %c0_26 = arith.constant 0 : index
    %c0_27 = arith.constant 0 : index
    %39 = vector.load %arg12[%c0_26, %c0_27] : memref<1x128xf32, #tpu.memory_space<vmem>>, vector<1x128xf32>
    %40 = vector.broadcast %39 : vector<1x128xf32> to vector<16x128xf32>
    %41 = arith.addf %38, %40 : vector<16x128xf32>
    %cst_28 = arith.constant 0.000000e+00 : f32
    %42 = vector.broadcast %cst_28 : f32 to vector<16x128xf32>
    %43 = arith.maximumf %41, %42 : vector<16x128xf32>
    %44 = arith.truncf %43 : vector<16x128xf32> to vector<16x128xbf16>
    %c0_29 = arith.constant 0 : index
    %c0_30 = arith.constant 0 : index
    %45 = vector.load %arg13[%c0_29, %c0_30] : memref<128x128xbf16, #tpu.memory_space<vmem>>, vector<128x128xbf16>
    %cst_31 = arith.constant dense<0.000000e+00> : vector<16x128xf32>
    %46 = tpu.matmul %44, %45, %cst_31 {dimension_numbers = #tpu.dot_dimension_numbers<[1], [0], [0], [1], [0, 0, 1, 1], [], []>} : vector<16x128xbf16>, vector<128x128xbf16>, vector<16x128xf32> -> vector<16x128xf32>
    %c0_32 = arith.constant 0 : index
    %c0_33 = arith.constant 0 : index
    %47 = vector.load %arg14[%c0_32, %c0_33] : memref<1x128xf32, #tpu.memory_space<vmem>>, vector<1x128xf32>
    %48 = vector.broadcast %47 : vector<1x128xf32> to vector<16x128xf32>
    %49 = arith.addf %46, %48 : vector<16x128xf32>
    %cst_34 = arith.constant 0.000000e+00 : f32
    %50 = vector.broadcast %cst_34 : f32 to vector<16x128xf32>
    %51 = arith.maximumf %49, %50 : vector<16x128xf32>
    %52 = arith.truncf %51 : vector<16x128xf32> to vector<16x128xbf16>
    %c0_35 = arith.constant 0 : index
    %c0_36 = arith.constant 0 : index
    %53 = vector.load %arg15[%c0_35, %c0_36] : memref<128x128xbf16, #tpu.memory_space<vmem>>, vector<128x128xbf16>
    %cst_37 = arith.constant dense<0.000000e+00> : vector<16x128xf32>
    %54 = tpu.matmul %52, %53, %cst_37 {dimension_numbers = #tpu.dot_dimension_numbers<[1], [0], [0], [1], [0, 0, 1, 1], [], []>} : vector<16x128xbf16>, vector<128x128xbf16>, vector<16x128xf32> -> vector<16x128xf32>
    %c0_38 = arith.constant 0 : index
    %c0_39 = arith.constant 0 : index
    %55 = vector.load %arg16[%c0_38, %c0_39] : memref<1x128xf32, #tpu.memory_space<vmem>>, vector<1x128xf32>
    %56 = vector.broadcast %55 : vector<1x128xf32> to vector<16x128xf32>
    %57 = arith.addf %54, %56 : vector<16x128xf32>
    %c0_40 = arith.constant 0 : index
    %c0_41 = arith.constant 0 : index
    %58 = vector.load %arg17[%c0_40, %c0_41] : memref<16x128xf32, #tpu.memory_space<vmem>>, vector<16x128xf32>
    tpu.vector_store %arg17[%c0_40, %c0_41], %57 {strides = array<i32>} : memref<16x128xf32, #tpu.memory_space<vmem>>, vector<16x128xf32>,
    return
  }
  func.func @transform_0(%arg0: i32) -> (i32, i32) {
    %c0_i32 = arith.constant 0 : i32
    %c0_i32_0 = arith.constant 0 : i32
    return %arg0, %c0_i32 : i32, i32
  }
  func.func @transform_1(%arg0: i32) -> (i32, i32) {
    %c0_i32 = arith.constant 0 : i32
    %c0_i32_0 = arith.constant 0 : i32
    return %arg0, %c0_i32 : i32, i32
  }
  func.func @transform_2(%arg0: i32) -> (i32, i32) {
    %c0_i32 = arith.constant 0 : i32
    %c0_i32_0 = arith.constant 0 : i32
    %c0_i32_1 = arith.constant 0 : i32
    return %c0_i32, %c0_i32_0 : i32, i32
  }
  func.func @transform_3(%arg0: i32) -> (i32, i32) {
    %c0_i32 = arith.constant 0 : i32
    %c0_i32_0 = arith.constant 0 : i32
    %c0_i32_1 = arith.constant 0 : i32
    return %c0_i32, %c0_i32_0 : i32, i32
  }
  func.func @transform_4(%arg0: i32) -> (i32, i32) {
    %c0_i32 = arith.constant 0 : i32
    %c0_i32_0 = arith.constant 0 : i32
    %c0_i32_1 = arith.constant 0 : i32
    return %c0_i32, %c0_i32_0 : i32, i32
  }
  func.func @transform_5(%arg0: i32) -> (i32, i32) {
    %c0_i32 = arith.constant 0 : i32
    %c0_i32_0 = arith.constant 0 : i32
    %c0_i32_1 = arith.constant 0 : i32
    return %c0_i32, %c0_i32_0 : i32, i32
  }
  func.func @transform_6(%arg0: i32) -> (i32, i32) {
    %c0_i32 = arith.constant 0 : i32
    %c0_i32_0 = arith.constant 0 : i32
    %c0_i32_1 = arith.constant 0 : i32
    return %c0_i32, %c0_i32_0 : i32, i32
  }
  func.func @transform_7(%arg0: i32) -> (i32, i32) {
    %c0_i32 = arith.constant 0 : i32
    %c0_i32_0 = arith.constant 0 : i32
    %c0_i32_1 = arith.constant 0 : i32
    return %c0_i32, %c0_i32_0 : i32, i32
  }
  func.func @transform_8(%arg0: i32) -> (i32, i32) {
    %c0_i32 = arith.constant 0 : i32
    %c0_i32_0 = arith.constant 0 : i32
    %c0_i32_1 = arith.constant 0 : i32
    return %c0_i32, %c0_i32_0 : i32, i32
  }
  func.func @transform_9(%arg0: i32) -> (i32, i32) {
    %c0_i32 = arith.constant 0 : i32
    %c0_i32_0 = arith.constant 0 : i32
    %c0_i32_1 = arith.constant 0 : i32
    return %c0_i32, %c0_i32_0 : i32, i32
  }
  func.func @transform_10(%arg0: i32) -> (i32, i32) {
    %c0_i32 = arith.constant 0 : i32
    %c0_i32_0 = arith.constant 0 : i32
    %c0_i32_1 = arith.constant 0 : i32
    return %c0_i32, %c0_i32_0 : i32, i32
  }
  func.func @transform_11(%arg0: i32) -> (i32, i32) {
    %c0_i32 = arith.constant 0 : i32
    %c0_i32_0 = arith.constant 0 : i32
    %c0_i32_1 = arith.constant 0 : i32
    return %c0_i32, %c0_i32_0 : i32, i32
  }
  func.func @transform_12(%arg0: i32) -> (i32, i32) {
    %c0_i32 = arith.constant 0 : i32
    %c0_i32_0 = arith.constant 0 : i32
    %c0_i32_1 = arith.constant 0 : i32
    return %c0_i32, %c0_i32_0 : i32, i32
  }
  func.func @transform_13(%arg0: i32) -> (i32, i32) {
    %c0_i32 = arith.constant 0 : i32
    %c0_i32_0 = arith.constant 0 : i32
    %c0_i32_1 = arith.constant 0 : i32
    return %c0_i32, %c0_i32_0 : i32, i32
  }
  func.func @transform_14(%arg0: i32) -> (i32, i32) {
    %c0_i32 = arith.constant 0 : i32
    %c0_i32_0 = arith.constant 0 : i32
    %c0_i32_1 = arith.constant 0 : i32
    return %c0_i32, %c0_i32_0 : i32, i32
  }
  func.func @transform_15(%arg0: i32) -> (i32, i32) {
    %c0_i32 = arith.constant 0 : i32
    %c0_i32_0 = arith.constant 0 : i32
    %c0_i32_1 = arith.constant 0 : i32
    return %c0_i32, %c0_i32_0 : i32, i32
  }
  func.func @transform_16(%arg0: i32) -> (i32, i32) {
    %c0_i32 = arith.constant 0 : i32
    %c0_i32_0 = arith.constant 0 : i32
    return %arg0, %c0_i32 : i32, i32
  }
}

module attributes {stable_mosaic.version = 11 : i64} {
  func.func @mlp_kernel(%arg0: i32, %arg1: memref<16x1xf32, #tpu.memory_space<vmem>>, %arg2: memref<16x128xbf16, #tpu.memory_space<vmem>>, %arg3: memref<1x128xf32, #tpu.memory_space<vmem>>, %arg4: memref<128x128xbf16, #tpu.memory_space<vmem>>, %arg5: memref<128x128xbf16, #tpu.memory_space<vmem>>, %arg6: memref<1x128xf32, #tpu.memory_space<vmem>>, %arg7: memref<128x128xbf16, #tpu.memory_space<vmem>>, %arg8: memref<1x128xf32, #tpu.memory_space<vmem>>, %arg9: memref<128x128xbf16, #tpu.memory_space<vmem>>, %arg10: memref<1x128xf32, #tpu.memory_space<vmem>>, %arg11: memref<128x128xbf16, #tpu.memory_space<vmem>>, %arg12: memref<1x128xf32, #tpu.memory_space<vmem>>, %arg13: memref<128x128xbf16, #tpu.memory_space<vmem>>, %arg14: memref<1x128xf32, #tpu.memory_space<vmem>>, %arg15: memref<128x128xbf16, #tpu.memory_space<vmem>>, %arg16: memref<1x128xf32, #tpu.memory_space<vmem>>, %arg17: memref<16x128xf32, #tpu.memory_space<vmem>>) attributes {dimension_semantics = [#tpu.dimension_semantics<parallel>], iteration_bounds = array<i64: 1>, scalar_prefetch = 0 : i64, scratch_operands = 0 : i64, tpu.core_type = #tpu.core_type<tc>, window_params = [{transform_indices = @transform_0, window_bounds = array<i64: 16, 1>}, {transform_indices = @transform_1, window_bounds = array<i64: 16, 128>}, {pipeline_mode = #tpu.pipeline_mode<synchronous>, transform_indices = @transform_2, window_bounds = array<i64: 1, 128>}, {pipeline_mode = #tpu.pipeline_mode<synchronous>, transform_indices = @transform_3, window_bounds = array<i64: 128, 128>}, {pipeline_mode = #tpu.pipeline_mode<synchronous>, transform_indices = @transform_4, window_bounds = array<i64: 128, 128>}, {pipeline_mode = #tpu.pipeline_mode<synchronous>, transform_indices = @transform_5, window_bounds = array<i64: 1, 128>}, {pipeline_mode = #tpu.pipeline_mode<synchronous>, transform_indices = @transform_6, window_bounds = array<i64: 128, 128>}, {pipeline_mode = #tpu.pipeline_mode<synchronous>, transform_indices = @transform_7, window_bounds = array<i64: 1, 128>}, {pipeline_mode = #tpu.pipeline_mode<synchronous>, transform_indices = @transform_8, window_bounds = array<i64: 128, 128>}, {pipeline_mode = #tpu.pipeline_mode<synchronous>, transform_indices = @transform_9, window_bounds = array<i64: 1, 128>}, {pipeline_mode = #tpu.pipeline_mode<synchronous>, transform_indices = @transform_10, window_bounds = array<i64: 128, 128>}, {pipeline_mode = #tpu.pipeline_mode<synchronous>, transform_indices = @transform_11, window_bounds = array<i64: 1, 128>}, {pipeline_mode = #tpu.pipeline_mode<synchronous>, transform_indices = @transform_12, window_bounds = array<i64: 128, 128>}, {pipeline_mode = #tpu.pipeline_mode<synchronous>, transform_indices = @transform_13, window_bounds = array<i64: 1, 128>}, {pipeline_mode = #tpu.pipeline_mode<synchronous>, transform_indices = @transform_14, window_bounds = array<i64: 128, 128>}, {pipeline_mode = #tpu.pipeline_mode<synchronous>, transform_indices = @transform_15, window_bounds = array<i64: 1, 128>}, {transform_indices = @transform_16, window_bounds = array<i64: 16, 128>}]} {
    %c0 = arith.constant 0 : index
    %c0_0 = arith.constant 0 : index
    %0 = vector.load %arg1[%c0, %c0_0] : memref<16x1xf32, #tpu.memory_space<vmem>>, vector<16x1xf32>
    %c0_1 = arith.constant 0 : index
    %c0_2 = arith.constant 0 : index
    %1 = vector.load %arg3[%c0_1, %c0_2] : memref<1x128xf32, #tpu.memory_space<vmem>>, vector<1x128xf32>
    %2 = vector.broadcast %0 : vector<16x1xf32> to vector<16x128xf32>
    %3 = vector.broadcast %1 : vector<1x128xf32> to vector<16x128xf32>
    %4 = arith.mulf %2, %3 : vector<16x128xf32>
    %5 = math.cos %4 : vector<16x128xf32>
    %6 = arith.truncf %5 : vector<16x128xf32> to vector<16x128xbf16>
    %c0_3 = arith.constant 0 : index
    %c0_4 = arith.constant 0 : index
    %7 = vector.load %arg4[%c0_3, %c0_4] : memref<128x128xbf16, #tpu.memory_space<vmem>>, vector<128x128xbf16>
    %cst = arith.constant dense<0.000000e+00> : vector<16x128xf32>
    %8 = tpu.matmul %6, %7, %cst {dimension_numbers = #tpu.dot_dimension_numbers<[1], [0], [0], [1], [0, 0, 1, 1], [], []>} : vector<16x128xbf16>, vector<128x128xbf16>, vector<16x128xf32> -> vector<16x128xf32>
    %9 = math.sin %4 : vector<16x128xf32>
    %10 = arith.truncf %9 : vector<16x128xf32> to vector<16x128xbf16>
    %c0_5 = arith.constant 0 : index
    %c0_6 = arith.constant 0 : index
    %11 = vector.load %arg5[%c0_5, %c0_6] : memref<128x128xbf16, #tpu.memory_space<vmem>>, vector<128x128xbf16>
    %cst_7 = arith.constant dense<0.000000e+00> : vector<16x128xf32>
    %12 = tpu.matmul %10, %11, %cst_7 {dimension_numbers = #tpu.dot_dimension_numbers<[1], [0], [0], [1], [0, 0, 1, 1], [], []>} : vector<16x128xbf16>, vector<128x128xbf16>, vector<16x128xf32> -> vector<16x128xf32>
    %13 = arith.addf %8, %12 : vector<16x128xf32>
    %c0_8 = arith.constant 0 : index
    %c0_9 = arith.constant 0 : index
    %14 = vector.load %arg6[%c0_8, %c0_9] : memref<1x128xf32, #tpu.memory_space<vmem>>, vector<1x128xf32>
    %15 = vector.broadcast %14 : vector<1x128xf32> to vector<16x128xf32>
    %16 = arith.addf %13, %15 : vector<16x128xf32>
    %17 = arith.negf %16 : vector<16x128xf32>
    %18 = math.exp %17 : vector<16x128xf32>
    %cst_10 = arith.constant 1.000000e+00 : f32
    %19 = vector.broadcast %cst_10 : f32 to vector<16x128xf32>
    %20 = arith.addf %19, %18 : vector<16x128xf32>
    %21 = arith.divf %19, %20 : vector<16x128xf32>
    %22 = arith.mulf %16, %21 : vector<16x128xf32>
    %23 = arith.truncf %22 : vector<16x128xf32> to vector<16x128xbf16>
    %c0_11 = arith.constant 0 : index
    %c0_12 = arith.constant 0 : index
    %24 = vector.load %arg7[%c0_11, %c0_12] : memref<128x128xbf16, #tpu.memory_space<vmem>>, vector<128x128xbf16>
    %cst_13 = arith.constant dense<0.000000e+00> : vector<16x128xf32>
    %25 = tpu.matmul %23, %24, %cst_13 {dimension_numbers = #tpu.dot_dimension_numbers<[1], [0], [0], [1], [0, 0, 1, 1], [], []>} : vector<16x128xbf16>, vector<128x128xbf16>, vector<16x128xf32> -> vector<16x128xf32>
    %c0_14 = arith.constant 0 : index
    %c0_15 = arith.constant 0 : index
    %26 = vector.load %arg8[%c0_14, %c0_15] : memref<1x128xf32, #tpu.memory_space<vmem>>, vector<1x128xf32>
    %27 = vector.broadcast %26 : vector<1x128xf32> to vector<16x128xf32>
    %28 = arith.addf %25, %27 : vector<16x128xf32>
    %c0_16 = arith.constant 0 : index
    %c0_17 = arith.constant 0 : index
    %29 = vector.load %arg2[%c0_16, %c0_17] : memref<16x128xbf16, #tpu.memory_space<vmem>>, vector<16x128xbf16>
    %c0_18 = arith.constant 0 : index
    %c0_19 = arith.constant 0 : index
    %30 = vector.load %arg9[%c0_18, %c0_19] : memref<128x128xbf16, #tpu.memory_space<vmem>>, vector<128x128xbf16>
    %cst_20 = arith.constant dense<0.000000e+00> : vector<16x128xf32>
    %31 = tpu.matmul %29, %30, %cst_20 {dimension_numbers = #tpu.dot_dimension_numbers<[1], [0], [0], [1], [0, 0, 1, 1], [], []>} : vector<16x128xbf16>, vector<128x128xbf16>, vector<16x128xf32> -> vector<16x128xf32>
    %c0_21 = arith.constant 0 : index
    %c0_22 = arith.constant 0 : index
    %32 = vector.load %arg10[%c0_21, %c0_22] : memref<1x128xf32, #tpu.memory_space<vmem>>, vector<1x128xf32>
    %33 = vector.broadcast %32 : vector<1x128xf32> to vector<16x128xf32>
    %34 = arith.addf %31, %33 : vector<16x128xf32>
    %35 = arith.addf %34, %28 : vector<16x128xf32>
    %36 = arith.truncf %35 : vector<16x128xf32> to vector<16x128xbf16>
    %c0_23 = arith.constant 0 : index
    %c0_24 = arith.constant 0 : index
    %37 = vector.load %arg11[%c0_23, %c0_24] : memref<128x128xbf16, #tpu.memory_space<vmem>>, vector<128x128xbf16>
    %cst_25 = arith.constant dense<0.000000e+00> : vector<16x128xf32>
    %38 = tpu.matmul %36, %37, %cst_25 {dimension_numbers = #tpu.dot_dimension_numbers<[1], [0], [0], [1], [0, 0, 1, 1], [], []>} : vector<16x128xbf16>, vector<128x128xbf16>, vector<16x128xf32> -> vector<16x128xf32>
    %c0_26 = arith.constant 0 : index
    %c0_27 = arith.constant 0 : index
    %39 = vector.load %arg12[%c0_26, %c0_27] : memref<1x128xf32, #tpu.memory_space<vmem>>, vector<1x128xf32>
    %40 = vector.broadcast %39 : vector<1x128xf32> to vector<16x128xf32>
    %41 = arith.addf %38, %40 : vector<16x128xf32>
    %cst_28 = arith.constant 0.000000e+00 : f32
    %42 = vector.broadcast %cst_28 : f32 to vector<16x128xf32>
    %43 = arith.maximumf %41, %42 : vector<16x128xf32>
    %44 = arith.truncf %43 : vector<16x128xf32> to vector<16x128xbf16>
    %c0_29 = arith.constant 0 : index
    %c0_30 = arith.constant 0 : index
    %45 = vector.load %arg13[%c0_29, %c0_30] : memref<128x128xbf16, #tpu.memory_space<vmem>>, vector<128x128xbf16>
    %cst_31 = arith.constant dense<0.000000e+00> : vector<16x128xf32>
    %46 = tpu.matmul %44, %45, %cst_31 {dimension_numbers = #tpu.dot_dimension_numbers<[1], [0], [0], [1], [0, 0, 1, 1], [], []>} : vector<16x128xbf16>, vector<128x128xbf16>, vector<16x128xf32> -> vector<16x128xf32>
    %c0_32 = arith.constant 0 : index
    %c0_33 = arith.constant 0 : index
    %47 = vector.load %arg14[%c0_32, %c0_33] : memref<1x128xf32, #tpu.memory_space<vmem>>, vector<1x128xf32>
    %48 = vector.broadcast %47 : vector<1x128xf32> to vector<16x128xf32>
    %49 = arith.addf %46, %48 : vector<16x128xf32>
    %cst_34 = arith.constant 0.000000e+00 : f32
    %50 = vector.broadcast %cst_34 : f32 to vector<16x128xf32>
    %51 = arith.maximumf %49, %50 : vector<16x128xf32>
    %52 = arith.truncf %51 : vector<16x128xf32> to vector<16x128xbf16>
    %c0_35 = arith.constant 0 : index
    %c0_36 = arith.constant 0 : index
    %53 = vector.load %arg15[%c0_35, %c0_36] : memref<128x128xbf16, #tpu.memory_space<vmem>>, vector<128x128xbf16>
    %cst_37 = arith.constant dense<0.000000e+00> : vector<16x128xf32>
    %54 = tpu.matmul %52, %53, %cst_37 {dimension_numbers = #tpu.dot_dimension_numbers<[1], [0], [0], [1], [0, 0, 1, 1], [], []>} : vector<16x128xbf16>, vector<128x128xbf16>, vector<16x128xf32> -> vector<16x128xf32>
    %c0_38 = arith.constant 0 : index
    %c0_39 = arith.constant 0 : index
    %55 = vector.load %arg16[%c0_38, %c0_39] : memref<1x128xf32, #tpu.memory_space<vmem>>, vector<1x128xf32>
    %56 = vector.broadcast %55 : vector<1x128xf32> to vector<16x128xf32>
    %57 = arith.addf %54, %56 : vector<16x128xf32>
    %c0_40 = arith.constant 0 : index
    %c0_41 = arith.constant 0 : index
    %58 = vector.load %arg17[%c0_40, %c0_41] : memref<16x128xf32, #tpu.memory_space<vmem>>, vector<16x128xf32>
    tpu.vector_store %arg17[%c0_40, %c0_41], %57 {strides = array<i32>} : memref<16x128xf32, #tpu.memory_space<vmem>>, vector<16x128xf32>,
    return
  }
  func.func @transform_0(%arg0: i32) -> (i32, i32) {
    %c0_i32 = arith.constant 0 : i32
    %c0_i32_0 = arith.constant 0 : i32
    return %arg0, %c0_i32 : i32, i32
  }
  func.func @transform_1(%arg0: i32) -> (i32, i32) {
    %c0_i32 = arith.constant 0 : i32
    %c0_i32_0 = arith.constant 0 : i32
    return %arg0, %c0_i32 : i32, i32
  }
  func.func @transform_2(%arg0: i32) -> (i32, i32) {
    %c0_i32 = arith.constant 0 : i32
    %c0_i32_0 = arith.constant 0 : i32
    %c0_i32_1 = arith.constant 0 : i32
    return %c0_i32, %c0_i32_0 : i32, i32
  }
  func.func @transform_3(%arg0: i32) -> (i32, i32) {
    %c0_i32 = arith.constant 0 : i32
    %c0_i32_0 = arith.constant 0 : i32
    %c0_i32_1 = arith.constant 0 : i32
    return %c0_i32, %c0_i32_0 : i32, i32
  }
  func.func @transform_4(%arg0: i32) -> (i32, i32) {
    %c0_i32 = arith.constant 0 : i32
    %c0_i32_0 = arith.constant 0 : i32
    %c0_i32_1 = arith.constant 0 : i32
    return %c0_i32, %c0_i32_0 : i32, i32
  }
  func.func @transform_5(%arg0: i32) -> (i32, i32) {
    %c0_i32 = arith.constant 0 : i32
    %c0_i32_0 = arith.constant 0 : i32
    %c0_i32_1 = arith.constant 0 : i32
    return %c0_i32, %c0_i32_0 : i32, i32
  }
  func.func @transform_6(%arg0: i32) -> (i32, i32) {
    %c0_i32 = arith.constant 0 : i32
    %c0_i32_0 = arith.constant 0 : i32
    %c0_i32_1 = arith.constant 0 : i32
    return %c0_i32, %c0_i32_0 : i32, i32
  }
  func.func @transform_7(%arg0: i32) -> (i32, i32) {
    %c0_i32 = arith.constant 0 : i32
    %c0_i32_0 = arith.constant 0 : i32
    %c0_i32_1 = arith.constant 0 : i32
    return %c0_i32, %c0_i32_0 : i32, i32
  }
  func.func @transform_8(%arg0: i32) -> (i32, i32) {
    %c0_i32 = arith.constant 0 : i32
    %c0_i32_0 = arith.constant 0 : i32
    %c0_i32_1 = arith.constant 0 : i32
    return %c0_i32, %c0_i32_0 : i32, i32
  }
  func.func @transform_9(%arg0: i32) -> (i32, i32) {
    %c0_i32 = arith.constant 0 : i32
    %c0_i32_0 = arith.constant 0 : i32
    %c0_i32_1 = arith.constant 0 : i32
    return %c0_i32, %c0_i32_0 : i32, i32
  }
  func.func @transform_10(%arg0: i32) -> (i32, i32) {
    %c0_i32 = arith.constant 0 : i32
    %c0_i32_0 = arith.constant 0 : i32
    %c0_i32_1 = arith.constant 0 : i32
    return %c0_i32, %c0_i32_0 : i32, i32
  }
  func.func @transform_11(%arg0: i32) -> (i32, i32) {
    %c0_i32 = arith.constant 0 : i32
    %c0_i32_0 = arith.constant 0 : i32
    %c0_i32_1 = arith.constant 0 : i32
    return %c0_i32, %c0_i32_0 : i32, i32
  }
  func.func @transform_12(%arg0: i32) -> (i32, i32) {
    %c0_i32 = arith.constant 0 : i32
    %c0_i32_0 = arith.constant 0 : i32
    %c0_i32_1 = arith.constant 0 : i32
    return %c0_i32, %c0_i32_0 : i32, i32
  }
  func.func @transform_13(%arg0: i32) -> (i32, i32) {
    %c0_i32 = arith.constant 0 : i32
    %c0_i32_0 = arith.constant 0 : i32
    %c0_i32_1 = arith.constant 0 : i32
    return %c0_i32, %c0_i32_0 : i32, i32
  }
  func.func @transform_14(%arg0: i32) -> (i32, i32) {
    %c0_i32 = arith.constant 0 : i32
    %c0_i32_0 = arith.constant 0 : i32
    %c0_i32_1 = arith.constant 0 : i32
    return %c0_i32, %c0_i32_0 : i32, i32
  }
  func.func @transform_15(%arg0: i32) -> (i32, i32) {
    %c0_i32 = arith.constant 0 : i32
    %c0_i32_0 = arith.constant 0 : i32
    %c0_i32_1 = arith.constant 0 : i32
    return %c0_i32, %c0_i32_0 : i32, i32
  }
  func.func @transform_16(%arg0: i32) -> (i32, i32) {
    %c0_i32 = arith.constant 0 : i32
    %c0_i32_0 = arith.constant 0 : i32
    return %arg0, %c0_i32 : i32, i32
  }
}

</mosaic_0001>

<llo_original>
// kernel: tpu_custom_call.1
$region0: #{tpu_custom_call.1}
  #allocation0 [shape = 'u32[]', space=smem, size = 0x4, offset = 0x4, fixed_abs, tag = 'smem constant byte address 0x4 - core index']
  #allocation1 [shape = 'u32[144,128]{1,0:T(1,128)}', space=vmem, size = 0x12000, scoped, tag = 'internal scratch']
  %s0 = inlined_call_operand.vmem [shape: f32[16,1], index: 0, kind: input, shape index: {}]
  %s1 = inlined_call_operand.hbm [shape: bf16[16,128], index: 1, kind: input, shape index: {}]
  %s2 = inlined_call_operand.vmem [shape: f32[1,128], index: 2, kind: input, shape index: {}]
  %s3 = inlined_call_operand.hbm [shape: bf16[128,128], index: 3, kind: input, shape index: {}]
  %s4 = inlined_call_operand.hbm [shape: bf16[128,128], index: 4, kind: input, shape index: {}]
  %s5 = inlined_call_operand.vmem [shape: f32[1,128], index: 5, kind: input, shape index: {}]
  %s6 = inlined_call_operand.hbm [shape: bf16[128,128], index: 6, kind: input, shape index: {}]
  %s7 = inlined_call_operand.vmem [shape: f32[1,128], index: 7, kind: input, shape index: {}]
  %s8 = inlined_call_operand.hbm [shape: bf16[128,128], index: 8, kind: input, shape index: {}]
  %s9 = inlined_call_operand.vmem [shape: f32[1,128], index: 9, kind: input, shape index: {}]
  %s10 = inlined_call_operand.hbm [shape: bf16[128,128], index: 10, kind: input, shape index: {}]
  %s11 = inlined_call_operand.vmem [shape: f32[1,128], index: 11, kind: input, shape index: {}]
  %s12 = inlined_call_operand.hbm [shape: bf16[128,128], index: 12, kind: input, shape index: {}]
  %s13 = inlined_call_operand.vmem [shape: f32[1,128], index: 13, kind: input, shape index: {}]
  %s14 = inlined_call_operand.vmem [shape: bf16[128,128], index: 14, kind: input, shape index: {}]
  %s15 = inlined_call_operand.vmem [shape: f32[1,128], index: 15, kind: input, shape index: {}]
  %s16 = inlined_call_operand.hbm [shape: f32[16,128], index: 16, kind: output, shape index: {}]
  %s17 = sld [smem:[#allocation0]]
  $region102: #{tpu_custom_call.1} parent=0
    _
  %s19 = ssub.s32 1, %s17
  %s20 = scalar_select 0, %s19, %s17
  $region1: #{tpu_custom_call.1} parent=0
    #allocation2 [shape = 'u8[4096]{0}', space=vmem, size = 0x1000, scoped, tag = 'input window, operand 1, single buffered']
    #allocation3 [shape = 's32[1]{0}', space=sflag, size = 0x4, scoped, tag = 'scoped memory for tpu_custom_call.1']
    #allocation4 [shape = 's32[1]{0}', space=sflag, size = 0x4, scoped, tag = 'scoped memory for tpu_custom_call.1']
    #allocation5 [shape = 'u8[32768]{0}', space=vmem, size = 0x8000, scoped, tag = 'input window, operand 3, single buffered']
    #allocation6 [shape = 's32[1]{0}', space=sflag, size = 0x4, scoped, tag = 'scoped memory for tpu_custom_call.1']
    #allocation7 [shape = 'u8[32768]{0}', space=vmem, size = 0x8000, scoped, tag = 'input window, operand 4, single buffered']
    #allocation8 [shape = 'u8[32768]{0}', space=vmem, size = 0x8000, scoped, tag = 'input window, operand 6, single buffered']
    #allocation9 [shape = 's32[1]{0}', space=sflag, size = 0x4, scoped, tag = 'scoped memory for tpu_custom_call.1']
    #allocation10 [shape = 'u8[32768]{0}', space=vmem, size = 0x8000, scoped, tag = 'input window, operand 8, single buffered']
    #allocation11 [shape = 'u8[32768]{0}', space=vmem, size = 0x8000, scoped, tag = 'input window, operand 10, single buffered']
    #allocation12 [shape = 's32[1]{0}', space=sflag, size = 0x4, scoped, tag = 'scoped memory for tpu_custom_call.1']
    #allocation13 [shape = 'u8[32768]{0}', space=vmem, size = 0x8000, scoped, tag = 'input window, operand 12, single buffered']
    #allocation14 [shape = 'u8[8192]{0}', space=vmem, size = 0x2000, scoped, tag = 'output window, operand 0, single buffered']
    %21 = vsyncpa [#allocation3], 0
    %22 = vsyncpa [#allocation6], 0
    %23 = vsyncpa [#allocation9], 0
    %24 = vsyncpa [#allocation12], 0
    %25 = vsyncpa [#allocation4], 0
    // Predicated region
    $region2: #{tpu_custom_call.1} parent=1 // pred_check
      _
    $region3: #{tpu_custom_call.1} parent=1 // pred_check_branch
      %27 = sbr.rel (0) target = $region5
    $region4: #{tpu_custom_call.1} parent=1 // pred_region
      _
    $region5: #{tpu_custom_call.1} parent=1 // pred_fallthru
      _
    // Predicated region
    $region6: #{tpu_custom_call.1} parent=1 // pred_check
      _
    $region7: #{tpu_custom_call.1} parent=1 // pred_check_branch
      %29 = sbr.rel (0) target = $region9
    $region8: #{tpu_custom_call.1} parent=1 // pred_region
      %s31 = ssub.s32 128, 128
      %32 = vsyncadd [#allocation3], %s31
      %s33 = sshll.u32 [#allocation2], 4
      %s34 = int_to_ptr.vmem [resolvable:$true] %s33
      %39 = dma.hbm_to_vmem [thread:$0]  %s1, 128, %s34, [#allocation3], 64, 64, 4
    $region9: #{tpu_custom_call.1} parent=1 // pred_fallthru
      _
    // Predicated region
    $region10: #{tpu_custom_call.1} parent=1 // pred_check
      _
    $region11: #{tpu_custom_call.1} parent=1 // pred_check_branch
      %41 = sbr.rel (0) target = $region13
    $region12: #{tpu_custom_call.1} parent=1 // pred_region
      _
    $region13: #{tpu_custom_call.1} parent=1 // pred_fallthru
      _
    // Predicated region
    $region14: #{tpu_custom_call.1} parent=1 // pred_check
      _
    $region15: #{tpu_custom_call.1} parent=1 // pred_check_branch
      %43 = sbr.rel (0) target = $region17
    $region16: #{tpu_custom_call.1} parent=1 // pred_region
      %s45 = ssub.s32 1024, 1024
      %46 = vsyncadd [#allocation6], %s45
      %s47 = sshll.u32 [#allocation5], 4
      %s48 = int_to_ptr.vmem [resolvable:$true] %s47
      %53 = dma.hbm_to_vmem [thread:$0]  %s3, 1024, %s48, [#allocation6], 64, 64, 4
    $region17: #{tpu_custom_call.1} parent=1 // pred_fallthru
      _
    // Predicated region
    $region18: #{tpu_custom_call.1} parent=1 // pred_check
      _
    $region19: #{tpu_custom_call.1} parent=1 // pred_check_branch
      %55 = sbr.rel (0) target = $region21
    $region20: #{tpu_custom_call.1} parent=1 // pred_region
      %s57 = ssub.s32 1024, 1024
      %58 = vsyncadd [#allocation6], %s57
      %s59 = sshll.u32 [#allocation7], 4
      %s60 = int_to_ptr.vmem [resolvable:$true] %s59
      %65 = dma.hbm_to_vmem [thread:$0]  %s4, 1024, %s60, [#allocation6], 64, 64, 4
    $region21: #{tpu_custom_call.1} parent=1 // pred_fallthru
      _
    // Predicated region
    $region22: #{tpu_custom_call.1} parent=1 // pred_check
      _
    $region23: #{tpu_custom_call.1} parent=1 // pred_check_branch
      %67 = sbr.rel (0) target = $region25
    $region24: #{tpu_custom_call.1} parent=1 // pred_region
      _
    $region25: #{tpu_custom_call.1} parent=1 // pred_fallthru
      _
    // Predicated region
    $region26: #{tpu_custom_call.1} parent=1 // pred_check
      _
    $region27: #{tpu_custom_call.1} parent=1 // pred_check_branch
      %69 = sbr.rel (0) target = $region29
    $region28: #{tpu_custom_call.1} parent=1 // pred_region
      %s71 = ssub.s32 1024, 1024
      %72 = vsyncadd [#allocation9], %s71
      %s73 = sshll.u32 [#allocation8], 4
      %s74 = int_to_ptr.vmem [resolvable:$true] %s73
      %79 = dma.hbm_to_vmem [thread:$0]  %s6, 1024, %s74, [#allocation9], 64, 64, 4
    $region29: #{tpu_custom_call.1} parent=1 // pred_fallthru
      _
    // Predicated region
    $region30: #{tpu_custom_call.1} parent=1 // pred_check
      _
    $region31: #{tpu_custom_call.1} parent=1 // pred_check_branch
      %81 = sbr.rel (0) target = $region33
    $region32: #{tpu_custom_call.1} parent=1 // pred_region
      _
    $region33: #{tpu_custom_call.1} parent=1 // pred_fallthru
      _
    // Predicated region
    $region34: #{tpu_custom_call.1} parent=1 // pred_check
      _
    $region35: #{tpu_custom_call.1} parent=1 // pred_check_branch
      %83 = sbr.rel (0) target = $region37
    $region36: #{tpu_custom_call.1} parent=1 // pred_region
      %s85 = ssub.s32 1024, 1024
      %86 = vsyncadd [#allocation9], %s85
      %s87 = sshll.u32 [#allocation10], 4
      %s88 = int_to_ptr.vmem [resolvable:$true] %s87
      %93 = dma.hbm_to_vmem [thread:$0]  %s8, 1024, %s88, [#allocation9], 64, 64, 4
    $region37: #{tpu_custom_call.1} parent=1 // pred_fallthru
      _
    // Predicated region
    $region38: #{tpu_custom_call.1} parent=1 // pred_check
      _
    $region39: #{tpu_custom_call.1} parent=1 // pred_check_branch
      %95 = sbr.rel (0) target = $region41
    $region40: #{tpu_custom_call.1} parent=1 // pred_region
      _
    $region41: #{tpu_custom_call.1} parent=1 // pred_fallthru
      _
    // Predicated region
    $region42: #{tpu_custom_call.1} parent=1 // pred_check
      _
    $region43: #{tpu_custom_call.1} parent=1 // pred_check_branch
      %97 = sbr.rel (0) target = $region45
    $region44: #{tpu_custom_call.1} parent=1 // pred_region
      %s99 = ssub.s32 1024, 1024
      %100 = vsyncadd [#allocation12], %s99
      %s101 = sshll.u32 [#allocation11], 4
      %s102 = int_to_ptr.vmem [resolvable:$true] %s101
      %107 = dma.hbm_to_vmem [thread:$0]  %s10, 1024, %s102, [#allocation12], 64, 64, 4
    $region45: #{tpu_custom_call.1} parent=1 // pred_fallthru
      _
    // Predicated region
    $region46: #{tpu_custom_call.1} parent=1 // pred_check
      _
    $region47: #{tpu_custom_call.1} parent=1 // pred_check_branch
      %109 = sbr.rel (0) target = $region49
    $region48: #{tpu_custom_call.1} parent=1 // pred_region
      _
    $region49: #{tpu_custom_call.1} parent=1 // pred_fallthru
      _
    // Predicated region
    $region50: #{tpu_custom_call.1} parent=1 // pred_check
      _
    $region51: #{tpu_custom_call.1} parent=1 // pred_check_branch
      %111 = sbr.rel (0) target = $region53
    $region52: #{tpu_custom_call.1} parent=1 // pred_region
      %s113 = ssub.s32 1024, 1024
      %114 = vsyncadd [#allocation12], %s113
      %s115 = sshll.u32 [#allocation13], 4
      %s116 = int_to_ptr.vmem [resolvable:$true] %s115
      %121 = dma.hbm_to_vmem [thread:$0]  %s12, 1024, %s116, [#allocation12], 64, 64, 4
    $region53: #{tpu_custom_call.1} parent=1 // pred_fallthru
      _
    // Predicated region
    $region54: #{tpu_custom_call.1} parent=1 // pred_check
      _
    $region55: #{tpu_custom_call.1} parent=1 // pred_check_branch
      %123 = sbr.rel (0) target = $region57
    $region56: #{tpu_custom_call.1} parent=1 // pred_region
      _
    $region57: #{tpu_custom_call.1} parent=1 // pred_fallthru
      _
    // Predicated region
    $region58: #{tpu_custom_call.1} parent=1 // pred_check
      _
    $region59: #{tpu_custom_call.1} parent=1 // pred_check_branch
      %125 = sbr.rel (0) target = $region61
    $region60: #{tpu_custom_call.1} parent=1 // pred_region
      _
    $region61: #{tpu_custom_call.1} parent=1 // pred_fallthru
      _
    // Predicated region
    $region62: #{tpu_custom_call.1} parent=1 // pred_check
      _
    $region63: #{tpu_custom_call.1} parent=1 // pred_check_branch
      %127 = sbr.rel (0) target = $region65
    $region64: #{tpu_custom_call.1} parent=1 // pred_region
      _
    $region65: #{tpu_custom_call.1} parent=1 // pred_fallthru
      _
    // Predicated region
    $region66: #{tpu_custom_call.1} parent=1 // pred_check
      _
    $region67: #{tpu_custom_call.1} parent=1 // pred_check_branch
      %129 = sbr.rel (0) target = $region69
    $region68: #{tpu_custom_call.1} parent=1 // pred_region
      %130 = dma.done [#allocation3], 128
    $region69: #{tpu_custom_call.1} parent=1 // pred_fallthru
      _
    // Predicated region
    $region70: #{tpu_custom_call.1} parent=1 // pred_check
      _
    $region71: #{tpu_custom_call.1} parent=1 // pred_check_branch
      %132 = sbr.rel (0) target = $region73
    $region72: #{tpu_custom_call.1} parent=1 // pred_region
      %133 = dma.done [#allocation6], 1024
    $region73: #{tpu_custom_call.1} parent=1 // pred_fallthru
      _
    // Predicated region
    $region74: #{tpu_custom_call.1} parent=1 // pred_check
      _
    $region75: #{tpu_custom_call.1} parent=1 // pred_check_branch
      %135 = sbr.rel (0) target = $region77
    $region76: #{tpu_custom_call.1} parent=1 // pred_region
      %136 = dma.done [#allocation6], 1024
    $region77: #{tpu_custom_call.1} parent=1 // pred_fallthru
      _
    // Predicated region
    $region78: #{tpu_custom_call.1} parent=1 // pred_check
      _
    $region79: #{tpu_custom_call.1} parent=1 // pred_check_branch
      %138 = sbr.rel (0) target = $region81
    $region80: #{tpu_custom_call.1} parent=1 // pred_region
      %139 = dma.done [#allocation9], 1024
    $region81: #{tpu_custom_call.1} parent=1 // pred_fallthru
      _
    // Predicated region
    $region82: #{tpu_custom_call.1} parent=1 // pred_check
      _
    $region83: #{tpu_custom_call.1} parent=1 // pred_check_branch
      %141 = sbr.rel (0) target = $region85
    $region84: #{tpu_custom_call.1} parent=1 // pred_region
      %142 = dma.done [#allocation9], 1024
    $region85: #{tpu_custom_call.1} parent=1 // pred_fallthru
      _
    // Predicated region
    $region86: #{tpu_custom_call.1} parent=1 // pred_check
      _
    $region87: #{tpu_custom_call.1} parent=1 // pred_check_branch
      %144 = sbr.rel (0) target = $region89
    $region88: #{tpu_custom_call.1} parent=1 // pred_region
      %145 = dma.done [#allocation12], 1024
    $region89: #{tpu_custom_call.1} parent=1 // pred_fallthru
      _
    // Predicated region
    $region90: #{tpu_custom_call.1} parent=1 // pred_check
      _
    $region91: #{tpu_custom_call.1} parent=1 // pred_check_branch
      %147 = sbr.rel (0) target = $region93
    $region92: #{tpu_custom_call.1} parent=1 // pred_region
      %148 = dma.done [#allocation12], 1024
    $region93: #{tpu_custom_call.1} parent=1 // pred_fallthru
      _
    %v150 = vld [vmem:[%s0] sm:$0xff]
    %v151 = vld [vmem:[%s0 + $0x8] sm:$0xff]
    %v152 = vld [vmem:[%s2] sm:$0x1]
    %154 = vset.pattern.permute.xlu0 0
    %155 = vperm.xlu0 %154, %v150
    %v156 = vpop.permute.xlu0 %155
    %159 = vset.pattern.permute.xlu0 0
    %160 = vperm.xlu0 %159, %v151
    %v161 = vpop.permute.xlu0 %160
    %v164 = vlaneseq
    %v165 = vshrl.u32 %v164, 7
    %v166 = vsub.s32 0, %v165
    %v167 = vrot.slane %v152, %v166
    %v169 = vmul.f32 %v156, %v167
    %v170 = vmul.f32 %v161, %v167
    %v171 = vand.u32 2147483647, %v169
    %vm172 = vcmp.le.f32.partialorder %v171, 0.7853982
    %vm173 = vcmp.lt.s32.totalorder %v169, 0
    %v174 = vand.u32 %v169, 2139095040
    %v175 = vshrl.u32 %v174, 23
    %v176 = vsub.s32 %v175, 127
    %v177 = vand.u32 2147483647, %v169
    %v178 = vand.u32 %v177, 8388607
    %v179 = vor.u32 %v178, 8388608
    %v180 = vsub.s32 0, %v179
    %v181 = vadd.s32 %v176, 1
    %vm182 = vcmp.gt.s32.totalorder %v181, 0
    %v183 = vsel %vm182, %v181, 0
    %v184 = vshrl.u32 %v183, 5
    %v185 = vand.u32 %v183, 31
    %v186 = vsub.s32 32, %v185
    %v187 = vshrl.u32 683565275, %v186
    %v188 = vshll.u32 683565275, %v185
    %v189 = vshrl.u32 2475754826, %v186
    %v190 = vor.u32 %v188, %v189
    %v191 = vshll.u32 2475754826, %v185
    %v192 = vshrl.u32 2131351028, %v186
    %v193 = vor.u32 %v191, %v192
    %v194 = vshll.u32 2131351028, %v185
    %v195 = vshrl.u32 2102212464, %v186
    %v196 = vor.u32 %v194, %v195
    %v197 = vshll.u32 2102212464, %v185
    %v198 = vshrl.u32 920167782, %v186
    %v199 = vor.u32 %v197, %v198
    %v200 = vshll.u32 920167782, %v185
    %v201 = vshrl.u32 1326507024, %v186
    %v202 = vor.u32 %v200, %v201
    %vm203 = vcmp.lt.s32.totalorder %v184, 1
    %vm204 = vcmp.lt.s32.totalorder %v184, 2
    %vm205 = vcmp.lt.s32.totalorder %v184, 3
    %vm206 = vcmp.lt.s32.totalorder %v184, 4
    %v207 = vsel %vm203, %v187, %v190
    %v208 = vsel %vm206, %v196, 2102212464
    %v209 = vsel %vm205, %v193, %v208
    %v210 = vsel %vm204, %v207, %v209
    %v211 = vsel %vm203, %v190, %v193
    %v212 = vsel %vm206, %v199, 920167782
    %v213 = vsel %vm205, %v196, %v212
    %v214 = vsel %vm204, %v211, %v213
    %v215 = vsel %vm203, %v193, %v196
    %v216 = vsel %vm206, %v202, 1326507024
    %v217 = vsel %vm205, %v199, %v216
    %v218 = vsel %vm204, %v215, %v217
    %v219 = vshll.u32 %v179, 8
    %v220 = vmul.u32.u64.compose %v219, %v218
    %v221 = vextract.low.u32 %v220
    %v222 = vextract.high.u32 %v220
    %v223 = vmul.u32.u64.compose %v219, %v214
    %v224 = vextract.low.u32 %v223
    %v225 = vextract.high.u32 %v223
    %v226 = vmul.u32 %v219, %v210
    %v227 = vadd.s32 %v222, %v224
    %vm228 = vc.u32 %v222, %v224
    %v229 = vadd.s32 %v225, 1
    %v230 = vsel %vm228, %v229, %v225
    %v231 = vadd.s32 %v226, %v230
    %v232 = vadd.s32 %v231, 536870912
    %v233 = vshrl.u32 %v232, 30
    %v234 = vshll.u32 %v233, 30
    %v235 = vsub.s32 %v231, %v234
    %vm236 = vcmp.lt.s32.totalorder %v235, 0
    %v237 = vsub.s32 0, %v235
    %v238 = vsel %vm236, %v237, %v235
    %v239 = vclz %v238
    %v240 = vsub.s32 %v239, 2
    %vm241 = vcmp.gt.s32.totalorder 0, %v240
    %v242 = vsel %vm241, 0, %v240
    %v243 = vsub.s32 32, %v242
    %v244 = vshll.u32 %v235, %v242
    %v245 = vshrl.u32 %v227, %v243
    %v246 = vor.u32 %v244, %v245
    %v247 = vsub.s32 4294967266, %v242
    %v248 = vadd.s32 %v247, 127
    %v249 = vshll.u32 %v248, 23
    %v250 = vor.u32 4788187, %v249
    %v251 = vand.u32 2147483647, %v250
    %v253 = vcvt.s32.f32 %v246
    %v254 = vmul.f32 %v253, %v251
    %v255 = vxor.u32 %v254, 2147483648
    %v256 = vsel %vm173, %v255, %v254
    %v257 = vsub.s32 4, %v233
    %v258 = vsel %vm173, %v257, %v233
    %v259 = vsel %vm172, %v169, %v256
    %v260 = vsel %vm172, 0, %v258
    %v261 = vcosq.f32.pop %v259
    %v262 = vsinq.f32.pop %v259
    %vm263 = vweird.f32 %v169
    %v264 = vand.u32 %v260, 3
    %vm265 = vcmp.lt.s32.totalorder %v264, 2
    %vm266 = vcmp.eq.s32.totalorder %v264, 0
    %v267 = vxor.u32 %v262, 2147483648
    %v268 = vsel %vm266, %v261, %v267
    %vm269 = vcmp.eq.s32.totalorder %v264, 2
    %v270 = vxor.u32 %v261, 2147483648
    %v271 = vsel %vm269, %v270, %v262
    %v272 = vsel %vm265, %v268, %v271
    %v273 = vsel %vm263, nan, %v272
    %v274 = vand.u32 2147483647, %v170
    %vm275 = vcmp.le.f32.partialorder %v274, 0.7853982
    %vm276 = vcmp.lt.s32.totalorder %v170, 0
    %v277 = vand.u32 %v170, 2139095040
    %v278 = vshrl.u32 %v277, 23
    %v279 = vsub.s32 %v278, 127
    %v280 = vand.u32 2147483647, %v170
    %v281 = vand.u32 %v280, 8388607
    %v282 = vor.u32 %v281, 8388608
    %v283 = vsub.s32 0, %v282
    %v284 = vadd.s32 %v279, 1
    %vm285 = vcmp.gt.s32.totalorder %v284, 0
    %v286 = vsel %vm285, %v284, 0
    %v287 = vshrl.u32 %v286, 5
    %v288 = vand.u32 %v286, 31
    %v289 = vsub.s32 32, %v288
    %v290 = vshrl.u32 683565275, %v289
    %v291 = vshll.u32 683565275, %v288
    %v292 = vshrl.u32 2475754826, %v289
    %v293 = vor.u32 %v291, %v292
    %v294 = vshll.u32 2475754826, %v288
    %v295 = vshrl.u32 2131351028, %v289
    %v296 = vor.u32 %v294, %v295
    %v297 = vshll.u32 2131351028, %v288
    %v298 = vshrl.u32 2102212464, %v289
    %v299 = vor.u32 %v297, %v298
    %v300 = vshll.u32 2102212464, %v288
    %v301 = vshrl.u32 920167782, %v289
    %v302 = vor.u32 %v300, %v301
    %v303 = vshll.u32 920167782, %v288
    %v304 = vshrl.u32 1326507024, %v289
    %v305 = vor.u32 %v303, %v304
    %vm306 = vcmp.lt.s32.totalorder %v287, 1
    %vm307 = vcmp.lt.s32.totalorder %v287, 2
    %vm308 = vcmp.lt.s32.totalorder %v287, 3
    %vm309 = vcmp.lt.s32.totalorder %v287, 4
    %v310 = vsel %vm306, %v290, %v293
    %v311 = vsel %vm309, %v299, 2102212464
    %v312 = vsel %vm308, %v296, %v311
    %v313 = vsel %vm307, %v310, %v312
    %v314 = vsel %vm306, %v293, %v296
    %v315 = vsel %vm309, %v302, 920167782
    %v316 = vsel %vm308, %v299, %v315
    %v317 = vsel %vm307, %v314, %v316
    %v318 = vsel %vm306, %v296, %v299
    %v319 = vsel %vm309, %v305, 1326507024
    %v320 = vsel %vm308, %v302, %v319
    %v321 = vsel %vm307, %v318, %v320
    %v322 = vshll.u32 %v282, 8
    %v323 = vmul.u32.u64.compose %v322, %v321
    %v324 = vextract.low.u32 %v323
    %v325 = vextract.high.u32 %v323
    %v326 = vmul.u32.u64.compose %v322, %v317
    %v327 = vextract.low.u32 %v326
    %v328 = vextract.high.u32 %v326
    %v329 = vmul.u32 %v322, %v313
    %v330 = vadd.s32 %v325, %v327
    %vm331 = vc.u32 %v325, %v327
    %v332 = vadd.s32 %v328, 1
    %v333 = vsel %vm331, %v332, %v328
    %v334 = vadd.s32 %v329, %v333
    %v335 = vadd.s32 %v334, 536870912
    %v336 = vshrl.u32 %v335, 30
    %v337 = vshll.u32 %v336, 30
    %v338 = vsub.s32 %v334, %v337
    %vm339 = vcmp.lt.s32.totalorder %v338, 0
    %v340 = vsub.s32 0, %v338
    %v341 = vsel %vm339, %v340, %v338
    %v342 = vclz %v341
    %v343 = vsub.s32 %v342, 2
    %vm344 = vcmp.gt.s32.totalorder 0, %v343
    %v345 = vsel %vm344, 0, %v343
    %v346 = vsub.s32 32, %v345
    %v347 = vshll.u32 %v338, %v345
    %v348 = vshrl.u32 %v330, %v346
    %v349 = vor.u32 %v347, %v348
    %v350 = vsub.s32 4294967266, %v345
    %v351 = vadd.s32 %v350, 127
    %v352 = vshll.u32 %v351, 23
    %v353 = vor.u32 4788187, %v352
    %v354 = vand.u32 2147483647, %v353
    %v356 = vcvt.s32.f32 %v349
    %v357 = vmul.f32 %v356, %v354
    %v358 = vxor.u32 %v357, 2147483648
    %v359 = vsel %vm276, %v358, %v357
    %v360 = vsub.s32 4, %v336
    %v361 = vsel %vm276, %v360, %v336
    %v362 = vsel %vm275, %v170, %v359
    %v363 = vsel %vm275, 0, %v361
    %v364 = vcosq.f32.pop %v362
    %v365 = vsinq.f32.pop %v362
    %vm366 = vweird.f32 %v170
    %v367 = vand.u32 %v363, 3
    %vm368 = vcmp.lt.s32.totalorder %v367, 2
    %vm369 = vcmp.eq.s32.totalorder %v367, 0
    %v370 = vxor.u32 %v365, 2147483648
    %v371 = vsel %vm369, %v364, %v370
    %vm372 = vcmp.eq.s32.totalorder %v367, 2
    %v373 = vxor.u32 %v364, 2147483648
    %v374 = vsel %vm372, %v373, %v365
    %v375 = vsel %vm368, %v371, %v374
    %v376 = vsel %vm366, nan, %v375
    %v377 = vpack.c.bf16 %v376, %v273
    %v378 = vld [vmem:[#allocation5] sm:$0xf]
    %v379 = vld [vmem:[#allocation5 + $0x4] sm:$0xf]
    %v380 = vld [vmem:[#allocation5 + $0x8] sm:$0xf]
    %v381 = vld [vmem:[#allocation5 + $0xc] sm:$0xf]
    %v382 = vld [vmem:[#allocation5 + $0x10] sm:$0xf]
    %v383 = vld [vmem:[#allocation5 + $0x14] sm:$0xf]
    %v384 = vld [vmem:[#allocation5 + $0x18] sm:$0xf]
    %v385 = vld [vmem:[#allocation5 + $0x1c] sm:$0xf]
    %v386 = vld [vmem:[#allocation5 + $0x20] sm:$0xf]
    %v387 = vld [vmem:[#allocation5 + $0x24] sm:$0xf]
    %v388 = vld [vmem:[#allocation5 + $0x28] sm:$0xf]
    %v389 = vld [vmem:[#allocation5 + $0x2c] sm:$0xf]
    %v390 = vld [vmem:[#allocation5 + $0x30] sm:$0xf]
    %v391 = vld [vmem:[#allocation5 + $0x34] sm:$0xf]
    %v392 = vld [vmem:[#allocation5 + $0x38] sm:$0xf]
    %v393 = vld [vmem:[#allocation5 + $0x3c] sm:$0xf]
    %v394 = vand.u32 2147483647, %v169
    %vm395 = vcmp.le.f32.partialorder %v394, 0.7853982
    %vm396 = vcmp.lt.s32.totalorder %v169, 0
    %v397 = vand.u32 %v169, 2139095040
    %v398 = vshrl.u32 %v397, 23
    %v399 = vsub.s32 %v398, 127
    %v400 = vand.u32 2147483647, %v169
    %v401 = vand.u32 %v400, 8388607
    %v402 = vor.u32 %v401, 8388608
    %v403 = vsub.s32 0, %v402
    %v404 = vadd.s32 %v399, 1
    %vm405 = vcmp.gt.s32.totalorder %v404, 0
    %v406 = vsel %vm405, %v404, 0
    %v407 = vshrl.u32 %v406, 5
    %v408 = vand.u32 %v406, 31
    %v409 = vsub.s32 32, %v408
    %v410 = vshrl.u32 683565275, %v409
    %v411 = vshll.u32 683565275, %v408
    %v412 = vshrl.u32 2475754826, %v409
    %v413 = vor.u32 %v411, %v412
    %v414 = vshll.u32 2475754826, %v408
    %v415 = vshrl.u32 2131351028, %v409
    %v416 = vor.u32 %v414, %v415
    %v417 = vshll.u32 2131351028, %v408
    %v418 = vshrl.u32 2102212464, %v409
    %v419 = vor.u32 %v417, %v418
    %v420 = vshll.u32 2102212464, %v408
    %v421 = vshrl.u32 920167782, %v409
    %v422 = vor.u32 %v420, %v421
    %v423 = vshll.u32 920167782, %v408
    %v424 = vshrl.u32 1326507024, %v409
    %v425 = vor.u32 %v423, %v424
    %vm426 = vcmp.lt.s32.totalorder %v407, 1
    %vm427 = vcmp.lt.s32.totalorder %v407, 2
    %vm428 = vcmp.lt.s32.totalorder %v407, 3
    %vm429 = vcmp.lt.s32.totalorder %v407, 4
    %v430 = vsel %vm426, %v410, %v413
    %v431 = vsel %vm429, %v419, 2102212464
    %v432 = vsel %vm428, %v416, %v431
    %v433 = vsel %vm427, %v430, %v432
    %v434 = vsel %vm426, %v413, %v416
    %v435 = vsel %vm429, %v422, 920167782
    %v436 = vsel %vm428, %v419, %v435
    %v437 = vsel %vm427, %v434, %v436
    %v438 = vsel %vm426, %v416, %v419
    %v439 = vsel %vm429, %v425, 1326507024
    %v440 = vsel %vm428, %v422, %v439
    %v441 = vsel %vm427, %v438, %v440
    %v442 = vshll.u32 %v402, 8
    %v443 = vmul.u32.u64.compose %v442, %v441
    %v444 = vextract.low.u32 %v443
    %v445 = vextract.high.u32 %v443
    %v446 = vmul.u32.u64.compose %v442, %v437
    %v447 = vextract.low.u32 %v446
    %v448 = vextract.high.u32 %v446
    %v449 = vmul.u32 %v442, %v433
    %v450 = vadd.s32 %v445, %v447
    %vm451 = vc.u32 %v445, %v447
    %v452 = vadd.s32 %v448, 1
    %v453 = vsel %vm451, %v452, %v448
    %v454 = vadd.s32 %v449, %v453
    %v455 = vadd.s32 %v454, 536870912
    %v456 = vshrl.u32 %v455, 30
    %v457 = vshll.u32 %v456, 30
    %v458 = vsub.s32 %v454, %v457
    %vm459 = vcmp.lt.s32.totalorder %v458, 0
    %v460 = vsub.s32 0, %v458
    %v461 = vsel %vm459, %v460, %v458
    %v462 = vclz %v461
    %v463 = vsub.s32 %v462, 2
    %vm464 = vcmp.gt.s32.totalorder 0, %v463
    %v465 = vsel %vm464, 0, %v463
    %v466 = vsub.s32 32, %v465
    %v467 = vshll.u32 %v458, %v465
    %v468 = vshrl.u32 %v450, %v466
    %v469 = vor.u32 %v467, %v468
    %v470 = vsub.s32 4294967266, %v465
    %v471 = vadd.s32 %v470, 127
    %v472 = vshll.u32 %v471, 23
    %v473 = vor.u32 4788187, %v472
    %v474 = vand.u32 2147483647, %v473
    %v476 = vcvt.s32.f32 %v469
    %v477 = vmul.f32 %v476, %v474
    %v478 = vxor.u32 %v477, 2147483648
    %v479 = vsel %vm396, %v478, %v477
    %v480 = vsub.s32 4, %v456
    %v481 = vsel %vm396, %v480, %v456
    %v482 = vsel %vm395, %v169, %v479
    %v483 = vsel %vm395, 0, %v481
    %v484 = vcosq.f32.pop %v482
    %v485 = vsinq.f32.pop %v482
    %vm486 = vweird.f32 %v169
    %v487 = vadd.s32 %v483, 3
    %v488 = vand.u32 %v487, 3
    %vm489 = vcmp.lt.s32.totalorder %v488, 2
    %vm490 = vcmp.eq.s32.totalorder %v488, 0
    %v491 = vxor.u32 %v485, 2147483648
    %v492 = vsel %vm490, %v484, %v491
    %vm493 = vcmp.eq.s32.totalorder %v488, 2
    %v494 = vxor.u32 %v484, 2147483648
    %v495 = vsel %vm493, %v494, %v485
    %v496 = vsel %vm489, %v492, %v495
    %v497 = vsel %vm486, nan, %v496
    %v498 = vand.u32 2147483647, %v170
    %vm499 = vcmp.le.f32.partialorder %v498, 0.7853982
    %vm500 = vcmp.lt.s32.totalorder %v170, 0
    %v501 = vand.u32 %v170, 2139095040
    %v502 = vshrl.u32 %v501, 23
    %v503 = vsub.s32 %v502, 127
    %v504 = vand.u32 2147483647, %v170
    %v505 = vand.u32 %v504, 8388607
    %v506 = vor.u32 %v505, 8388608
    %v507 = vsub.s32 0, %v506
    %v508 = vadd.s32 %v503, 1
    %vm509 = vcmp.gt.s32.totalorder %v508, 0
    %v510 = vsel %vm509, %v508, 0
    %v511 = vshrl.u32 %v510, 5
    %v512 = vand.u32 %v510, 31
    %v513 = vsub.s32 32, %v512
    %v514 = vshrl.u32 683565275, %v513
    %v515 = vshll.u32 683565275, %v512
    %v516 = vshrl.u32 2475754826, %v513
    %v517 = vor.u32 %v515, %v516
    %v518 = vshll.u32 2475754826, %v512
    %v519 = vshrl.u32 2131351028, %v513
    %v520 = vor.u32 %v518, %v519
    %v521 = vshll.u32 2131351028, %v512
    %v522 = vshrl.u32 2102212464, %v513
    %v523 = vor.u32 %v521, %v522
    %v524 = vshll.u32 2102212464, %v512
    %v525 = vshrl.u32 920167782, %v513
    %v526 = vor.u32 %v524, %v525
    %v527 = vshll.u32 920167782, %v512
    %v528 = vshrl.u32 1326507024, %v513
    %v529 = vor.u32 %v527, %v528
    %vm530 = vcmp.lt.s32.totalorder %v511, 1
    %vm531 = vcmp.lt.s32.totalorder %v511, 2
    %vm532 = vcmp.lt.s32.totalorder %v511, 3
    %vm533 = vcmp.lt.s32.totalorder %v511, 4
    %v534 = vsel %vm530, %v514, %v517
    %v535 = vsel %vm533, %v523, 2102212464
    %v536 = vsel %vm532, %v520, %v535
    %v537 = vsel %vm531, %v534, %v536
    %v538 = vsel %vm530, %v517, %v520
    %v539 = vsel %vm533, %v526, 920167782
    %v540 = vsel %vm532, %v523, %v539
    %v541 = vsel %vm531, %v538, %v540
    %v542 = vsel %vm530, %v520, %v523
    %v543 = vsel %vm533, %v529, 1326507024
    %v544 = vsel %vm532, %v526, %v543
    %v545 = vsel %vm531, %v542, %v544
    %v546 = vshll.u32 %v506, 8
    %v547 = vmul.u32.u64.compose %v546, %v545
    %v548 = vextract.low.u32 %v547
    %v549 = vextract.high.u32 %v547
    %v550 = vmul.u32.u64.compose %v546, %v541
    %v551 = vextract.low.u32 %v550
    %v552 = vextract.high.u32 %v550
    %v553 = vmul.u32 %v546, %v537
    %v554 = vadd.s32 %v549, %v551
    %vm555 = vc.u32 %v549, %v551
    %v556 = vadd.s32 %v552, 1
    %v557 = vsel %vm555, %v556, %v552
    %v558 = vadd.s32 %v553, %v557
    %v559 = vadd.s32 %v558, 536870912
    %v560 = vshrl.u32 %v559, 30
    %v561 = vshll.u32 %v560, 30
    %v562 = vsub.s32 %v558, %v561
    %vm563 = vcmp.lt.s32.totalorder %v562, 0
    %v564 = vsub.s32 0, %v562
    %v565 = vsel %vm563, %v564, %v562
    %v566 = vclz %v565
    %v567 = vsub.s32 %v566, 2
    %vm568 = vcmp.gt.s32.totalorder 0, %v567
    %v569 = vsel %vm568, 0, %v567
    %v570 = vsub.s32 32, %v569
    %v571 = vshll.u32 %v562, %v569
    %v572 = vshrl.u32 %v554, %v570
    %v573 = vor.u32 %v571, %v572
    %v574 = vsub.s32 4294967266, %v569
    %v575 = vadd.s32 %v574, 127
    %v576 = vshll.u32 %v575, 23
    %v577 = vor.u32 4788187, %v576
    %v578 = vand.u32 2147483647, %v577
    %v580 = vcvt.s32.f32 %v573
    %v581 = vmul.f32 %v580, %v578
    %v582 = vxor.u32 %v581, 2147483648
    %v583 = vsel %vm500, %v582, %v581
    %v584 = vsub.s32 4, %v560
    %v585 = vsel %vm500, %v584, %v560
    %v586 = vsel %vm499, %v170, %v583
    %v587 = vsel %vm499, 0, %v585
    %v588 = vcosq.f32.pop %v586
    %v589 = vsinq.f32.pop %v586
    %vm590 = vweird.f32 %v170
    %v591 = vadd.s32 %v587, 3
    %v592 = vand.u32 %v591, 3
    %vm593 = vcmp.lt.s32.totalorder %v592, 2
    %vm594 = vcmp.eq.s32.totalorder %v592, 0
    %v595 = vxor.u32 %v589, 2147483648
    %v596 = vsel %vm594, %v588, %v595
    %vm597 = vcmp.eq.s32.totalorder %v592, 2
    %v598 = vxor.u32 %v588, 2147483648
    %v599 = vsel %vm597, %v598, %v589
    %v600 = vsel %vm593, %v596, %v599
    %v601 = vsel %vm590, nan, %v600
    %v602 = vpack.c.bf16 %v601, %v497
    %v603 = vld [vmem:[#allocation7] sm:$0xf]
    %v604 = vld [vmem:[#allocation7 + $0x4] sm:$0xf]
    %v605 = vld [vmem:[#allocation7 + $0x8] sm:$0xf]
    %v606 = vld [vmem:[#allocation7 + $0xc] sm:$0xf]
    %v607 = vld [vmem:[#allocation7 + $0x10] sm:$0xf]
    %v608 = vld [vmem:[#allocation7 + $0x14] sm:$0xf]
    %v609 = vld [vmem:[#allocation7 + $0x18] sm:$0xf]
    %v610 = vld [vmem:[#allocation7 + $0x1c] sm:$0xf]
    %v611 = vld [vmem:[#allocation7 + $0x20] sm:$0xf]
    %v612 = vld [vmem:[#allocation7 + $0x24] sm:$0xf]
    %v613 = vld [vmem:[#allocation7 + $0x28] sm:$0xf]
    %v614 = vld [vmem:[#allocation7 + $0x2c] sm:$0xf]
    %v615 = vld [vmem:[#allocation7 + $0x30] sm:$0xf]
    %v616 = vld [vmem:[#allocation7 + $0x34] sm:$0xf]
    %v617 = vld [vmem:[#allocation7 + $0x38] sm:$0xf]
    %v618 = vld [vmem:[#allocation7 + $0x3c] sm:$0xf]
    %v635 = vunpack.c.l.b16 %v603
    %v636 = vunpack.c.l.b16 %v604
    %v637 = vunpack.c.l.b16 %v605
    %v638 = vunpack.c.l.b16 %v606
    %v639 = vunpack.c.l.b16 %v607
    %v640 = vunpack.c.l.b16 %v608
    %v641 = vunpack.c.l.b16 %v609
    %v642 = vunpack.c.l.b16 %v610
    %v643 = vunpack.c.l.b16 %v611
    %v644 = vunpack.c.l.b16 %v612
    %v645 = vunpack.c.l.b16 %v613
    %v646 = vunpack.c.l.b16 %v614
    %v647 = vunpack.c.l.b16 %v615
    %v648 = vunpack.c.l.b16 %v616
    %v649 = vunpack.c.l.b16 %v617
    %v650 = vunpack.c.l.b16 %v618
    %v651 = vpack.c.b16 %v636, %v635
    %v652 = vpack.c.b16 %v638, %v637
    %v653 = vpack.c.b16 %v640, %v639
    %v654 = vpack.c.b16 %v642, %v641
    %v655 = vpack.c.b16 %v644, %v643
    %v656 = vpack.c.b16 %v646, %v645
    %v657 = vpack.c.b16 %v648, %v647
    %v658 = vpack.c.b16 %v650, %v649
    %667 = vmatprep.subr.bf16.mxu0 0
    %668 = vmatpush1.bf16.msra.mxu0 %v651
    %669 = vmatprep.subr.bf16.mxu0 0
    %670 = vmatpush1.bf16.msra.mxu0 %v652
    %671 = vmatprep.subr.bf16.mxu0 0
    %672 = vmatpush1.bf16.msra.mxu0 %v653
    %673 = vmatprep.subr.bf16.mxu0 0
    %674 = vmatpush1.bf16.msra.mxu0 %v654
    %675 = vmatprep.subr.bf16.mxu0 0
    %676 = vmatpush1.bf16.msra.mxu0 %v655
    %677 = vmatprep.subr.bf16.mxu0 0
    %678 = vmatpush1.bf16.msra.mxu0 %v656
    %679 = vmatprep.subr.bf16.mxu0 0
    %680 = vmatpush1.bf16.msra.mxu0 %v657
    %681 = vmatprep.subr.bf16.mxu0 0
    %682 = vmatpush1.bf16.msra.mxu0 %v658
    %683 = vmatprep.subr.bf16.mxu0 0
    %684 = vmatpush1.bf16.msra.mxu0 0
    %685 = vmatprep.subr.bf16.mxu0 0
    %686 = vmatpush1.bf16.msra.mxu0 0
    %687 = vmatprep.subr.bf16.mxu0 0
    %688 = vmatpush1.bf16.msra.mxu0 0
    %689 = vmatprep.subr.bf16.mxu0 0
    %690 = vmatpush1.bf16.msra.mxu0 0
    %691 = vmatprep.subr.bf16.mxu0 0
    %692 = vmatpush1.bf16.msra.mxu0 0
    %693 = vmatprep.subr.bf16.mxu0 0
    %694 = vmatpush1.bf16.msra.mxu0 0
    %695 = vmatprep.subr.bf16.mxu0 0
    %696 = vmatpush1.bf16.msra.mxu0 0
    %697 = vmatprep.subr.bf16.mxu0 0
    %698 = vmatpush1.bf16.msra.mxu0 0
    %699 = vmatprep.mubr.bf16.mxu0 0
    %700 = vmatmul.mubr.bf16.gmra.mrb[0].mxu0 %v602
    %v701 = vpop.f32.mrb[0].mxu0
    %v702 = vadd.f32 0.0, %v701
    %v703 = vpop.f32.mrb[0].mxu0
    %v704 = vpop.f32.mrb[0].mxu0
    %v705 = vadd.f32 0.0, %v704
    %v706 = vpop.f32.mrb[0].mxu0
    %707 = vdwg.mxu0
    %v724 = vunpack.c.l.b16 %v378
    %v725 = vunpack.c.l.b16 %v379
    %v726 = vunpack.c.l.b16 %v380
    %v727 = vunpack.c.l.b16 %v381
    %v728 = vunpack.c.l.b16 %v382
    %v729 = vunpack.c.l.b16 %v383
    %v730 = vunpack.c.l.b16 %v384
    %v731 = vunpack.c.l.b16 %v385
    %v732 = vunpack.c.l.b16 %v386
    %v733 = vunpack.c.l.b16 %v387
    %v734 = vunpack.c.l.b16 %v388
    %v735 = vunpack.c.l.b16 %v389
    %v736 = vunpack.c.l.b16 %v390
    %v737 = vunpack.c.l.b16 %v391
    %v738 = vunpack.c.l.b16 %v392
    %v739 = vunpack.c.l.b16 %v393
    %v740 = vpack.c.b16 %v725, %v724
    %v741 = vpack.c.b16 %v727, %v726
    %v742 = vpack.c.b16 %v729, %v728
    %v743 = vpack.c.b16 %v731, %v730
    %v744 = vpack.c.b16 %v733, %v732
    %v745 = vpack.c.b16 %v735, %v734
    %v746 = vpack.c.b16 %v737, %v736
    %v747 = vpack.c.b16 %v739, %v738
    %756 = vmatprep.subr.bf16.mxu0 0
    %757 = vmatpush1.bf16.msra.mxu0 %v740
    %758 = vmatprep.subr.bf16.mxu0 0
    %759 = vmatpush1.bf16.msra.mxu0 %v741
    %760 = vmatprep.subr.bf16.mxu0 0
    %761 = vmatpush1.bf16.msra.mxu0 %v742
    %762 = vmatprep.subr.bf16.mxu0 0
    %763 = vmatpush1.bf16.msra.mxu0 %v743
    %764 = vmatprep.subr.bf16.mxu0 0
    %765 = vmatpush1.bf16.msra.mxu0 %v744
    %766 = vmatprep.subr.bf16.mxu0 0
    %767 = vmatpush1.bf16.msra.mxu0 %v745
    %768 = vmatprep.subr.bf16.mxu0 0
    %769 = vmatpush1.bf16.msra.mxu0 %v746
    %770 = vmatprep.subr.bf16.mxu0 0
    %771 = vmatpush1.bf16.msra.mxu0 %v747
    %772 = vmatprep.subr.bf16.mxu0 0
    %773 = vmatpush1.bf16.msra.mxu0 0
    %774 = vmatprep.subr.bf16.mxu0 0
    %775 = vmatpush1.bf16.msra.mxu0 0
    %776 = vmatprep.subr.bf16.mxu0 0
    %777 = vmatpush1.bf16.msra.mxu0 0
    %778 = vmatprep.subr.bf16.mxu0 0
    %779 = vmatpush1.bf16.msra.mxu0 0
    %780 = vmatprep.subr.bf16.mxu0 0
    %781 = vmatpush1.bf16.msra.mxu0 0
    %782 = vmatprep.subr.bf16.mxu0 0
    %783 = vmatpush1.bf16.msra.mxu0 0
    %784 = vmatprep.subr.bf16.mxu0 0
    %785 = vmatpush1.bf16.msra.mxu0 0
    %786 = vmatprep.subr.bf16.mxu0 0
    %787 = vmatpush1.bf16.msra.mxu0 0
    %788 = vmatprep.mubr.bf16.mxu0 0
    %789 = vmatmul.mubr.bf16.gmra.mrb[0].mxu0 %v377
    %v790 = vpop.f32.mrb[0].mxu0
    %v791 = vadd.f32 %v702, %v790
    %v792 = vpop.f32.mrb[0].mxu0
    %v793 = vpop.f32.mrb[0].mxu0
    %v794 = vadd.f32 %v705, %v793
    %v795 = vpop.f32.mrb[0].mxu0
    %796 = vdwg.mxu0
    %v797 = vld [vmem:[%s5] sm:$0x1]
    %v799 = vlaneseq
    %v800 = vshrl.u32 %v799, 7
    %v801 = vsub.s32 0, %v800
    %v802 = vrot.slane %v797, %v801
    %v804 = vadd.f32 %v791, %v802
    %v805 = vadd.f32 %v794, %v802
    %v806 = vxor.u32 %v804, 2147483648
    %v807 = vxor.u32 %v805, 2147483648
    %v808 = vmul.f32 %v806, 1.442695
    %v809 = vpow.pop %v808
    %v810 = vmul.f32 %v807, 1.442695
    %v811 = vpow.pop %v810
    %v812 = vadd.f32 %v809, 1.0
    %v813 = vadd.f32 %v811, 1.0
    %v814 = vrcp.pop %v812
    %v815 = vmul.f32 1.0, %v814
    %v816 = vrcp.pop %v813
    %v817 = vmul.f32 1.0, %v816
    %v818 = vmul.f32 %v804, %v815
    %v819 = vmul.f32 %v805, %v817
    %v820 = vpack.c.bf16 %v819, %v818
    %v821 = vld [vmem:[#allocation8] sm:$0xf]
    %v822 = vld [vmem:[#allocation8 + $0x4] sm:$0xf]
    %v823 = vld [vmem:[#allocation8 + $0x8] sm:$0xf]
    %v824 = vld [vmem:[#allocation8 + $0xc] sm:$0xf]
    %v825 = vld [vmem:[#allocation8 + $0x10] sm:$0xf]
    %v826 = vld [vmem:[#allocation8 + $0x14] sm:$0xf]
    %v827 = vld [vmem:[#allocation8 + $0x18] sm:$0xf]
    %v828 = vld [vmem:[#allocation8 + $0x1c] sm:$0xf]
    %v829 = vld [vmem:[#allocation8 + $0x20] sm:$0xf]
    %v830 = vld [vmem:[#allocation8 + $0x24] sm:$0xf]
    %v831 = vld [vmem:[#allocation8 + $0x28] sm:$0xf]
    %v832 = vld [vmem:[#allocation8 + $0x2c] sm:$0xf]
    %v833 = vld [vmem:[#allocation8 + $0x30] sm:$0xf]
    %v834 = vld [vmem:[#allocation8 + $0x34] sm:$0xf]
    %v835 = vld [vmem:[#allocation8 + $0x38] sm:$0xf]
    %v836 = vld [vmem:[#allocation8 + $0x3c] sm:$0xf]
    %v837 = vld [vmem:[%s7] sm:$0x1]
    %v839 = vlaneseq
    %v840 = vshrl.u32 %v839, 7
    %v841 = vsub.s32 0, %v840
    %v842 = vrot.slane %v837, %v841
    %v860 = vunpack.c.l.b16 %v821
    %v861 = vunpack.c.l.b16 %v822
    %v862 = vunpack.c.l.b16 %v823
    %v863 = vunpack.c.l.b16 %v824
    %v864 = vunpack.c.l.b16 %v825
    %v865 = vunpack.c.l.b16 %v826
    %v866 = vunpack.c.l.b16 %v827
    %v867 = vunpack.c.l.b16 %v828
    %v868 = vunpack.c.l.b16 %v829
    %v869 = vunpack.c.l.b16 %v830
    %v870 = vunpack.c.l.b16 %v831
    %v871 = vunpack.c.l.b16 %v832
    %v872 = vunpack.c.l.b16 %v833
    %v873 = vunpack.c.l.b16 %v834
    %v874 = vunpack.c.l.b16 %v835
    %v875 = vunpack.c.l.b16 %v836
    %v876 = vpack.c.b16 %v861, %v860
    %v877 = vpack.c.b16 %v863, %v862
    %v878 = vpack.c.b16 %v865, %v864
    %v879 = vpack.c.b16 %v867, %v866
    %v880 = vpack.c.b16 %v869, %v868
    %v881 = vpack.c.b16 %v871, %v870
    %v882 = vpack.c.b16 %v873, %v872
    %v883 = vpack.c.b16 %v875, %v874
    %892 = vmatprep.subr.bf16.mxu0 0
    %893 = vmatpush1.bf16.msra.mxu0 %v876
    %894 = vmatprep.subr.bf16.mxu0 0
    %895 = vmatpush1.bf16.msra.mxu0 %v877
    %896 = vmatprep.subr.bf16.mxu0 0
    %897 = vmatpush1.bf16.msra.mxu0 %v878
    %898 = vmatprep.subr.bf16.mxu0 0
    %899 = vmatpush1.bf16.msra.mxu0 %v879
    %900 = vmatprep.subr.bf16.mxu0 0
    %901 = vmatpush1.bf16.msra.mxu0 %v880
    %902 = vmatprep.subr.bf16.mxu0 0
    %903 = vmatpush1.bf16.msra.mxu0 %v881
    %904 = vmatprep.subr.bf16.mxu0 0
    %905 = vmatpush1.bf16.msra.mxu0 %v882
    %906 = vmatprep.subr.bf16.mxu0 0
    %907 = vmatpush1.bf16.msra.mxu0 %v883
    %908 = vmatprep.subr.bf16.mxu0 0
    %909 = vmatpush1.bf16.msra.mxu0 0
    %910 = vmatprep.subr.bf16.mxu0 0
    %911 = vmatpush1.bf16.msra.mxu0 0
    %912 = vmatprep.subr.bf16.mxu0 0
    %913 = vmatpush1.bf16.msra.mxu0 0
    %914 = vmatprep.subr.bf16.mxu0 0
    %915 = vmatpush1.bf16.msra.mxu0 0
    %916 = vmatprep.subr.bf16.mxu0 0
    %917 = vmatpush1.bf16.msra.mxu0 0
    %918 = vmatprep.subr.bf16.mxu0 0
    %919 = vmatpush1.bf16.msra.mxu0 0
    %920 = vmatprep.subr.bf16.mxu0 0
    %921 = vmatpush1.bf16.msra.mxu0 0
    %922 = vmatprep.subr.bf16.mxu0 0
    %923 = vmatpush1.bf16.msra.mxu0 0
    %924 = vmatprep.mubr.bf16.mxu0 0
    %925 = vmatmul.mubr.bf16.gmra.mrb[0].mxu0 %v820
    %v926 = vpop.f32.mrb[0].mxu0
    %v927 = vadd.f32 %v842, %v926
    %v928 = vpop.f32.mrb[0].mxu0
    %v929 = vpop.f32.mrb[0].mxu0
    %v930 = vadd.f32 %v842, %v929
    %v931 = vpop.f32.mrb[0].mxu0
    %932 = vdwg.mxu0
    %v933 = vld [vmem:[#allocation2] sm:$0xf]
    %v934 = vld [vmem:[#allocation2 + $0x4] sm:$0xf]
    %v935 = vld [vmem:[#allocation10] sm:$0xf]
    %v936 = vld [vmem:[#allocation10 + $0x4] sm:$0xf]
    %v937 = vld [vmem:[#allocation10 + $0x8] sm:$0xf]
    %v938 = vld [vmem:[#allocation10 + $0xc] sm:$0xf]
    %v939 = vld [vmem:[#allocation10 + $0x10] sm:$0xf]
    %v940 = vld [vmem:[#allocation10 + $0x14] sm:$0xf]
    %v941 = vld [vmem:[#allocation10 + $0x18] sm:$0xf]
    %v942 = vld [vmem:[#allocation10 + $0x1c] sm:$0xf]
    %v943 = vld [vmem:[#allocation10 + $0x20] sm:$0xf]
    %v944 = vld [vmem:[#allocation10 + $0x24] sm:$0xf]
    %v945 = vld [vmem:[#allocation10 + $0x28] sm:$0xf]
    %v946 = vld [vmem:[#allocation10 + $0x2c] sm:$0xf]
    %v947 = vld [vmem:[#allocation10 + $0x30] sm:$0xf]
    %v948 = vld [vmem:[#allocation10 + $0x34] sm:$0xf]
    %v949 = vld [vmem:[#allocation10 + $0x38] sm:$0xf]
    %v950 = vld [vmem:[#allocation10 + $0x3c] sm:$0xf]
    %v951 = vld [vmem:[%s9] sm:$0x1]
    %v953 = vlaneseq
    %v954 = vshrl.u32 %v953, 7
    %v955 = vsub.s32 0, %v954
    %v956 = vrot.slane %v951, %v955
    %v960 = vunpack.c.l.b16 %v933
    %v961 = vunpack.c.l.b16 %v934
    %v962 = vpack.c.b16 %v961, %v960
    %v980 = vunpack.c.l.b16 %v935
    %v981 = vunpack.c.l.b16 %v936
    %v982 = vunpack.c.l.b16 %v937
    %v983 = vunpack.c.l.b16 %v938
    %v984 = vunpack.c.l.b16 %v939
    %v985 = vunpack.c.l.b16 %v940
    %v986 = vunpack.c.l.b16 %v941
    %v987 = vunpack.c.l.b16 %v942
    %v988 = vunpack.c.l.b16 %v943
    %v989 = vunpack.c.l.b16 %v944
    %v990 = vunpack.c.l.b16 %v945
    %v991 = vunpack.c.l.b16 %v946
    %v992 = vunpack.c.l.b16 %v947
    %v993 = vunpack.c.l.b16 %v948
    %v994 = vunpack.c.l.b16 %v949
    %v995 = vunpack.c.l.b16 %v950
    %v996 = vpack.c.b16 %v981, %v980
    %v997 = vpack.c.b16 %v983, %v982
    %v998 = vpack.c.b16 %v985, %v984
    %v999 = vpack.c.b16 %v987, %v986
    %v1000 = vpack.c.b16 %v989, %v988
    %v1001 = vpack.c.b16 %v991, %v990
    %v1002 = vpack.c.b16 %v993, %v992
    %v1003 = vpack.c.b16 %v995, %v994
    %1012 = vmatprep.subr.bf16.mxu0 0
    %1013 = vmatpush1.bf16.msra.mxu0 %v996
    %1014 = vmatprep.subr.bf16.mxu0 0
    %1015 = vmatpush1.bf16.msra.mxu0 %v997
    %1016 = vmatprep.subr.bf16.mxu0 0
    %1017 = vmatpush1.bf16.msra.mxu0 %v998
    %1018 = vmatprep.subr.bf16.mxu0 0
    %1019 = vmatpush1.bf16.msra.mxu0 %v999
    %1020 = vmatprep.subr.bf16.mxu0 0
    %1021 = vmatpush1.bf16.msra.mxu0 %v1000
    %1022 = vmatprep.subr.bf16.mxu0 0
    %1023 = vmatpush1.bf16.msra.mxu0 %v1001
    %1024 = vmatprep.subr.bf16.mxu0 0
    %1025 = vmatpush1.bf16.msra.mxu0 %v1002
    %1026 = vmatprep.subr.bf16.mxu0 0
    %1027 = vmatpush1.bf16.msra.mxu0 %v1003
    %1028 = vmatprep.subr.bf16.mxu0 0
    %1029 = vmatpush1.bf16.msra.mxu0 0
    %1030 = vmatprep.subr.bf16.mxu0 0
    %1031 = vmatpush1.bf16.msra.mxu0 0
    %1032 = vmatprep.subr.bf16.mxu0 0
    %1033 = vmatpush1.bf16.msra.mxu0 0
    %1034 = vmatprep.subr.bf16.mxu0 0
    %1035 = vmatpush1.bf16.msra.mxu0 0
    %1036 = vmatprep.subr.bf16.mxu0 0
    %1037 = vmatpush1.bf16.msra.mxu0 0
    %1038 = vmatprep.subr.bf16.mxu0 0
    %1039 = vmatpush1.bf16.msra.mxu0 0
    %1040 = vmatprep.subr.bf16.mxu0 0
    %1041 = vmatpush1.bf16.msra.mxu0 0
    %1042 = vmatprep.subr.bf16.mxu0 0
    %1043 = vmatpush1.bf16.msra.mxu0 0
    %1044 = vmatprep.mubr.bf16.mxu0 0
    %1045 = vmatmul.mubr.bf16.gmra.mrb[0].mxu0 %v962
    %v1046 = vpop.f32.mrb[0].mxu0
    %v1047 = vadd.f32 %v956, %v1046
    %v1048 = vpop.f32.mrb[0].mxu0
    %v1049 = vpop.f32.mrb[0].mxu0
    %v1050 = vadd.f32 %v956, %v1049
    %v1051 = vpop.f32.mrb[0].mxu0
    %1052 = vdwg.mxu0
    %v1053 = vadd.f32 %v1047, %v927
    %v1054 = vadd.f32 %v1050, %v930
    %v1055 = vpack.c.bf16 %v1054, %v1053
    %v1056 = vld [vmem:[#allocation11] sm:$0xf]
    %v1057 = vld [vmem:[#allocation11 + $0x4] sm:$0xf]
    %v1058 = vld [vmem:[#allocation11 + $0x8] sm:$0xf]
    %v1059 = vld [vmem:[#allocation11 + $0xc] sm:$0xf]
    %v1060 = vld [vmem:[#allocation11 + $0x10] sm:$0xf]
    %v1061 = vld [vmem:[#allocation11 + $0x14] sm:$0xf]
    %v1062 = vld [vmem:[#allocation11 + $0x18] sm:$0xf]
    %v1063 = vld [vmem:[#allocation11 + $0x1c] sm:$0xf]
    %v1064 = vld [vmem:[#allocation11 + $0x20] sm:$0xf]
    %v1065 = vld [vmem:[#allocation11 + $0x24] sm:$0xf]
    %v1066 = vld [vmem:[#allocation11 + $0x28] sm:$0xf]
    %v1067 = vld [vmem:[#allocation11 + $0x2c] sm:$0xf]
    %v1068 = vld [vmem:[#allocation11 + $0x30] sm:$0xf]
    %v1069 = vld [vmem:[#allocation11 + $0x34] sm:$0xf]
    %v1070 = vld [vmem:[#allocation11 + $0x38] sm:$0xf]
    %v1071 = vld [vmem:[#allocation11 + $0x3c] sm:$0xf]
    %v1072 = vld [vmem:[%s11] sm:$0x1]
    %v1074 = vlaneseq
    %v1075 = vshrl.u32 %v1074, 7
    %v1076 = vsub.s32 0, %v1075
    %v1077 = vrot.slane %v1072, %v1076
    %v1095 = vunpack.c.l.b16 %v1056
    %v1096 = vunpack.c.l.b16 %v1057
    %v1097 = vunpack.c.l.b16 %v1058
    %v1098 = vunpack.c.l.b16 %v1059
    %v1099 = vunpack.c.l.b16 %v1060
    %v1100 = vunpack.c.l.b16 %v1061
    %v1101 = vunpack.c.l.b16 %v1062
    %v1102 = vunpack.c.l.b16 %v1063
    %v1103 = vunpack.c.l.b16 %v1064
    %v1104 = vunpack.c.l.b16 %v1065
    %v1105 = vunpack.c.l.b16 %v1066
    %v1106 = vunpack.c.l.b16 %v1067
    %v1107 = vunpack.c.l.b16 %v1068
    %v1108 = vunpack.c.l.b16 %v1069
    %v1109 = vunpack.c.l.b16 %v1070
    %v1110 = vunpack.c.l.b16 %v1071
    %v1111 = vpack.c.b16 %v1096, %v1095
    %v1112 = vpack.c.b16 %v1098, %v1097
    %v1113 = vpack.c.b16 %v1100, %v1099
    %v1114 = vpack.c.b16 %v1102, %v1101
    %v1115 = vpack.c.b16 %v1104, %v1103
    %v1116 = vpack.c.b16 %v1106, %v1105
    %v1117 = vpack.c.b16 %v1108, %v1107
    %v1118 = vpack.c.b16 %v1110, %v1109
    %1127 = vmatprep.subr.bf16.mxu0 0
    %1128 = vmatpush1.bf16.msra.mxu0 %v1111
    %1129 = vmatprep.subr.bf16.mxu0 0
    %1130 = vmatpush1.bf16.msra.mxu0 %v1112
    %1131 = vmatprep.subr.bf16.mxu0 0
    %1132 = vmatpush1.bf16.msra.mxu0 %v1113
    %1133 = vmatprep.subr.bf16.mxu0 0
    %1134 = vmatpush1.bf16.msra.mxu0 %v1114
    %1135 = vmatprep.subr.bf16.mxu0 0
    %1136 = vmatpush1.bf16.msra.mxu0 %v1115
    %1137 = vmatprep.subr.bf16.mxu0 0
    %1138 = vmatpush1.bf16.msra.mxu0 %v1116
    %1139 = vmatprep.subr.bf16.mxu0 0
    %1140 = vmatpush1.bf16.msra.mxu0 %v1117
    %1141 = vmatprep.subr.bf16.mxu0 0
    %1142 = vmatpush1.bf16.msra.mxu0 %v1118
    %1143 = vmatprep.subr.bf16.mxu0 0
    %1144 = vmatpush1.bf16.msra.mxu0 0
    %1145 = vmatprep.subr.bf16.mxu0 0
    %1146 = vmatpush1.bf16.msra.mxu0 0
    %1147 = vmatprep.subr.bf16.mxu0 0
    %1148 = vmatpush1.bf16.msra.mxu0 0
    %1149 = vmatprep.subr.bf16.mxu0 0
    %1150 = vmatpush1.bf16.msra.mxu0 0
    %1151 = vmatprep.subr.bf16.mxu0 0
    %1152 = vmatpush1.bf16.msra.mxu0 0
    %1153 = vmatprep.subr.bf16.mxu0 0
    %1154 = vmatpush1.bf16.msra.mxu0 0
    %1155 = vmatprep.subr.bf16.mxu0 0
    %1156 = vmatpush1.bf16.msra.mxu0 0
    %1157 = vmatprep.subr.bf16.mxu0 0
    %1158 = vmatpush1.bf16.msra.mxu0 0
    %1159 = vmatprep.mubr.bf16.mxu0 0
    %1160 = vmatmul.mubr.bf16.gmra.mrb[0].mxu0 %v1055
    %v1161 = vpop.f32.mrb[0].mxu0
    %v1162 = vadd.f32 %v1077, %v1161
    %v1163 = vpop.f32.mrb[0].mxu0
    %v1164 = vpop.f32.mrb[0].mxu0
    %v1165 = vadd.f32 %v1077, %v1164
    %v1166 = vpop.f32.mrb[0].mxu0
    %1167 = vdwg.mxu0
    %v1168 = vmax.f32 %v1162, 0.0
    %v1169 = vmax.f32 %v1165, 0.0
    %v1170 = vpack.c.bf16 %v1169, %v1168
    %v1171 = vld [vmem:[#allocation13] sm:$0xf]
    %v1172 = vld [vmem:[#allocation13 + $0x4] sm:$0xf]
    %v1173 = vld [vmem:[#allocation13 + $0x8] sm:$0xf]
    %v1174 = vld [vmem:[#allocation13 + $0xc] sm:$0xf]
    %v1175 = vld [vmem:[#allocation13 + $0x10] sm:$0xf]
    %v1176 = vld [vmem:[#allocation13 + $0x14] sm:$0xf]
    %v1177 = vld [vmem:[#allocation13 + $0x18] sm:$0xf]
    %v1178 = vld [vmem:[#allocation13 + $0x1c] sm:$0xf]
    %v1179 = vld [vmem:[#allocation13 + $0x20] sm:$0xf]
    %v1180 = vld [vmem:[#allocation13 + $0x24] sm:$0xf]
    %v1181 = vld [vmem:[#allocation13 + $0x28] sm:$0xf]
    %v1182 = vld [vmem:[#allocation13 + $0x2c] sm:$0xf]
    %v1183 = vld [vmem:[#allocation13 + $0x30] sm:$0xf]
    %v1184 = vld [vmem:[#allocation13 + $0x34] sm:$0xf]
    %v1185 = vld [vmem:[#allocation13 + $0x38] sm:$0xf]
    %v1186 = vld [vmem:[#allocation13 + $0x3c] sm:$0xf]
    %v1187 = vld [vmem:[%s13] sm:$0x1]
    %v1189 = vlaneseq
    %v1190 = vshrl.u32 %v1189, 7
    %v1191 = vsub.s32 0, %v1190
    %v1192 = vrot.slane %v1187, %v1191
    %v1210 = vunpack.c.l.b16 %v1171
    %v1211 = vunpack.c.l.b16 %v1172
    %v1212 = vunpack.c.l.b16 %v1173
    %v1213 = vunpack.c.l.b16 %v1174
    %v1214 = vunpack.c.l.b16 %v1175
    %v1215 = vunpack.c.l.b16 %v1176
    %v1216 = vunpack.c.l.b16 %v1177
    %v1217 = vunpack.c.l.b16 %v1178
    %v1218 = vunpack.c.l.b16 %v1179
    %v1219 = vunpack.c.l.b16 %v1180
    %v1220 = vunpack.c.l.b16 %v1181
    %v1221 = vunpack.c.l.b16 %v1182
    %v1222 = vunpack.c.l.b16 %v1183
    %v1223 = vunpack.c.l.b16 %v1184
    %v1224 = vunpack.c.l.b16 %v1185
    %v1225 = vunpack.c.l.b16 %v1186
    %v1226 = vpack.c.b16 %v1211, %v1210
    %v1227 = vpack.c.b16 %v1213, %v1212
    %v1228 = vpack.c.b16 %v1215, %v1214
    %v1229 = vpack.c.b16 %v1217, %v1216
    %v1230 = vpack.c.b16 %v1219, %v1218
    %v1231 = vpack.c.b16 %v1221, %v1220
    %v1232 = vpack.c.b16 %v1223, %v1222
    %v1233 = vpack.c.b16 %v1225, %v1224
    %1242 = vmatprep.subr.bf16.mxu0 0
    %1243 = vmatpush1.bf16.msra.mxu0 %v1226
    %1244 = vmatprep.subr.bf16.mxu0 0
    %1245 = vmatpush1.bf16.msra.mxu0 %v1227
    %1246 = vmatprep.subr.bf16.mxu0 0
    %1247 = vmatpush1.bf16.msra.mxu0 %v1228
    %1248 = vmatprep.subr.bf16.mxu0 0
    %1249 = vmatpush1.bf16.msra.mxu0 %v1229
    %1250 = vmatprep.subr.bf16.mxu0 0
    %1251 = vmatpush1.bf16.msra.mxu0 %v1230
    %1252 = vmatprep.subr.bf16.mxu0 0
    %1253 = vmatpush1.bf16.msra.mxu0 %v1231
    %1254 = vmatprep.subr.bf16.mxu0 0
    %1255 = vmatpush1.bf16.msra.mxu0 %v1232
    %1256 = vmatprep.subr.bf16.mxu0 0
    %1257 = vmatpush1.bf16.msra.mxu0 %v1233
    %1258 = vmatprep.subr.bf16.mxu0 0
    %1259 = vmatpush1.bf16.msra.mxu0 0
    %1260 = vmatprep.subr.bf16.mxu0 0
    %1261 = vmatpush1.bf16.msra.mxu0 0
    %1262 = vmatprep.subr.bf16.mxu0 0
    %1263 = vmatpush1.bf16.msra.mxu0 0
    %1264 = vmatprep.subr.bf16.mxu0 0
    %1265 = vmatpush1.bf16.msra.mxu0 0
    %1266 = vmatprep.subr.bf16.mxu0 0
    %1267 = vmatpush1.bf16.msra.mxu0 0
    %1268 = vmatprep.subr.bf16.mxu0 0
    %1269 = vmatpush1.bf16.msra.mxu0 0
    %1270 = vmatprep.subr.bf16.mxu0 0
    %1271 = vmatpush1.bf16.msra.mxu0 0
    %1272 = vmatprep.subr.bf16.mxu0 0
    %1273 = vmatpush1.bf16.msra.mxu0 0
    %1274 = vmatprep.mubr.bf16.mxu0 0
    %1275 = vmatmul.mubr.bf16.gmra.mrb[0].mxu0 %v1170
    %v1276 = vpop.f32.mrb[0].mxu0
    %v1277 = vadd.f32 %v1192, %v1276
    %v1278 = vpop.f32.mrb[0].mxu0
    %v1279 = vpop.f32.mrb[0].mxu0
    %v1280 = vadd.f32 %v1192, %v1279
    %v1281 = vpop.f32.mrb[0].mxu0
    %1282 = vdwg.mxu0
    %v1283 = vmax.f32 %v1277, 0.0
    %v1284 = vmax.f32 %v1280, 0.0
    %v1285 = vpack.c.bf16 %v1284, %v1283
    %v1286 = vld [vmem:[%s14] sm:$0xf]
    %v1287 = vld [vmem:[%s14 + $0x4] sm:$0xf]
    %v1288 = vld [vmem:[%s14 + $0x8] sm:$0xf]
    %v1289 = vld [vmem:[%s14 + $0xc] sm:$0xf]
    %v1290 = vld [vmem:[%s14 + $0x10] sm:$0xf]
    %v1291 = vld [vmem:[%s14 + $0x14] sm:$0xf]
    %v1292 = vld [vmem:[%s14 + $0x18] sm:$0xf]
    %v1293 = vld [vmem:[%s14 + $0x1c] sm:$0xf]
    %v1294 = vld [vmem:[%s14 + $0x20] sm:$0xf]
    %v1295 = vld [vmem:[%s14 + $0x24] sm:$0xf]
    %v1296 = vld [vmem:[%s14 + $0x28] sm:$0xf]
    %v1297 = vld [vmem:[%s14 + $0x2c] sm:$0xf]
    %v1298 = vld [vmem:[%s14 + $0x30] sm:$0xf]
    %v1299 = vld [vmem:[%s14 + $0x34] sm:$0xf]
    %v1300 = vld [vmem:[%s14 + $0x38] sm:$0xf]
    %v1301 = vld [vmem:[%s14 + $0x3c] sm:$0xf]
    %v1302 = vld [vmem:[%s15] sm:$0x1]
    %v1304 = vlaneseq
    %v1305 = vshrl.u32 %v1304, 7
    %v1306 = vsub.s32 0, %v1305
    %v1307 = vrot.slane %v1302, %v1306
    %v1325 = vunpack.c.l.b16 %v1286
    %v1326 = vunpack.c.l.b16 %v1287
    %v1327 = vunpack.c.l.b16 %v1288
    %v1328 = vunpack.c.l.b16 %v1289
    %v1329 = vunpack.c.l.b16 %v1290
    %v1330 = vunpack.c.l.b16 %v1291
    %v1331 = vunpack.c.l.b16 %v1292
    %v1332 = vunpack.c.l.b16 %v1293
    %v1333 = vunpack.c.l.b16 %v1294
    %v1334 = vunpack.c.l.b16 %v1295
    %v1335 = vunpack.c.l.b16 %v1296
    %v1336 = vunpack.c.l.b16 %v1297
    %v1337 = vunpack.c.l.b16 %v1298
    %v1338 = vunpack.c.l.b16 %v1299
    %v1339 = vunpack.c.l.b16 %v1300
    %v1340 = vunpack.c.l.b16 %v1301
    %v1341 = vpack.c.b16 %v1326, %v1325
    %v1342 = vpack.c.b16 %v1328, %v1327
    %v1343 = vpack.c.b16 %v1330, %v1329
    %v1344 = vpack.c.b16 %v1332, %v1331
    %v1345 = vpack.c.b16 %v1334, %v1333
    %v1346 = vpack.c.b16 %v1336, %v1335
    %v1347 = vpack.c.b16 %v1338, %v1337
    %v1348 = vpack.c.b16 %v1340, %v1339
    %1357 = vmatprep.subr.bf16.mxu0 0
    %1358 = vmatpush1.bf16.msra.mxu0 %v1341
    %1359 = vmatprep.subr.bf16.mxu0 0
    %1360 = vmatpush1.bf16.msra.mxu0 %v1342
    %1361 = vmatprep.subr.bf16.mxu0 0
    %1362 = vmatpush1.bf16.msra.mxu0 %v1343
    %1363 = vmatprep.subr.bf16.mxu0 0
    %1364 = vmatpush1.bf16.msra.mxu0 %v1344
    %1365 = vmatprep.subr.bf16.mxu0 0
    %1366 = vmatpush1.bf16.msra.mxu0 %v1345
    %1367 = vmatprep.subr.bf16.mxu0 0
    %1368 = vmatpush1.bf16.msra.mxu0 %v1346
    %1369 = vmatprep.subr.bf16.mxu0 0
    %1370 = vmatpush1.bf16.msra.mxu0 %v1347
    %1371 = vmatprep.subr.bf16.mxu0 0
    %1372 = vmatpush1.bf16.msra.mxu0 %v1348
    %1373 = vmatprep.subr.bf16.mxu0 0
    %1374 = vmatpush1.bf16.msra.mxu0 0
    %1375 = vmatprep.subr.bf16.mxu0 0
    %1376 = vmatpush1.bf16.msra.mxu0 0
    %1377 = vmatprep.subr.bf16.mxu0 0
    %1378 = vmatpush1.bf16.msra.mxu0 0
    %1379 = vmatprep.subr.bf16.mxu0 0
    %1380 = vmatpush1.bf16.msra.mxu0 0
    %1381 = vmatprep.subr.bf16.mxu0 0
    %1382 = vmatpush1.bf16.msra.mxu0 0
    %1383 = vmatprep.subr.bf16.mxu0 0
    %1384 = vmatpush1.bf16.msra.mxu0 0
    %1385 = vmatprep.subr.bf16.mxu0 0
    %1386 = vmatpush1.bf16.msra.mxu0 0
    %1387 = vmatprep.subr.bf16.mxu0 0
    %1388 = vmatpush1.bf16.msra.mxu0 0
    %1389 = vmatprep.mubr.bf16.mxu0 0
    %1390 = vmatmul.mubr.bf16.gmra.mrb[0].mxu0 %v1285
    %v1391 = vpop.f32.mrb[0].mxu0
    %v1392 = vadd.f32 %v1307, %v1391
    %v1393 = vpop.f32.mrb[0].mxu0
    %v1394 = vpop.f32.mrb[0].mxu0
    %v1395 = vadd.f32 %v1307, %v1394
    %v1396 = vpop.f32.mrb[0].mxu0
    %1397 = vdwg.mxu0
    %1398 = vst [vmem:[#allocation14] sm:$0xff] %v1392
    %1399 = vst [vmem:[#allocation14 + $0x8] sm:$0xff] %v1395
    // Predicated region
    $region94: #{tpu_custom_call.1} parent=1 // pred_check
      _
    $region95: #{tpu_custom_call.1} parent=1 // pred_check_branch
      %1401 = sbr.rel (0) target = $region97
    $region96: #{tpu_custom_call.1} parent=1 // pred_region
      %s1403 = ssub.s32 256, 256
      %1404 = vsyncadd [#allocation4], %s1403
      %s1405 = sshll.u32 [#allocation14], 4
      %s1406 = int_to_ptr.vmem [resolvable:$true] %s1405
      %1411 = dma.vmem_to_hbm [thread:$0]  %s1406, 256, %s16, [#allocation4], 128, 128, 8
    $region97: #{tpu_custom_call.1} parent=1 // pred_fallthru
      _
    // Predicated region
    $region98: #{tpu_custom_call.1} parent=1 // pred_check
      _
    $region99: #{tpu_custom_call.1} parent=1 // pred_check_branch
      %1413 = sbr.rel (0) target = $region101
    $region100: #{tpu_custom_call.1} parent=1 // pred_region
      %1414 = dma.done [#allocation4], 256
    $region101: #{tpu_custom_call.1} parent=1 // pred_fallthru
      _
    %1415 = vsyncpa [#allocation3], 1
    %1416 = vsyncpa [#allocation6], 1
    %1417 = vsyncpa [#allocation9], 1
    %1418 = vsyncpa [#allocation12], 1
    %1419 = vsyncpa [#allocation4], 1

// kernel: tpu_custom_call.1
$region0: #{tpu_custom_call.1}
  #allocation0 [shape = 'u32[]', space=smem, size = 0x4, offset = 0x4, fixed_abs, tag = 'smem constant byte address 0x4 - core index']
  #allocation1 [shape = 'u32[144,128]{1,0:T(1,128)}', space=vmem, size = 0x12000, scoped, tag = 'internal scratch']
  %s0 = inlined_call_operand.vmem [shape: f32[16,1], index: 0, kind: input, shape index: {}]
  %s1 = inlined_call_operand.hbm [shape: bf16[16,128], index: 1, kind: input, shape index: {}]
  %s2 = inlined_call_operand.vmem [shape: f32[1,128], index: 2, kind: input, shape index: {}]
  %s3 = inlined_call_operand.hbm [shape: bf16[128,128], index: 3, kind: input, shape index: {}]
  %s4 = inlined_call_operand.hbm [shape: bf16[128,128], index: 4, kind: input, shape index: {}]
  %s5 = inlined_call_operand.vmem [shape: f32[1,128], index: 5, kind: input, shape index: {}]
  %s6 = inlined_call_operand.hbm [shape: bf16[128,128], index: 6, kind: input, shape index: {}]
  %s7 = inlined_call_operand.vmem [shape: f32[1,128], index: 7, kind: input, shape index: {}]
  %s8 = inlined_call_operand.hbm [shape: bf16[128,128], index: 8, kind: input, shape index: {}]
  %s9 = inlined_call_operand.vmem [shape: f32[1,128], index: 9, kind: input, shape index: {}]
  %s10 = inlined_call_operand.hbm [shape: bf16[128,128], index: 10, kind: input, shape index: {}]
  %s11 = inlined_call_operand.vmem [shape: f32[1,128], index: 11, kind: input, shape index: {}]
  %s12 = inlined_call_operand.hbm [shape: bf16[128,128], index: 12, kind: input, shape index: {}]
  %s13 = inlined_call_operand.vmem [shape: f32[1,128], index: 13, kind: input, shape index: {}]
  %s14 = inlined_call_operand.vmem [shape: bf16[128,128], index: 14, kind: input, shape index: {}]
  %s15 = inlined_call_operand.vmem [shape: f32[1,128], index: 15, kind: input, shape index: {}]
  %s16 = inlined_call_operand.hbm [shape: f32[16,128], index: 16, kind: output, shape index: {}]
  %s17 = sld [smem:[#allocation0]]
  $region102: #{tpu_custom_call.1} parent=0
    _
  %s19 = ssub.s32 1, %s17
  %s20 = scalar_select 0, %s19, %s17
  $region1: #{tpu_custom_call.1} parent=0
    #allocation2 [shape = 'u8[4096]{0}', space=vmem, size = 0x1000, scoped, tag = 'input window, operand 1, single buffered']
    #allocation3 [shape = 's32[1]{0}', space=sflag, size = 0x4, scoped, tag = 'scoped memory for tpu_custom_call.1']
    #allocation4 [shape = 's32[1]{0}', space=sflag, size = 0x4, scoped, tag = 'scoped memory for tpu_custom_call.1']
    #allocation5 [shape = 'u8[32768]{0}', space=vmem, size = 0x8000, scoped, tag = 'input window, operand 3, single buffered']
    #allocation6 [shape = 's32[1]{0}', space=sflag, size = 0x4, scoped, tag = 'scoped memory for tpu_custom_call.1']
    #allocation7 [shape = 'u8[32768]{0}', space=vmem, size = 0x8000, scoped, tag = 'input window, operand 4, single buffered']
    #allocation8 [shape = 'u8[32768]{0}', space=vmem, size = 0x8000, scoped, tag = 'input window, operand 6, single buffered']
    #allocation9 [shape = 's32[1]{0}', space=sflag, size = 0x4, scoped, tag = 'scoped memory for tpu_custom_call.1']
    #allocation10 [shape = 'u8[32768]{0}', space=vmem, size = 0x8000, scoped, tag = 'input window, operand 8, single buffered']
    #allocation11 [shape = 'u8[32768]{0}', space=vmem, size = 0x8000, scoped, tag = 'input window, operand 10, single buffered']
    #allocation12 [shape = 's32[1]{0}', space=sflag, size = 0x4, scoped, tag = 'scoped memory for tpu_custom_call.1']
    #allocation13 [shape = 'u8[32768]{0}', space=vmem, size = 0x8000, scoped, tag = 'input window, operand 12, single buffered']
    #allocation14 [shape = 'u8[8192]{0}', space=vmem, size = 0x2000, scoped, tag = 'output window, operand 0, single buffered']
    %21 = vsyncpa [#allocation3], 0
    %22 = vsyncpa [#allocation6], 0
    %23 = vsyncpa [#allocation9], 0
    %24 = vsyncpa [#allocation12], 0
    %25 = vsyncpa [#allocation4], 0
    // Predicated region
    $region2: #{tpu_custom_call.1} parent=1 // pred_check
      _
    $region3: #{tpu_custom_call.1} parent=1 // pred_check_branch
      %27 = sbr.rel (0) target = $region5
    $region4: #{tpu_custom_call.1} parent=1 // pred_region
      _
    $region5: #{tpu_custom_call.1} parent=1 // pred_fallthru
      _
    // Predicated region
    $region6: #{tpu_custom_call.1} parent=1 // pred_check
      _
    $region7: #{tpu_custom_call.1} parent=1 // pred_check_branch
      %29 = sbr.rel (0) target = $region9
    $region8: #{tpu_custom_call.1} parent=1 // pred_region
      %s31 = ssub.s32 128, 128
      %32 = vsyncadd [#allocation3], %s31
      %s33 = sshll.u32 [#allocation2], 4
      %s34 = int_to_ptr.vmem [resolvable:$true] %s33
      %39 = dma.hbm_to_vmem [thread:$0]  %s1, 128, %s34, [#allocation3], 64, 64, 4
    $region9: #{tpu_custom_call.1} parent=1 // pred_fallthru
      _
    // Predicated region
    $region10: #{tpu_custom_call.1} parent=1 // pred_check
      _
    $region11: #{tpu_custom_call.1} parent=1 // pred_check_branch
      %41 = sbr.rel (0) target = $region13
    $region12: #{tpu_custom_call.1} parent=1 // pred_region
      _
    $region13: #{tpu_custom_call.1} parent=1 // pred_fallthru
      _
    // Predicated region
    $region14: #{tpu_custom_call.1} parent=1 // pred_check
      _
    $region15: #{tpu_custom_call.1} parent=1 // pred_check_branch
      %43 = sbr.rel (0) target = $region17
    $region16: #{tpu_custom_call.1} parent=1 // pred_region
      %s45 = ssub.s32 1024, 1024
      %46 = vsyncadd [#allocation6], %s45
      %s47 = sshll.u32 [#allocation5], 4
      %s48 = int_to_ptr.vmem [resolvable:$true] %s47
      %53 = dma.hbm_to_vmem [thread:$0]  %s3, 1024, %s48, [#allocation6], 64, 64, 4
    $region17: #{tpu_custom_call.1} parent=1 // pred_fallthru
      _
    // Predicated region
    $region18: #{tpu_custom_call.1} parent=1 // pred_check
      _
    $region19: #{tpu_custom_call.1} parent=1 // pred_check_branch
      %55 = sbr.rel (0) target = $region21
    $region20: #{tpu_custom_call.1} parent=1 // pred_region
      %s57 = ssub.s32 1024, 1024
      %58 = vsyncadd [#allocation6], %s57
      %s59 = sshll.u32 [#allocation7], 4
      %s60 = int_to_ptr.vmem [resolvable:$true] %s59
      %65 = dma.hbm_to_vmem [thread:$0]  %s4, 1024, %s60, [#allocation6], 64, 64, 4
    $region21: #{tpu_custom_call.1} parent=1 // pred_fallthru
      _
    // Predicated region
    $region22: #{tpu_custom_call.1} parent=1 // pred_check
      _
    $region23: #{tpu_custom_call.1} parent=1 // pred_check_branch
      %67 = sbr.rel (0) target = $region25
    $region24: #{tpu_custom_call.1} parent=1 // pred_region
      _
    $region25: #{tpu_custom_call.1} parent=1 // pred_fallthru
      _
    // Predicated region
    $region26: #{tpu_custom_call.1} parent=1 // pred_check
      _
    $region27: #{tpu_custom_call.1} parent=1 // pred_check_branch
      %69 = sbr.rel (0) target = $region29
    $region28: #{tpu_custom_call.1} parent=1 // pred_region
      %s71 = ssub.s32 1024, 1024
      %72 = vsyncadd [#allocation9], %s71
      %s73 = sshll.u32 [#allocation8], 4
      %s74 = int_to_ptr.vmem [resolvable:$true] %s73
      %79 = dma.hbm_to_vmem [thread:$0]  %s6, 1024, %s74, [#allocation9], 64, 64, 4
    $region29: #{tpu_custom_call.1} parent=1 // pred_fallthru
      _
    // Predicated region
    $region30: #{tpu_custom_call.1} parent=1 // pred_check
      _
    $region31: #{tpu_custom_call.1} parent=1 // pred_check_branch
      %81 = sbr.rel (0) target = $region33
    $region32: #{tpu_custom_call.1} parent=1 // pred_region
      _
    $region33: #{tpu_custom_call.1} parent=1 // pred_fallthru
      _
    // Predicated region
    $region34: #{tpu_custom_call.1} parent=1 // pred_check
      _
    $region35: #{tpu_custom_call.1} parent=1 // pred_check_branch
      %83 = sbr.rel (0) target = $region37
    $region36: #{tpu_custom_call.1} parent=1 // pred_region
      %s85 = ssub.s32 1024, 1024
      %86 = vsyncadd [#allocation9], %s85
      %s87 = sshll.u32 [#allocation10], 4
      %s88 = int_to_ptr.vmem [resolvable:$true] %s87
      %93 = dma.hbm_to_vmem [thread:$0]  %s8, 1024, %s88, [#allocation9], 64, 64, 4
    $region37: #{tpu_custom_call.1} parent=1 // pred_fallthru
      _
    // Predicated region
    $region38: #{tpu_custom_call.1} parent=1 // pred_check
      _
    $region39: #{tpu_custom_call.1} parent=1 // pred_check_branch
      %95 = sbr.rel (0) target = $region41
    $region40: #{tpu_custom_call.1} parent=1 // pred_region
      _
    $region41: #{tpu_custom_call.1} parent=1 // pred_fallthru
      _
    // Predicated region
    $region42: #{tpu_custom_call.1} parent=1 // pred_check
      _
    $region43: #{tpu_custom_call.1} parent=1 // pred_check_branch
      %97 = sbr.rel (0) target = $region45
    $region44: #{tpu_custom_call.1} parent=1 // pred_region
      %s99 = ssub.s32 1024, 1024
      %100 = vsyncadd [#allocation12], %s99
      %s101 = sshll.u32 [#allocation11], 4
      %s102 = int_to_ptr.vmem [resolvable:$true] %s101
      %107 = dma.hbm_to_vmem [thread:$0]  %s10, 1024, %s102, [#allocation12], 64, 64, 4
    $region45: #{tpu_custom_call.1} parent=1 // pred_fallthru
      _
    // Predicated region
    $region46: #{tpu_custom_call.1} parent=1 // pred_check
      _
    $region47: #{tpu_custom_call.1} parent=1 // pred_check_branch
      %109 = sbr.rel (0) target = $region49
    $region48: #{tpu_custom_call.1} parent=1 // pred_region
      _
    $region49: #{tpu_custom_call.1} parent=1 // pred_fallthru
      _
    // Predicated region
    $region50: #{tpu_custom_call.1} parent=1 // pred_check
      _
    $region51: #{tpu_custom_call.1} parent=1 // pred_check_branch
      %111 = sbr.rel (0) target = $region53
    $region52: #{tpu_custom_call.1} parent=1 // pred_region
      %s113 = ssub.s32 1024, 1024
      %114 = vsyncadd [#allocation12], %s113
      %s115 = sshll.u32 [#allocation13], 4
      %s116 = int_to_ptr.vmem [resolvable:$true] %s115
      %121 = dma.hbm_to_vmem [thread:$0]  %s12, 1024, %s116, [#allocation12], 64, 64, 4
    $region53: #{tpu_custom_call.1} parent=1 // pred_fallthru
      _
    // Predicated region
    $region54: #{tpu_custom_call.1} parent=1 // pred_check
      _
    $region55: #{tpu_custom_call.1} parent=1 // pred_check_branch
      %123 = sbr.rel (0) target = $region57
    $region56: #{tpu_custom_call.1} parent=1 // pred_region
      _
    $region57: #{tpu_custom_call.1} parent=1 // pred_fallthru
      _
    // Predicated region
    $region58: #{tpu_custom_call.1} parent=1 // pred_check
      _
    $region59: #{tpu_custom_call.1} parent=1 // pred_check_branch
      %125 = sbr.rel (0) target = $region61
    $region60: #{tpu_custom_call.1} parent=1 // pred_region
      _
    $region61: #{tpu_custom_call.1} parent=1 // pred_fallthru
      _
    // Predicated region
    $region62: #{tpu_custom_call.1} parent=1 // pred_check
      _
    $region63: #{tpu_custom_call.1} parent=1 // pred_check_branch
      %127 = sbr.rel (0) target = $region65
    $region64: #{tpu_custom_call.1} parent=1 // pred_region
      _
    $region65: #{tpu_custom_call.1} parent=1 // pred_fallthru
      _
    // Predicated region
    $region66: #{tpu_custom_call.1} parent=1 // pred_check
      _
    $region67: #{tpu_custom_call.1} parent=1 // pred_check_branch
      %129 = sbr.rel (0) target = $region69
    $region68: #{tpu_custom_call.1} parent=1 // pred_region
      %130 = dma.done [#allocation3], 128
    $region69: #{tpu_custom_call.1} parent=1 // pred_fallthru
      _
    // Predicated region
    $region70: #{tpu_custom_call.1} parent=1 // pred_check
      _
    $region71: #{tpu_custom_call.1} parent=1 // pred_check_branch
      %132 = sbr.rel (0) target = $region73
    $region72: #{tpu_custom_call.1} parent=1 // pred_region
      %133 = dma.done [#allocation6], 1024
    $region73: #{tpu_custom_call.1} parent=1 // pred_fallthru
      _
    // Predicated region
    $region74: #{tpu_custom_call.1} parent=1 // pred_check
      _
    $region75: #{tpu_custom_call.1} parent=1 // pred_check_branch
      %135 = sbr.rel (0) target = $region77
    $region76: #{tpu_custom_call.1} parent=1 // pred_region
      %136 = dma.done [#allocation6], 1024
    $region77: #{tpu_custom_call.1} parent=1 // pred_fallthru
      _
    // Predicated region
    $region78: #{tpu_custom_call.1} parent=1 // pred_check
      _
    $region79: #{tpu_custom_call.1} parent=1 // pred_check_branch
      %138 = sbr.rel (0) target = $region81
    $region80: #{tpu_custom_call.1} parent=1 // pred_region
      %139 = dma.done [#allocation9], 1024
    $region81: #{tpu_custom_call.1} parent=1 // pred_fallthru
      _
    // Predicated region
    $region82: #{tpu_custom_call.1} parent=1 // pred_check
      _
    $region83: #{tpu_custom_call.1} parent=1 // pred_check_branch
      %141 = sbr.rel (0) target = $region85
    $region84: #{tpu_custom_call.1} parent=1 // pred_region
      %142 = dma.done [#allocation9], 1024
    $region85: #{tpu_custom_call.1} parent=1 // pred_fallthru
      _
    // Predicated region
    $region86: #{tpu_custom_call.1} parent=1 // pred_check
      _
    $region87: #{tpu_custom_call.1} parent=1 // pred_check_branch
      %144 = sbr.rel (0) target = $region89
    $region88: #{tpu_custom_call.1} parent=1 // pred_region
      %145 = dma.done [#allocation12], 1024
    $region89: #{tpu_custom_call.1} parent=1 // pred_fallthru
      _
    // Predicated region
    $region90: #{tpu_custom_call.1} parent=1 // pred_check
      _
    $region91: #{tpu_custom_call.1} parent=1 // pred_check_branch
      %147 = sbr.rel (0) target = $region93
    $region92: #{tpu_custom_call.1} parent=1 // pred_region
      %148 = dma.done [#allocation12], 1024
    $region93: #{tpu_custom_call.1} parent=1 // pred_fallthru
      _
    %v150 = vld [vmem:[%s0] sm:$0xff]
    %v151 = vld [vmem:[%s0 + $0x8] sm:$0xff]
    %v152 = vld [vmem:[%s2] sm:$0x1]
    %154 = vset.pattern.permute.xlu0 0
    %155 = vperm.xlu0 %154, %v150
    %v156 = vpop.permute.xlu0 %155
    %159 = vset.pattern.permute.xlu0 0
    %160 = vperm.xlu0 %159, %v151
    %v161 = vpop.permute.xlu0 %160
    %v164 = vlaneseq
    %v165 = vshrl.u32 %v164, 7
    %v166 = vsub.s32 0, %v165
    %v167 = vrot.slane %v152, %v166
    %v169 = vmul.f32 %v156, %v167
    %v170 = vmul.f32 %v161, %v167
    %v171 = vand.u32 2147483647, %v169
    %vm172 = vcmp.le.f32.partialorder %v171, 0.7853982
    %vm173 = vcmp.lt.s32.totalorder %v169, 0
    %v174 = vand.u32 %v169, 2139095040
    %v175 = vshrl.u32 %v174, 23
    %v176 = vsub.s32 %v175, 127
    %v177 = vand.u32 2147483647, %v169
    %v178 = vand.u32 %v177, 8388607
    %v179 = vor.u32 %v178, 8388608
    %v180 = vsub.s32 0, %v179
    %v181 = vadd.s32 %v176, 1
    %vm182 = vcmp.gt.s32.totalorder %v181, 0
    %v183 = vsel %vm182, %v181, 0
    %v184 = vshrl.u32 %v183, 5
    %v185 = vand.u32 %v183, 31
    %v186 = vsub.s32 32, %v185
    %v187 = vshrl.u32 683565275, %v186
    %v188 = vshll.u32 683565275, %v185
    %v189 = vshrl.u32 2475754826, %v186
    %v190 = vor.u32 %v188, %v189
    %v191 = vshll.u32 2475754826, %v185
    %v192 = vshrl.u32 2131351028, %v186
    %v193 = vor.u32 %v191, %v192
    %v194 = vshll.u32 2131351028, %v185
    %v195 = vshrl.u32 2102212464, %v186
    %v196 = vor.u32 %v194, %v195
    %v197 = vshll.u32 2102212464, %v185
    %v198 = vshrl.u32 920167782, %v186
    %v199 = vor.u32 %v197, %v198
    %v200 = vshll.u32 920167782, %v185
    %v201 = vshrl.u32 1326507024, %v186
    %v202 = vor.u32 %v200, %v201
    %vm203 = vcmp.lt.s32.totalorder %v184, 1
    %vm204 = vcmp.lt.s32.totalorder %v184, 2
    %vm205 = vcmp.lt.s32.totalorder %v184, 3
    %vm206 = vcmp.lt.s32.totalorder %v184, 4
    %v207 = vsel %vm203, %v187, %v190
    %v208 = vsel %vm206, %v196, 2102212464
    %v209 = vsel %vm205, %v193, %v208
    %v210 = vsel %vm204, %v207, %v209
    %v211 = vsel %vm203, %v190, %v193
    %v212 = vsel %vm206, %v199, 920167782
    %v213 = vsel %vm205, %v196, %v212
    %v214 = vsel %vm204, %v211, %v213
    %v215 = vsel %vm203, %v193, %v196
    %v216 = vsel %vm206, %v202, 1326507024
    %v217 = vsel %vm205, %v199, %v216
    %v218 = vsel %vm204, %v215, %v217
    %v219 = vshll.u32 %v179, 8
    %v220 = vmul.u32.u64.compose %v219, %v218
    %v221 = vextract.low.u32 %v220
    %v222 = vextract.high.u32 %v220
    %v223 = vmul.u32.u64.compose %v219, %v214
    %v224 = vextract.low.u32 %v223
    %v225 = vextract.high.u32 %v223
    %v226 = vmul.u32 %v219, %v210
    %v227 = vadd.s32 %v222, %v224
    %vm228 = vc.u32 %v222, %v224
    %v229 = vadd.s32 %v225, 1
    %v230 = vsel %vm228, %v229, %v225
    %v231 = vadd.s32 %v226, %v230
    %v232 = vadd.s32 %v231, 536870912
    %v233 = vshrl.u32 %v232, 30
    %v234 = vshll.u32 %v233, 30
    %v235 = vsub.s32 %v231, %v234
    %vm236 = vcmp.lt.s32.totalorder %v235, 0
    %v237 = vsub.s32 0, %v235
    %v238 = vsel %vm236, %v237, %v235
    %v239 = vclz %v238
    %v240 = vsub.s32 %v239, 2
    %vm241 = vcmp.gt.s32.totalorder 0, %v240
    %v242 = vsel %vm241, 0, %v240
    %v243 = vsub.s32 32, %v242
    %v244 = vshll.u32 %v235, %v242
    %v245 = vshrl.u32 %v227, %v243
    %v246 = vor.u32 %v244, %v245
    %v247 = vsub.s32 4294967266, %v242
    %v248 = vadd.s32 %v247, 127
    %v249 = vshll.u32 %v248, 23
    %v250 = vor.u32 4788187, %v249
    %v251 = vand.u32 2147483647, %v250
    %v253 = vcvt.s32.f32 %v246
    %v254 = vmul.f32 %v253, %v251
    %v255 = vxor.u32 %v254, 2147483648
    %v256 = vsel %vm173, %v255, %v254
    %v257 = vsub.s32 4, %v233
    %v258 = vsel %vm173, %v257, %v233
    %v259 = vsel %vm172, %v169, %v256
    %v260 = vsel %vm172, 0, %v258
    %v261 = vcosq.f32.pop %v259
    %v262 = vsinq.f32.pop %v259
    %vm263 = vweird.f32 %v169
    %v264 = vand.u32 %v260, 3
    %vm265 = vcmp.lt.s32.totalorder %v264, 2
    %vm266 = vcmp.eq.s32.totalorder %v264, 0
    %v267 = vxor.u32 %v262, 2147483648
    %v268 = vsel %vm266, %v261, %v267
    %vm269 = vcmp.eq.s32.totalorder %v264, 2
    %v270 = vxor.u32 %v261, 2147483648
    %v271 = vsel %vm269, %v270, %v262
    %v272 = vsel %vm265, %v268, %v271
    %v273 = vsel %vm263, nan, %v272
    %v274 = vand.u32 2147483647, %v170
    %vm275 = vcmp.le.f32.partialorder %v274, 0.7853982
    %vm276 = vcmp.lt.s32.totalorder %v170, 0
    %v277 = vand.u32 %v170, 2139095040
    %v278 = vshrl.u32 %v277, 23
    %v279 = vsub.s32 %v278, 127
    %v280 = vand.u32 2147483647, %v170
    %v281 = vand.u32 %v280, 8388607
    %v282 = vor.u32 %v281, 8388608
    %v283 = vsub.s32 0, %v282
    %v284 = vadd.s32 %v279, 1
    %vm285 = vcmp.gt.s32.totalorder %v284, 0
    %v286 = vsel %vm285, %v284, 0
    %v287 = vshrl.u32 %v286, 5
    %v288 = vand.u32 %v286, 31
    %v289 = vsub.s32 32, %v288
    %v290 = vshrl.u32 683565275, %v289
    %v291 = vshll.u32 683565275, %v288
    %v292 = vshrl.u32 2475754826, %v289
    %v293 = vor.u32 %v291, %v292
    %v294 = vshll.u32 2475754826, %v288
    %v295 = vshrl.u32 2131351028, %v289
    %v296 = vor.u32 %v294, %v295
    %v297 = vshll.u32 2131351028, %v288
    %v298 = vshrl.u32 2102212464, %v289
    %v299 = vor.u32 %v297, %v298
    %v300 = vshll.u32 2102212464, %v288
    %v301 = vshrl.u32 920167782, %v289
    %v302 = vor.u32 %v300, %v301
    %v303 = vshll.u32 920167782, %v288
    %v304 = vshrl.u32 1326507024, %v289
    %v305 = vor.u32 %v303, %v304
    %vm306 = vcmp.lt.s32.totalorder %v287, 1
    %vm307 = vcmp.lt.s32.totalorder %v287, 2
    %vm308 = vcmp.lt.s32.totalorder %v287, 3
    %vm309 = vcmp.lt.s32.totalorder %v287, 4
    %v310 = vsel %vm306, %v290, %v293
    %v311 = vsel %vm309, %v299, 2102212464
    %v312 = vsel %vm308, %v296, %v311
    %v313 = vsel %vm307, %v310, %v312
    %v314 = vsel %vm306, %v293, %v296
    %v315 = vsel %vm309, %v302, 920167782
    %v316 = vsel %vm308, %v299, %v315
    %v317 = vsel %vm307, %v314, %v316
    %v318 = vsel %vm306, %v296, %v299
    %v319 = vsel %vm309, %v305, 1326507024
    %v320 = vsel %vm308, %v302, %v319
    %v321 = vsel %vm307, %v318, %v320
    %v322 = vshll.u32 %v282, 8
    %v323 = vmul.u32.u64.compose %v322, %v321
    %v324 = vextract.low.u32 %v323
    %v325 = vextract.high.u32 %v323
    %v326 = vmul.u32.u64.compose %v322, %v317
    %v327 = vextract.low.u32 %v326
    %v328 = vextract.high.u32 %v326
    %v329 = vmul.u32 %v322, %v313
    %v330 = vadd.s32 %v325, %v327
    %vm331 = vc.u32 %v325, %v327
    %v332 = vadd.s32 %v328, 1
    %v333 = vsel %vm331, %v332, %v328
    %v334 = vadd.s32 %v329, %v333
    %v335 = vadd.s32 %v334, 536870912
    %v336 = vshrl.u32 %v335, 30
    %v337 = vshll.u32 %v336, 30
    %v338 = vsub.s32 %v334, %v337
    %vm339 = vcmp.lt.s32.totalorder %v338, 0
    %v340 = vsub.s32 0, %v338
    %v341 = vsel %vm339, %v340, %v338
    %v342 = vclz %v341
    %v343 = vsub.s32 %v342, 2
    %vm344 = vcmp.gt.s32.totalorder 0, %v343
    %v345 = vsel %vm344, 0, %v343
    %v346 = vsub.s32 32, %v345
    %v347 = vshll.u32 %v338, %v345
    %v348 = vshrl.u32 %v330, %v346
    %v349 = vor.u32 %v347, %v348
    %v350 = vsub.s32 4294967266, %v345
    %v351 = vadd.s32 %v350, 127
    %v352 = vshll.u32 %v351, 23
    %v353 = vor.u32 4788187, %v352
    %v354 = vand.u32 2147483647, %v353
    %v356 = vcvt.s32.f32 %v349
    %v357 = vmul.f32 %v356, %v354
    %v358 = vxor.u32 %v357, 2147483648
    %v359 = vsel %vm276, %v358, %v357
    %v360 = vsub.s32 4, %v336
    %v361 = vsel %vm276, %v360, %v336
    %v362 = vsel %vm275, %v170, %v359
    %v363 = vsel %vm275, 0, %v361
    %v364 = vcosq.f32.pop %v362
    %v365 = vsinq.f32.pop %v362
    %vm366 = vweird.f32 %v170
    %v367 = vand.u32 %v363, 3
    %vm368 = vcmp.lt.s32.totalorder %v367, 2
    %vm369 = vcmp.eq.s32.totalorder %v367, 0
    %v370 = vxor.u32 %v365, 2147483648
    %v371 = vsel %vm369, %v364, %v370
    %vm372 = vcmp.eq.s32.totalorder %v367, 2
    %v373 = vxor.u32 %v364, 2147483648
    %v374 = vsel %vm372, %v373, %v365
    %v375 = vsel %vm368, %v371, %v374
    %v376 = vsel %vm366, nan, %v375
    %v377 = vpack.c.bf16 %v376, %v273
    %v378 = vld [vmem:[#allocation5] sm:$0xf]
    %v379 = vld [vmem:[#allocation5 + $0x4] sm:$0xf]
    %v380 = vld [vmem:[#allocation5 + $0x8] sm:$0xf]
    %v381 = vld [vmem:[#allocation5 + $0xc] sm:$0xf]
    %v382 = vld [vmem:[#allocation5 + $0x10] sm:$0xf]
    %v383 = vld [vmem:[#allocation5 + $0x14] sm:$0xf]
    %v384 = vld [vmem:[#allocation5 + $0x18] sm:$0xf]
    %v385 = vld [vmem:[#allocation5 + $0x1c] sm:$0xf]
    %v386 = vld [vmem:[#allocation5 + $0x20] sm:$0xf]
    %v387 = vld [vmem:[#allocation5 + $0x24] sm:$0xf]
    %v388 = vld [vmem:[#allocation5 + $0x28] sm:$0xf]
    %v389 = vld [vmem:[#allocation5 + $0x2c] sm:$0xf]
    %v390 = vld [vmem:[#allocation5 + $0x30] sm:$0xf]
    %v391 = vld [vmem:[#allocation5 + $0x34] sm:$0xf]
    %v392 = vld [vmem:[#allocation5 + $0x38] sm:$0xf]
    %v393 = vld [vmem:[#allocation5 + $0x3c] sm:$0xf]
    %v394 = vand.u32 2147483647, %v169
    %vm395 = vcmp.le.f32.partialorder %v394, 0.7853982
    %vm396 = vcmp.lt.s32.totalorder %v169, 0
    %v397 = vand.u32 %v169, 2139095040
    %v398 = vshrl.u32 %v397, 23
    %v399 = vsub.s32 %v398, 127
    %v400 = vand.u32 2147483647, %v169
    %v401 = vand.u32 %v400, 8388607
    %v402 = vor.u32 %v401, 8388608
    %v403 = vsub.s32 0, %v402
    %v404 = vadd.s32 %v399, 1
    %vm405 = vcmp.gt.s32.totalorder %v404, 0
    %v406 = vsel %vm405, %v404, 0
    %v407 = vshrl.u32 %v406, 5
    %v408 = vand.u32 %v406, 31
    %v409 = vsub.s32 32, %v408
    %v410 = vshrl.u32 683565275, %v409
    %v411 = vshll.u32 683565275, %v408
    %v412 = vshrl.u32 2475754826, %v409
    %v413 = vor.u32 %v411, %v412
    %v414 = vshll.u32 2475754826, %v408
    %v415 = vshrl.u32 2131351028, %v409
    %v416 = vor.u32 %v414, %v415
    %v417 = vshll.u32 2131351028, %v408
    %v418 = vshrl.u32 2102212464, %v409
    %v419 = vor.u32 %v417, %v418
    %v420 = vshll.u32 2102212464, %v408
    %v421 = vshrl.u32 920167782, %v409
    %v422 = vor.u32 %v420, %v421
    %v423 = vshll.u32 920167782, %v408
    %v424 = vshrl.u32 1326507024, %v409
    %v425 = vor.u32 %v423, %v424
    %vm426 = vcmp.lt.s32.totalorder %v407, 1
    %vm427 = vcmp.lt.s32.totalorder %v407, 2
    %vm428 = vcmp.lt.s32.totalorder %v407, 3
    %vm429 = vcmp.lt.s32.totalorder %v407, 4
    %v430 = vsel %vm426, %v410, %v413
    %v431 = vsel %vm429, %v419, 2102212464
    %v432 = vsel %vm428, %v416, %v431
    %v433 = vsel %vm427, %v430, %v432
    %v434 = vsel %vm426, %v413, %v416
    %v435 = vsel %vm429, %v422, 920167782
    %v436 = vsel %vm428, %v419, %v435
    %v437 = vsel %vm427, %v434, %v436
    %v438 = vsel %vm426, %v416, %v419
    %v439 = vsel %vm429, %v425, 1326507024
    %v440 = vsel %vm428, %v422, %v439
    %v441 = vsel %vm427, %v438, %v440
    %v442 = vshll.u32 %v402, 8
    %v443 = vmul.u32.u64.compose %v442, %v441
    %v444 = vextract.low.u32 %v443
    %v445 = vextract.high.u32 %v443
    %v446 = vmul.u32.u64.compose %v442, %v437
    %v447 = vextract.low.u32 %v446
    %v448 = vextract.high.u32 %v446
    %v449 = vmul.u32 %v442, %v433
    %v450 = vadd.s32 %v445, %v447
    %vm451 = vc.u32 %v445, %v447
    %v452 = vadd.s32 %v448, 1
    %v453 = vsel %vm451, %v452, %v448
    %v454 = vadd.s32 %v449, %v453
    %v455 = vadd.s32 %v454, 536870912
    %v456 = vshrl.u32 %v455, 30
    %v457 = vshll.u32 %v456, 30
    %v458 = vsub.s32 %v454, %v457
    %vm459 = vcmp.lt.s32.totalorder %v458, 0
    %v460 = vsub.s32 0, %v458
    %v461 = vsel %vm459, %v460, %v458
    %v462 = vclz %v461
    %v463 = vsub.s32 %v462, 2
    %vm464 = vcmp.gt.s32.totalorder 0, %v463
    %v465 = vsel %vm464, 0, %v463
    %v466 = vsub.s32 32, %v465
    %v467 = vshll.u32 %v458, %v465
    %v468 = vshrl.u32 %v450, %v466
    %v469 = vor.u32 %v467, %v468
    %v470 = vsub.s32 4294967266, %v465
    %v471 = vadd.s32 %v470, 127
    %v472 = vshll.u32 %v471, 23
    %v473 = vor.u32 4788187, %v472
    %v474 = vand.u32 2147483647, %v473
    %v476 = vcvt.s32.f32 %v469
    %v477 = vmul.f32 %v476, %v474
    %v478 = vxor.u32 %v477, 2147483648
    %v479 = vsel %vm396, %v478, %v477
    %v480 = vsub.s32 4, %v456
    %v481 = vsel %vm396, %v480, %v456
    %v482 = vsel %vm395, %v169, %v479
    %v483 = vsel %vm395, 0, %v481
    %v484 = vcosq.f32.pop %v482
    %v485 = vsinq.f32.pop %v482
    %vm486 = vweird.f32 %v169
    %v487 = vadd.s32 %v483, 3
    %v488 = vand.u32 %v487, 3
    %vm489 = vcmp.lt.s32.totalorder %v488, 2
    %vm490 = vcmp.eq.s32.totalorder %v488, 0
    %v491 = vxor.u32 %v485, 2147483648
    %v492 = vsel %vm490, %v484, %v491
    %vm493 = vcmp.eq.s32.totalorder %v488, 2
    %v494 = vxor.u32 %v484, 2147483648
    %v495 = vsel %vm493, %v494, %v485
    %v496 = vsel %vm489, %v492, %v495
    %v497 = vsel %vm486, nan, %v496
    %v498 = vand.u32 2147483647, %v170
    %vm499 = vcmp.le.f32.partialorder %v498, 0.7853982
    %vm500 = vcmp.lt.s32.totalorder %v170, 0
    %v501 = vand.u32 %v170, 2139095040
    %v502 = vshrl.u32 %v501, 23
    %v503 = vsub.s32 %v502, 127
    %v504 = vand.u32 2147483647, %v170
    %v505 = vand.u32 %v504, 8388607
    %v506 = vor.u32 %v505, 8388608
    %v507 = vsub.s32 0, %v506
    %v508 = vadd.s32 %v503, 1
    %vm509 = vcmp.gt.s32.totalorder %v508, 0
    %v510 = vsel %vm509, %v508, 0
    %v511 = vshrl.u32 %v510, 5
    %v512 = vand.u32 %v510, 31
    %v513 = vsub.s32 32, %v512
    %v514 = vshrl.u32 683565275, %v513
    %v515 = vshll.u32 683565275, %v512
    %v516 = vshrl.u32 2475754826, %v513
    %v517 = vor.u32 %v515, %v516
    %v518 = vshll.u32 2475754826, %v512
    %v519 = vshrl.u32 2131351028, %v513
    %v520 = vor.u32 %v518, %v519
    %v521 = vshll.u32 2131351028, %v512
    %v522 = vshrl.u32 2102212464, %v513
    %v523 = vor.u32 %v521, %v522
    %v524 = vshll.u32 2102212464, %v512
    %v525 = vshrl.u32 920167782, %v513
    %v526 = vor.u32 %v524, %v525
    %v527 = vshll.u32 920167782, %v512
    %v528 = vshrl.u32 1326507024, %v513
    %v529 = vor.u32 %v527, %v528
    %vm530 = vcmp.lt.s32.totalorder %v511, 1
    %vm531 = vcmp.lt.s32.totalorder %v511, 2
    %vm532 = vcmp.lt.s32.totalorder %v511, 3
    %vm533 = vcmp.lt.s32.totalorder %v511, 4
    %v534 = vsel %vm530, %v514, %v517
    %v535 = vsel %vm533, %v523, 2102212464
    %v536 = vsel %vm532, %v520, %v535
    %v537 = vsel %vm531, %v534, %v536
    %v538 = vsel %vm530, %v517, %v520
    %v539 = vsel %vm533, %v526, 920167782
    %v540 = vsel %vm532, %v523, %v539
    %v541 = vsel %vm531, %v538, %v540
    %v542 = vsel %vm530, %v520, %v523
    %v543 = vsel %vm533, %v529, 1326507024
    %v544 = vsel %vm532, %v526, %v543
    %v545 = vsel %vm531, %v542, %v544
    %v546 = vshll.u32 %v506, 8
    %v547 = vmul.u32.u64.compose %v546, %v545
    %v548 = vextract.low.u32 %v547
    %v549 = vextract.high.u32 %v547
    %v550 = vmul.u32.u64.compose %v546, %v541
    %v551 = vextract.low.u32 %v550
    %v552 = vextract.high.u32 %v550
    %v553 = vmul.u32 %v546, %v537
    %v554 = vadd.s32 %v549, %v551
    %vm555 = vc.u32 %v549, %v551
    %v556 = vadd.s32 %v552, 1
    %v557 = vsel %vm555, %v556, %v552
    %v558 = vadd.s32 %v553, %v557
    %v559 = vadd.s32 %v558, 536870912
    %v560 = vshrl.u32 %v559, 30
    %v561 = vshll.u32 %v560, 30
    %v562 = vsub.s32 %v558, %v561
    %vm563 = vcmp.lt.s32.totalorder %v562, 0
    %v564 = vsub.s32 0, %v562
    %v565 = vsel %vm563, %v564, %v562
    %v566 = vclz %v565
    %v567 = vsub.s32 %v566, 2
    %vm568 = vcmp.gt.s32.totalorder 0, %v567
    %v569 = vsel %vm568, 0, %v567
    %v570 = vsub.s32 32, %v569
    %v571 = vshll.u32 %v562, %v569
    %v572 = vshrl.u32 %v554, %v570
    %v573 = vor.u32 %v571, %v572
    %v574 = vsub.s32 4294967266, %v569
    %v575 = vadd.s32 %v574, 127
    %v576 = vshll.u32 %v575, 23
    %v577 = vor.u32 4788187, %v576
    %v578 = vand.u32 2147483647, %v577
    %v580 = vcvt.s32.f32 %v573
    %v581 = vmul.f32 %v580, %v578
    %v582 = vxor.u32 %v581, 2147483648
    %v583 = vsel %vm500, %v582, %v581
    %v584 = vsub.s32 4, %v560
    %v585 = vsel %vm500, %v584, %v560
    %v586 = vsel %vm499, %v170, %v583
    %v587 = vsel %vm499, 0, %v585
    %v588 = vcosq.f32.pop %v586
    %v589 = vsinq.f32.pop %v586
    %vm590 = vweird.f32 %v170
    %v591 = vadd.s32 %v587, 3
    %v592 = vand.u32 %v591, 3
    %vm593 = vcmp.lt.s32.totalorder %v592, 2
    %vm594 = vcmp.eq.s32.totalorder %v592, 0
    %v595 = vxor.u32 %v589, 2147483648
    %v596 = vsel %vm594, %v588, %v595
    %vm597 = vcmp.eq.s32.totalorder %v592, 2
    %v598 = vxor.u32 %v588, 2147483648
    %v599 = vsel %vm597, %v598, %v589
    %v600 = vsel %vm593, %v596, %v599
    %v601 = vsel %vm590, nan, %v600
    %v602 = vpack.c.bf16 %v601, %v497
    %v603 = vld [vmem:[#allocation7] sm:$0xf]
    %v604 = vld [vmem:[#allocation7 + $0x4] sm:$0xf]
    %v605 = vld [vmem:[#allocation7 + $0x8] sm:$0xf]
    %v606 = vld [vmem:[#allocation7 + $0xc] sm:$0xf]
    %v607 = vld [vmem:[#allocation7 + $0x10] sm:$0xf]
    %v608 = vld [vmem:[#allocation7 + $0x14] sm:$0xf]
    %v609 = vld [vmem:[#allocation7 + $0x18] sm:$0xf]
    %v610 = vld [vmem:[#allocation7 + $0x1c] sm:$0xf]
    %v611 = vld [vmem:[#allocation7 + $0x20] sm:$0xf]
    %v612 = vld [vmem:[#allocation7 + $0x24] sm:$0xf]
    %v613 = vld [vmem:[#allocation7 + $0x28] sm:$0xf]
    %v614 = vld [vmem:[#allocation7 + $0x2c] sm:$0xf]
    %v615 = vld [vmem:[#allocation7 + $0x30] sm:$0xf]
    %v616 = vld [vmem:[#allocation7 + $0x34] sm:$0xf]
    %v617 = vld [vmem:[#allocation7 + $0x38] sm:$0xf]
    %v618 = vld [vmem:[#allocation7 + $0x3c] sm:$0xf]
    %v635 = vunpack.c.l.b16 %v603
    %v636 = vunpack.c.l.b16 %v604
    %v637 = vunpack.c.l.b16 %v605
    %v638 = vunpack.c.l.b16 %v606
    %v639 = vunpack.c.l.b16 %v607
    %v640 = vunpack.c.l.b16 %v608
    %v641 = vunpack.c.l.b16 %v609
    %v642 = vunpack.c.l.b16 %v610
    %v643 = vunpack.c.l.b16 %v611
    %v644 = vunpack.c.l.b16 %v612
    %v645 = vunpack.c.l.b16 %v613
    %v646 = vunpack.c.l.b16 %v614
    %v647 = vunpack.c.l.b16 %v615
    %v648 = vunpack.c.l.b16 %v616
    %v649 = vunpack.c.l.b16 %v617
    %v650 = vunpack.c.l.b16 %v618
    %v651 = vpack.c.b16 %v636, %v635
    %v652 = vpack.c.b16 %v638, %v637
    %v653 = vpack.c.b16 %v640, %v639
    %v654 = vpack.c.b16 %v642, %v641
    %v655 = vpack.c.b16 %v644, %v643
    %v656 = vpack.c.b16 %v646, %v645
    %v657 = vpack.c.b16 %v648, %v647
    %v658 = vpack.c.b16 %v650, %v649
    %667 = vmatprep.subr.bf16.mxu0 0
    %668 = vmatpush1.bf16.msra.mxu0 %v651
    %669 = vmatprep.subr.bf16.mxu0 0
    %670 = vmatpush1.bf16.msra.mxu0 %v652
    %671 = vmatprep.subr.bf16.mxu0 0
    %672 = vmatpush1.bf16.msra.mxu0 %v653
    %673 = vmatprep.subr.bf16.mxu0 0
    %674 = vmatpush1.bf16.msra.mxu0 %v654
    %675 = vmatprep.subr.bf16.mxu0 0
    %676 = vmatpush1.bf16.msra.mxu0 %v655
    %677 = vmatprep.subr.bf16.mxu0 0
    %678 = vmatpush1.bf16.msra.mxu0 %v656
    %679 = vmatprep.subr.bf16.mxu0 0
    %680 = vmatpush1.bf16.msra.mxu0 %v657
    %681 = vmatprep.subr.bf16.mxu0 0
    %682 = vmatpush1.bf16.msra.mxu0 %v658
    %683 = vmatprep.subr.bf16.mxu0 0
    %684 = vmatpush1.bf16.msra.mxu0 0
    %685 = vmatprep.subr.bf16.mxu0 0
    %686 = vmatpush1.bf16.msra.mxu0 0
    %687 = vmatprep.subr.bf16.mxu0 0
    %688 = vmatpush1.bf16.msra.mxu0 0
    %689 = vmatprep.subr.bf16.mxu0 0
    %690 = vmatpush1.bf16.msra.mxu0 0
    %691 = vmatprep.subr.bf16.mxu0 0
    %692 = vmatpush1.bf16.msra.mxu0 0
    %693 = vmatprep.subr.bf16.mxu0 0
    %694 = vmatpush1.bf16.msra.mxu0 0
    %695 = vmatprep.subr.bf16.mxu0 0
    %696 = vmatpush1.bf16.msra.mxu0 0
    %697 = vmatprep.subr.bf16.mxu0 0
    %698 = vmatpush1.bf16.msra.mxu0 0
    %699 = vmatprep.mubr.bf16.mxu0 0
    %700 = vmatmul.mubr.bf16.gmra.mrb[0].mxu0 %v602
    %v701 = vpop.f32.mrb[0].mxu0
    %v702 = vadd.f32 0.0, %v701
    %v703 = vpop.f32.mrb[0].mxu0
    %v704 = vpop.f32.mrb[0].mxu0
    %v705 = vadd.f32 0.0, %v704
    %v706 = vpop.f32.mrb[0].mxu0
    %707 = vdwg.mxu0
    %v724 = vunpack.c.l.b16 %v378
    %v725 = vunpack.c.l.b16 %v379
    %v726 = vunpack.c.l.b16 %v380
    %v727 = vunpack.c.l.b16 %v381
    %v728 = vunpack.c.l.b16 %v382
    %v729 = vunpack.c.l.b16 %v383
    %v730 = vunpack.c.l.b16 %v384
    %v731 = vunpack.c.l.b16 %v385
    %v732 = vunpack.c.l.b16 %v386
    %v733 = vunpack.c.l.b16 %v387
    %v734 = vunpack.c.l.b16 %v388
    %v735 = vunpack.c.l.b16 %v389
    %v736 = vunpack.c.l.b16 %v390
    %v737 = vunpack.c.l.b16 %v391
    %v738 = vunpack.c.l.b16 %v392
    %v739 = vunpack.c.l.b16 %v393
    %v740 = vpack.c.b16 %v725, %v724
    %v741 = vpack.c.b16 %v727, %v726
    %v742 = vpack.c.b16 %v729, %v728
    %v743 = vpack.c.b16 %v731, %v730
    %v744 = vpack.c.b16 %v733, %v732
    %v745 = vpack.c.b16 %v735, %v734
    %v746 = vpack.c.b16 %v737, %v736
    %v747 = vpack.c.b16 %v739, %v738
    %756 = vmatprep.subr.bf16.mxu0 0
    %757 = vmatpush1.bf16.msra.mxu0 %v740
    %758 = vmatprep.subr.bf16.mxu0 0
    %759 = vmatpush1.bf16.msra.mxu0 %v741
    %760 = vmatprep.subr.bf16.mxu0 0
    %761 = vmatpush1.bf16.msra.mxu0 %v742
    %762 = vmatprep.subr.bf16.mxu0 0
    %763 = vmatpush1.bf16.msra.mxu0 %v743
    %764 = vmatprep.subr.bf16.mxu0 0
    %765 = vmatpush1.bf16.msra.mxu0 %v744
    %766 = vmatprep.subr.bf16.mxu0 0
    %767 = vmatpush1.bf16.msra.mxu0 %v745
    %768 = vmatprep.subr.bf16.mxu0 0
    %769 = vmatpush1.bf16.msra.mxu0 %v746
    %770 = vmatprep.subr.bf16.mxu0 0
    %771 = vmatpush1.bf16.msra.mxu0 %v747
    %772 = vmatprep.subr.bf16.mxu0 0
    %773 = vmatpush1.bf16.msra.mxu0 0
    %774 = vmatprep.subr.bf16.mxu0 0
    %775 = vmatpush1.bf16.msra.mxu0 0
    %776 = vmatprep.subr.bf16.mxu0 0
    %777 = vmatpush1.bf16.msra.mxu0 0
    %778 = vmatprep.subr.bf16.mxu0 0
    %779 = vmatpush1.bf16.msra.mxu0 0
    %780 = vmatprep.subr.bf16.mxu0 0
    %781 = vmatpush1.bf16.msra.mxu0 0
    %782 = vmatprep.subr.bf16.mxu0 0
    %783 = vmatpush1.bf16.msra.mxu0 0
    %784 = vmatprep.subr.bf16.mxu0 0
    %785 = vmatpush1.bf16.msra.mxu0 0
    %786 = vmatprep.subr.bf16.mxu0 0
    %787 = vmatpush1.bf16.msra.mxu0 0
    %788 = vmatprep.mubr.bf16.mxu0 0
    %789 = vmatmul.mubr.bf16.gmra.mrb[0].mxu0 %v377
    %v790 = vpop.f32.mrb[0].mxu0
    %v791 = vadd.f32 %v702, %v790
    %v792 = vpop.f32.mrb[0].mxu0
    %v793 = vpop.f32.mrb[0].mxu0
    %v794 = vadd.f32 %v705, %v793
    %v795 = vpop.f32.mrb[0].mxu0
    %796 = vdwg.mxu0
    %v797 = vld [vmem:[%s5] sm:$0x1]
    %v799 = vlaneseq
    %v800 = vshrl.u32 %v799, 7
    %v801 = vsub.s32 0, %v800
    %v802 = vrot.slane %v797, %v801
    %v804 = vadd.f32 %v791, %v802
    %v805 = vadd.f32 %v794, %v802
    %v806 = vxor.u32 %v804, 2147483648
    %v807 = vxor.u32 %v805, 2147483648
    %v808 = vmul.f32 %v806, 1.442695
    %v809 = vpow.pop %v808
    %v810 = vmul.f32 %v807, 1.442695
    %v811 = vpow.pop %v810
    %v812 = vadd.f32 %v809, 1.0
    %v813 = vadd.f32 %v811, 1.0
    %v814 = vrcp.pop %v812
    %v815 = vmul.f32 1.0, %v814
    %v816 = vrcp.pop %v813
    %v817 = vmul.f32 1.0, %v816
    %v818 = vmul.f32 %v804, %v815
    %v819 = vmul.f32 %v805, %v817
    %v820 = vpack.c.bf16 %v819, %v818
    %v821 = vld [vmem:[#allocation8] sm:$0xf]
    %v822 = vld [vmem:[#allocation8 + $0x4] sm:$0xf]
    %v823 = vld [vmem:[#allocation8 + $0x8] sm:$0xf]
    %v824 = vld [vmem:[#allocation8 + $0xc] sm:$0xf]
    %v825 = vld [vmem:[#allocation8 + $0x10] sm:$0xf]
    %v826 = vld [vmem:[#allocation8 + $0x14] sm:$0xf]
    %v827 = vld [vmem:[#allocation8 + $0x18] sm:$0xf]
    %v828 = vld [vmem:[#allocation8 + $0x1c] sm:$0xf]
    %v829 = vld [vmem:[#allocation8 + $0x20] sm:$0xf]
    %v830 = vld [vmem:[#allocation8 + $0x24] sm:$0xf]
    %v831 = vld [vmem:[#allocation8 + $0x28] sm:$0xf]
    %v832 = vld [vmem:[#allocation8 + $0x2c] sm:$0xf]
    %v833 = vld [vmem:[#allocation8 + $0x30] sm:$0xf]
    %v834 = vld [vmem:[#allocation8 + $0x34] sm:$0xf]
    %v835 = vld [vmem:[#allocation8 + $0x38] sm:$0xf]
    %v836 = vld [vmem:[#allocation8 + $0x3c] sm:$0xf]
    %v837 = vld [vmem:[%s7] sm:$0x1]
    %v839 = vlaneseq
    %v840 = vshrl.u32 %v839, 7
    %v841 = vsub.s32 0, %v840
    %v842 = vrot.slane %v837, %v841
    %v860 = vunpack.c.l.b16 %v821
    %v861 = vunpack.c.l.b16 %v822
    %v862 = vunpack.c.l.b16 %v823
    %v863 = vunpack.c.l.b16 %v824
    %v864 = vunpack.c.l.b16 %v825
    %v865 = vunpack.c.l.b16 %v826
    %v866 = vunpack.c.l.b16 %v827
    %v867 = vunpack.c.l.b16 %v828
    %v868 = vunpack.c.l.b16 %v829
    %v869 = vunpack.c.l.b16 %v830
    %v870 = vunpack.c.l.b16 %v831
    %v871 = vunpack.c.l.b16 %v832
    %v872 = vunpack.c.l.b16 %v833
    %v873 = vunpack.c.l.b16 %v834
    %v874 = vunpack.c.l.b16 %v835
    %v875 = vunpack.c.l.b16 %v836
    %v876 = vpack.c.b16 %v861, %v860
    %v877 = vpack.c.b16 %v863, %v862
    %v878 = vpack.c.b16 %v865, %v864
    %v879 = vpack.c.b16 %v867, %v866
    %v880 = vpack.c.b16 %v869, %v868
    %v881 = vpack.c.b16 %v871, %v870
    %v882 = vpack.c.b16 %v873, %v872
    %v883 = vpack.c.b16 %v875, %v874
    %892 = vmatprep.subr.bf16.mxu0 0
    %893 = vmatpush1.bf16.msra.mxu0 %v876
    %894 = vmatprep.subr.bf16.mxu0 0
    %895 = vmatpush1.bf16.msra.mxu0 %v877
    %896 = vmatprep.subr.bf16.mxu0 0
    %897 = vmatpush1.bf16.msra.mxu0 %v878
    %898 = vmatprep.subr.bf16.mxu0 0
    %899 = vmatpush1.bf16.msra.mxu0 %v879
    %900 = vmatprep.subr.bf16.mxu0 0
    %901 = vmatpush1.bf16.msra.mxu0 %v880
    %902 = vmatprep.subr.bf16.mxu0 0
    %903 = vmatpush1.bf16.msra.mxu0 %v881
    %904 = vmatprep.subr.bf16.mxu0 0
    %905 = vmatpush1.bf16.msra.mxu0 %v882
    %906 = vmatprep.subr.bf16.mxu0 0
    %907 = vmatpush1.bf16.msra.mxu0 %v883
    %908 = vmatprep.subr.bf16.mxu0 0
    %909 = vmatpush1.bf16.msra.mxu0 0
    %910 = vmatprep.subr.bf16.mxu0 0
    %911 = vmatpush1.bf16.msra.mxu0 0
    %912 = vmatprep.subr.bf16.mxu0 0
    %913 = vmatpush1.bf16.msra.mxu0 0
    %914 = vmatprep.subr.bf16.mxu0 0
    %915 = vmatpush1.bf16.msra.mxu0 0
    %916 = vmatprep.subr.bf16.mxu0 0
    %917 = vmatpush1.bf16.msra.mxu0 0
    %918 = vmatprep.subr.bf16.mxu0 0
    %919 = vmatpush1.bf16.msra.mxu0 0
    %920 = vmatprep.subr.bf16.mxu0 0
    %921 = vmatpush1.bf16.msra.mxu0 0
    %922 = vmatprep.subr.bf16.mxu0 0
    %923 = vmatpush1.bf16.msra.mxu0 0
    %924 = vmatprep.mubr.bf16.mxu0 0
    %925 = vmatmul.mubr.bf16.gmra.mrb[0].mxu0 %v820
    %v926 = vpop.f32.mrb[0].mxu0
    %v927 = vadd.f32 %v842, %v926
    %v928 = vpop.f32.mrb[0].mxu0
    %v929 = vpop.f32.mrb[0].mxu0
    %v930 = vadd.f32 %v842, %v929
    %v931 = vpop.f32.mrb[0].mxu0
    %932 = vdwg.mxu0
    %v933 = vld [vmem:[#allocation2] sm:$0xf]
    %v934 = vld [vmem:[#allocation2 + $0x4] sm:$0xf]
    %v935 = vld [vmem:[#allocation10] sm:$0xf]
    %v936 = vld [vmem:[#allocation10 + $0x4] sm:$0xf]
    %v937 = vld [vmem:[#allocation10 + $0x8] sm:$0xf]
    %v938 = vld [vmem:[#allocation10 + $0xc] sm:$0xf]
    %v939 = vld [vmem:[#allocation10 + $0x10] sm:$0xf]
    %v940 = vld [vmem:[#allocation10 + $0x14] sm:$0xf]
    %v941 = vld [vmem:[#allocation10 + $0x18] sm:$0xf]
    %v942 = vld [vmem:[#allocation10 + $0x1c] sm:$0xf]
    %v943 = vld [vmem:[#allocation10 + $0x20] sm:$0xf]
    %v944 = vld [vmem:[#allocation10 + $0x24] sm:$0xf]
    %v945 = vld [vmem:[#allocation10 + $0x28] sm:$0xf]
    %v946 = vld [vmem:[#allocation10 + $0x2c] sm:$0xf]
    %v947 = vld [vmem:[#allocation10 + $0x30] sm:$0xf]
    %v948 = vld [vmem:[#allocation10 + $0x34] sm:$0xf]
    %v949 = vld [vmem:[#allocation10 + $0x38] sm:$0xf]
    %v950 = vld [vmem:[#allocation10 + $0x3c] sm:$0xf]
    %v951 = vld [vmem:[%s9] sm:$0x1]
    %v953 = vlaneseq
    %v954 = vshrl.u32 %v953, 7
    %v955 = vsub.s32 0, %v954
    %v956 = vrot.slane %v951, %v955
    %v960 = vunpack.c.l.b16 %v933
    %v961 = vunpack.c.l.b16 %v934
    %v962 = vpack.c.b16 %v961, %v960
    %v980 = vunpack.c.l.b16 %v935
    %v981 = vunpack.c.l.b16 %v936
    %v982 = vunpack.c.l.b16 %v937
    %v983 = vunpack.c.l.b16 %v938
    %v984 = vunpack.c.l.b16 %v939
    %v985 = vunpack.c.l.b16 %v940
    %v986 = vunpack.c.l.b16 %v941
    %v987 = vunpack.c.l.b16 %v942
    %v988 = vunpack.c.l.b16 %v943
    %v989 = vunpack.c.l.b16 %v944
    %v990 = vunpack.c.l.b16 %v945
    %v991 = vunpack.c.l.b16 %v946
    %v992 = vunpack.c.l.b16 %v947
    %v993 = vunpack.c.l.b16 %v948
    %v994 = vunpack.c.l.b16 %v949
    %v995 = vunpack.c.l.b16 %v950
    %v996 = vpack.c.b16 %v981, %v980
    %v997 = vpack.c.b16 %v983, %v982
    %v998 = vpack.c.b16 %v985, %v984
    %v999 = vpack.c.b16 %v987, %v986
    %v1000 = vpack.c.b16 %v989, %v988
    %v1001 = vpack.c.b16 %v991, %v990
    %v1002 = vpack.c.b16 %v993, %v992
    %v1003 = vpack.c.b16 %v995, %v994
    %1012 = vmatprep.subr.bf16.mxu0 0
    %1013 = vmatpush1.bf16.msra.mxu0 %v996
    %1014 = vmatprep.subr.bf16.mxu0 0
    %1015 = vmatpush1.bf16.msra.mxu0 %v997
    %1016 = vmatprep.subr.bf16.mxu0 0
    %1017 = vmatpush1.bf16.msra.mxu0 %v998
    %1018 = vmatprep.subr.bf16.mxu0 0
    %1019 = vmatpush1.bf16.msra.mxu0 %v999
    %1020 = vmatprep.subr.bf16.mxu0 0
    %1021 = vmatpush1.bf16.msra.mxu0 %v1000
    %1022 = vmatprep.subr.bf16.mxu0 0
    %1023 = vmatpush1.bf16.msra.mxu0 %v1001
    %1024 = vmatprep.subr.bf16.mxu0 0
    %1025 = vmatpush1.bf16.msra.mxu0 %v1002
    %1026 = vmatprep.subr.bf16.mxu0 0
    %1027 = vmatpush1.bf16.msra.mxu0 %v1003
    %1028 = vmatprep.subr.bf16.mxu0 0
    %1029 = vmatpush1.bf16.msra.mxu0 0
    %1030 = vmatprep.subr.bf16.mxu0 0
    %1031 = vmatpush1.bf16.msra.mxu0 0
    %1032 = vmatprep.subr.bf16.mxu0 0
    %1033 = vmatpush1.bf16.msra.mxu0 0
    %1034 = vmatprep.subr.bf16.mxu0 0
    %1035 = vmatpush1.bf16.msra.mxu0 0
    %1036 = vmatprep.subr.bf16.mxu0 0
    %1037 = vmatpush1.bf16.msra.mxu0 0
    %1038 = vmatprep.subr.bf16.mxu0 0
    %1039 = vmatpush1.bf16.msra.mxu0 0
    %1040 = vmatprep.subr.bf16.mxu0 0
    %1041 = vmatpush1.bf16.msra.mxu0 0
    %1042 = vmatprep.subr.bf16.mxu0 0
    %1043 = vmatpush1.bf16.msra.mxu0 0
    %1044 = vmatprep.mubr.bf16.mxu0 0
    %1045 = vmatmul.mubr.bf16.gmra.mrb[0].mxu0 %v962
    %v1046 = vpop.f32.mrb[0].mxu0
    %v1047 = vadd.f32 %v956, %v1046
    %v1048 = vpop.f32.mrb[0].mxu0
    %v1049 = vpop.f32.mrb[0].mxu0
    %v1050 = vadd.f32 %v956, %v1049
    %v1051 = vpop.f32.mrb[0].mxu0
    %1052 = vdwg.mxu0
    %v1053 = vadd.f32 %v1047, %v927
    %v1054 = vadd.f32 %v1050, %v930
    %v1055 = vpack.c.bf16 %v1054, %v1053
    %v1056 = vld [vmem:[#allocation11] sm:$0xf]
    %v1057 = vld [vmem:[#allocation11 + $0x4] sm:$0xf]
    %v1058 = vld [vmem:[#allocation11 + $0x8] sm:$0xf]
    %v1059 = vld [vmem:[#allocation11 + $0xc] sm:$0xf]
    %v1060 = vld [vmem:[#allocation11 + $0x10] sm:$0xf]
    %v1061 = vld [vmem:[#allocation11 + $0x14] sm:$0xf]
    %v1062 = vld [vmem:[#allocation11 + $0x18] sm:$0xf]
    %v1063 = vld [vmem:[#allocation11 + $0x1c] sm:$0xf]
    %v1064 = vld [vmem:[#allocation11 + $0x20] sm:$0xf]
    %v1065 = vld [vmem:[#allocation11 + $0x24] sm:$0xf]
    %v1066 = vld [vmem:[#allocation11 + $0x28] sm:$0xf]
    %v1067 = vld [vmem:[#allocation11 + $0x2c] sm:$0xf]
    %v1068 = vld [vmem:[#allocation11 + $0x30] sm:$0xf]
    %v1069 = vld [vmem:[#allocation11 + $0x34] sm:$0xf]
    %v1070 = vld [vmem:[#allocation11 + $0x38] sm:$0xf]
    %v1071 = vld [vmem:[#allocation11 + $0x3c] sm:$0xf]
    %v1072 = vld [vmem:[%s11] sm:$0x1]
    %v1074 = vlaneseq
    %v1075 = vshrl.u32 %v1074, 7
    %v1076 = vsub.s32 0, %v1075
    %v1077 = vrot.slane %v1072, %v1076
    %v1095 = vunpack.c.l.b16 %v1056
    %v1096 = vunpack.c.l.b16 %v1057
    %v1097 = vunpack.c.l.b16 %v1058
    %v1098 = vunpack.c.l.b16 %v1059
    %v1099 = vunpack.c.l.b16 %v1060
    %v1100 = vunpack.c.l.b16 %v1061
    %v1101 = vunpack.c.l.b16 %v1062
    %v1102 = vunpack.c.l.b16 %v1063
    %v1103 = vunpack.c.l.b16 %v1064
    %v1104 = vunpack.c.l.b16 %v1065
    %v1105 = vunpack.c.l.b16 %v1066
    %v1106 = vunpack.c.l.b16 %v1067
    %v1107 = vunpack.c.l.b16 %v1068
    %v1108 = vunpack.c.l.b16 %v1069
    %v1109 = vunpack.c.l.b16 %v1070
    %v1110 = vunpack.c.l.b16 %v1071
    %v1111 = vpack.c.b16 %v1096, %v1095
    %v1112 = vpack.c.b16 %v1098, %v1097
    %v1113 = vpack.c.b16 %v1100, %v1099
    %v1114 = vpack.c.b16 %v1102, %v1101
    %v1115 = vpack.c.b16 %v1104, %v1103
    %v1116 = vpack.c.b16 %v1106, %v1105
    %v1117 = vpack.c.b16 %v1108, %v1107
    %v1118 = vpack.c.b16 %v1110, %v1109
    %1127 = vmatprep.subr.bf16.mxu0 0
    %1128 = vmatpush1.bf16.msra.mxu0 %v1111
    %1129 = vmatprep.subr.bf16.mxu0 0
    %1130 = vmatpush1.bf16.msra.mxu0 %v1112
    %1131 = vmatprep.subr.bf16.mxu0 0
    %1132 = vmatpush1.bf16.msra.mxu0 %v1113
    %1133 = vmatprep.subr.bf16.mxu0 0
    %1134 = vmatpush1.bf16.msra.mxu0 %v1114
    %1135 = vmatprep.subr.bf16.mxu0 0
    %1136 = vmatpush1.bf16.msra.mxu0 %v1115
    %1137 = vmatprep.subr.bf16.mxu0 0
    %1138 = vmatpush1.bf16.msra.mxu0 %v1116
    %1139 = vmatprep.subr.bf16.mxu0 0
    %1140 = vmatpush1.bf16.msra.mxu0 %v1117
    %1141 = vmatprep.subr.bf16.mxu0 0
    %1142 = vmatpush1.bf16.msra.mxu0 %v1118
    %1143 = vmatprep.subr.bf16.mxu0 0
    %1144 = vmatpush1.bf16.msra.mxu0 0
    %1145 = vmatprep.subr.bf16.mxu0 0
    %1146 = vmatpush1.bf16.msra.mxu0 0
    %1147 = vmatprep.subr.bf16.mxu0 0
    %1148 = vmatpush1.bf16.msra.mxu0 0
    %1149 = vmatprep.subr.bf16.mxu0 0
    %1150 = vmatpush1.bf16.msra.mxu0 0
    %1151 = vmatprep.subr.bf16.mxu0 0
    %1152 = vmatpush1.bf16.msra.mxu0 0
    %1153 = vmatprep.subr.bf16.mxu0 0
    %1154 = vmatpush1.bf16.msra.mxu0 0
    %1155 = vmatprep.subr.bf16.mxu0 0
    %1156 = vmatpush1.bf16.msra.mxu0 0
    %1157 = vmatprep.subr.bf16.mxu0 0
    %1158 = vmatpush1.bf16.msra.mxu0 0
    %1159 = vmatprep.mubr.bf16.mxu0 0
    %1160 = vmatmul.mubr.bf16.gmra.mrb[0].mxu0 %v1055
    %v1161 = vpop.f32.mrb[0].mxu0
    %v1162 = vadd.f32 %v1077, %v1161
    %v1163 = vpop.f32.mrb[0].mxu0
    %v1164 = vpop.f32.mrb[0].mxu0
    %v1165 = vadd.f32 %v1077, %v1164
    %v1166 = vpop.f32.mrb[0].mxu0
    %1167 = vdwg.mxu0
    %v1168 = vmax.f32 %v1162, 0.0
    %v1169 = vmax.f32 %v1165, 0.0
    %v1170 = vpack.c.bf16 %v1169, %v1168
    %v1171 = vld [vmem:[#allocation13] sm:$0xf]
    %v1172 = vld [vmem:[#allocation13 + $0x4] sm:$0xf]
    %v1173 = vld [vmem:[#allocation13 + $0x8] sm:$0xf]
    %v1174 = vld [vmem:[#allocation13 + $0xc] sm:$0xf]
    %v1175 = vld [vmem:[#allocation13 + $0x10] sm:$0xf]
    %v1176 = vld [vmem:[#allocation13 + $0x14] sm:$0xf]
    %v1177 = vld [vmem:[#allocation13 + $0x18] sm:$0xf]
    %v1178 = vld [vmem:[#allocation13 + $0x1c] sm:$0xf]
    %v1179 = vld [vmem:[#allocation13 + $0x20] sm:$0xf]
    %v1180 = vld [vmem:[#allocation13 + $0x24] sm:$0xf]
    %v1181 = vld [vmem:[#allocation13 + $0x28] sm:$0xf]
    %v1182 = vld [vmem:[#allocation13 + $0x2c] sm:$0xf]
    %v1183 = vld [vmem:[#allocation13 + $0x30] sm:$0xf]
    %v1184 = vld [vmem:[#allocation13 + $0x34] sm:$0xf]
    %v1185 = vld [vmem:[#allocation13 + $0x38] sm:$0xf]
    %v1186 = vld [vmem:[#allocation13 + $0x3c] sm:$0xf]
    %v1187 = vld [vmem:[%s13] sm:$0x1]
    %v1189 = vlaneseq
    %v1190 = vshrl.u32 %v1189, 7
    %v1191 = vsub.s32 0, %v1190
    %v1192 = vrot.slane %v1187, %v1191
    %v1210 = vunpack.c.l.b16 %v1171
    %v1211 = vunpack.c.l.b16 %v1172
    %v1212 = vunpack.c.l.b16 %v1173
    %v1213 = vunpack.c.l.b16 %v1174
    %v1214 = vunpack.c.l.b16 %v1175
    %v1215 = vunpack.c.l.b16 %v1176
    %v1216 = vunpack.c.l.b16 %v1177
    %v1217 = vunpack.c.l.b16 %v1178
    %v1218 = vunpack.c.l.b16 %v1179
    %v1219 = vunpack.c.l.b16 %v1180
    %v1220 = vunpack.c.l.b16 %v1181
    %v1221 = vunpack.c.l.b16 %v1182
    %v1222 = vunpack.c.l.b16 %v1183
    %v1223 = vunpack.c.l.b16 %v1184
    %v1224 = vunpack.c.l.b16 %v1185
    %v1225 = vunpack.c.l.b16 %v1186
    %v1226 = vpack.c.b16 %v1211, %v1210
    %v1227 = vpack.c.b16 %v1213, %v1212
    %v1228 = vpack.c.b16 %v1215, %v1214
    %v1229 = vpack.c.b16 %v1217, %v1216
    %v1230 = vpack.c.b16 %v1219, %v1218
    %v1231 = vpack.c.b16 %v1221, %v1220
    %v1232 = vpack.c.b16 %v1223, %v1222
    %v1233 = vpack.c.b16 %v1225, %v1224
    %1242 = vmatprep.subr.bf16.mxu0 0
    %1243 = vmatpush1.bf16.msra.mxu0 %v1226
    %1244 = vmatprep.subr.bf16.mxu0 0
    %1245 = vmatpush1.bf16.msra.mxu0 %v1227
    %1246 = vmatprep.subr.bf16.mxu0 0
    %1247 = vmatpush1.bf16.msra.mxu0 %v1228
    %1248 = vmatprep.subr.bf16.mxu0 0
    %1249 = vmatpush1.bf16.msra.mxu0 %v1229
    %1250 = vmatprep.subr.bf16.mxu0 0
    %1251 = vmatpush1.bf16.msra.mxu0 %v1230
    %1252 = vmatprep.subr.bf16.mxu0 0
    %1253 = vmatpush1.bf16.msra.mxu0 %v1231
    %1254 = vmatprep.subr.bf16.mxu0 0
    %1255 = vmatpush1.bf16.msra.mxu0 %v1232
    %1256 = vmatprep.subr.bf16.mxu0 0
    %1257 = vmatpush1.bf16.msra.mxu0 %v1233
    %1258 = vmatprep.subr.bf16.mxu0 0
    %1259 = vmatpush1.bf16.msra.mxu0 0
    %1260 = vmatprep.subr.bf16.mxu0 0
    %1261 = vmatpush1.bf16.msra.mxu0 0
    %1262 = vmatprep.subr.bf16.mxu0 0
    %1263 = vmatpush1.bf16.msra.mxu0 0
    %1264 = vmatprep.subr.bf16.mxu0 0
    %1265 = vmatpush1.bf16.msra.mxu0 0
    %1266 = vmatprep.subr.bf16.mxu0 0
    %1267 = vmatpush1.bf16.msra.mxu0 0
    %1268 = vmatprep.subr.bf16.mxu0 0
    %1269 = vmatpush1.bf16.msra.mxu0 0
    %1270 = vmatprep.subr.bf16.mxu0 0
    %1271 = vmatpush1.bf16.msra.mxu0 0
    %1272 = vmatprep.subr.bf16.mxu0 0
    %1273 = vmatpush1.bf16.msra.mxu0 0
    %1274 = vmatprep.mubr.bf16.mxu0 0
    %1275 = vmatmul.mubr.bf16.gmra.mrb[0].mxu0 %v1170
    %v1276 = vpop.f32.mrb[0].mxu0
    %v1277 = vadd.f32 %v1192, %v1276
    %v1278 = vpop.f32.mrb[0].mxu0
    %v1279 = vpop.f32.mrb[0].mxu0
    %v1280 = vadd.f32 %v1192, %v1279
    %v1281 = vpop.f32.mrb[0].mxu0
    %1282 = vdwg.mxu0
    %v1283 = vmax.f32 %v1277, 0.0
    %v1284 = vmax.f32 %v1280, 0.0
    %v1285 = vpack.c.bf16 %v1284, %v1283
    %v1286 = vld [vmem:[%s14] sm:$0xf]
    %v1287 = vld [vmem:[%s14 + $0x4] sm:$0xf]
    %v1288 = vld [vmem:[%s14 + $0x8] sm:$0xf]
    %v1289 = vld [vmem:[%s14 + $0xc] sm:$0xf]
    %v1290 = vld [vmem:[%s14 + $0x10] sm:$0xf]
    %v1291 = vld [vmem:[%s14 + $0x14] sm:$0xf]
    %v1292 = vld [vmem:[%s14 + $0x18] sm:$0xf]
    %v1293 = vld [vmem:[%s14 + $0x1c] sm:$0xf]
    %v1294 = vld [vmem:[%s14 + $0x20] sm:$0xf]
    %v1295 = vld [vmem:[%s14 + $0x24] sm:$0xf]
    %v1296 = vld [vmem:[%s14 + $0x28] sm:$0xf]
    %v1297 = vld [vmem:[%s14 + $0x2c] sm:$0xf]
    %v1298 = vld [vmem:[%s14 + $0x30] sm:$0xf]
    %v1299 = vld [vmem:[%s14 + $0x34] sm:$0xf]
    %v1300 = vld [vmem:[%s14 + $0x38] sm:$0xf]
    %v1301 = vld [vmem:[%s14 + $0x3c] sm:$0xf]
    %v1302 = vld [vmem:[%s15] sm:$0x1]
    %v1304 = vlaneseq
    %v1305 = vshrl.u32 %v1304, 7
    %v1306 = vsub.s32 0, %v1305
    %v1307 = vrot.slane %v1302, %v1306
    %v1325 = vunpack.c.l.b16 %v1286
    %v1326 = vunpack.c.l.b16 %v1287
    %v1327 = vunpack.c.l.b16 %v1288
    %v1328 = vunpack.c.l.b16 %v1289
    %v1329 = vunpack.c.l.b16 %v1290
    %v1330 = vunpack.c.l.b16 %v1291
    %v1331 = vunpack.c.l.b16 %v1292
    %v1332 = vunpack.c.l.b16 %v1293
    %v1333 = vunpack.c.l.b16 %v1294
    %v1334 = vunpack.c.l.b16 %v1295
    %v1335 = vunpack.c.l.b16 %v1296
    %v1336 = vunpack.c.l.b16 %v1297
    %v1337 = vunpack.c.l.b16 %v1298
    %v1338 = vunpack.c.l.b16 %v1299
    %v1339 = vunpack.c.l.b16 %v1300
    %v1340 = vunpack.c.l.b16 %v1301
    %v1341 = vpack.c.b16 %v1326, %v1325
    %v1342 = vpack.c.b16 %v1328, %v1327
    %v1343 = vpack.c.b16 %v1330, %v1329
    %v1344 = vpack.c.b16 %v1332, %v1331
    %v1345 = vpack.c.b16 %v1334, %v1333
    %v1346 = vpack.c.b16 %v1336, %v1335
    %v1347 = vpack.c.b16 %v1338, %v1337
    %v1348 = vpack.c.b16 %v1340, %v1339
    %1357 = vmatprep.subr.bf16.mxu0 0
    %1358 = vmatpush1.bf16.msra.mxu0 %v1341
    %1359 = vmatprep.subr.bf16.mxu0 0
    %1360 = vmatpush1.bf16.msra.mxu0 %v1342
    %1361 = vmatprep.subr.bf16.mxu0 0
    %1362 = vmatpush1.bf16.msra.mxu0 %v1343
    %1363 = vmatprep.subr.bf16.mxu0 0
    %1364 = vmatpush1.bf16.msra.mxu0 %v1344
    %1365 = vmatprep.subr.bf16.mxu0 0
    %1366 = vmatpush1.bf16.msra.mxu0 %v1345
    %1367 = vmatprep.subr.bf16.mxu0 0
    %1368 = vmatpush1.bf16.msra.mxu0 %v1346
    %1369 = vmatprep.subr.bf16.mxu0 0
    %1370 = vmatpush1.bf16.msra.mxu0 %v1347
    %1371 = vmatprep.subr.bf16.mxu0 0
    %1372 = vmatpush1.bf16.msra.mxu0 %v1348
    %1373 = vmatprep.subr.bf16.mxu0 0
    %1374 = vmatpush1.bf16.msra.mxu0 0
    %1375 = vmatprep.subr.bf16.mxu0 0
    %1376 = vmatpush1.bf16.msra.mxu0 0
    %1377 = vmatprep.subr.bf16.mxu0 0
    %1378 = vmatpush1.bf16.msra.mxu0 0
    %1379 = vmatprep.subr.bf16.mxu0 0
    %1380 = vmatpush1.bf16.msra.mxu0 0
    %1381 = vmatprep.subr.bf16.mxu0 0
    %1382 = vmatpush1.bf16.msra.mxu0 0
    %1383 = vmatprep.subr.bf16.mxu0 0
    %1384 = vmatpush1.bf16.msra.mxu0 0
    %1385 = vmatprep.subr.bf16.mxu0 0
    %1386 = vmatpush1.bf16.msra.mxu0 0
    %1387 = vmatprep.subr.bf16.mxu0 0
    %1388 = vmatpush1.bf16.msra.mxu0 0
    %1389 = vmatprep.mubr.bf16.mxu0 0
    %1390 = vmatmul.mubr.bf16.gmra.mrb[0].mxu0 %v1285
    %v1391 = vpop.f32.mrb[0].mxu0
    %v1392 = vadd.f32 %v1307, %v1391
    %v1393 = vpop.f32.mrb[0].mxu0
    %v1394 = vpop.f32.mrb[0].mxu0
    %v1395 = vadd.f32 %v1307, %v1394
    %v1396 = vpop.f32.mrb[0].mxu0
    %1397 = vdwg.mxu0
    %1398 = vst [vmem:[#allocation14] sm:$0xff] %v1392
    %1399 = vst [vmem:[#allocation14 + $0x8] sm:$0xff] %v1395
    // Predicated region
    $region94: #{tpu_custom_call.1} parent=1 // pred_check
      _
    $region95: #{tpu_custom_call.1} parent=1 // pred_check_branch
      %1401 = sbr.rel (0) target = $region97
    $region96: #{tpu_custom_call.1} parent=1 // pred_region
      %s1403 = ssub.s32 256, 256
      %1404 = vsyncadd [#allocation4], %s1403
      %s1405 = sshll.u32 [#allocation14], 4
      %s1406 = int_to_ptr.vmem [resolvable:$true] %s1405
      %1411 = dma.vmem_to_hbm [thread:$0]  %s1406, 256, %s16, [#allocation4], 128, 128, 8
    $region97: #{tpu_custom_call.1} parent=1 // pred_fallthru
      _
    // Predicated region
    $region98: #{tpu_custom_call.1} parent=1 // pred_check
      _
    $region99: #{tpu_custom_call.1} parent=1 // pred_check_branch
      %1413 = sbr.rel (0) target = $region101
    $region100: #{tpu_custom_call.1} parent=1 // pred_region
      %1414 = dma.done [#allocation4], 256
    $region101: #{tpu_custom_call.1} parent=1 // pred_fallthru
      _
    %1415 = vsyncpa [#allocation3], 1
    %1416 = vsyncpa [#allocation6], 1
    %1417 = vsyncpa [#allocation9], 1
    %1418 = vsyncpa [#allocation12], 1
    %1419 = vsyncpa [#allocation4], 1

</llo_original>
